<compile_context>
chip_gen: v5e
topology: v5e:2x2
jax: 0.10.0
libtpu: 0.0.40
codegen_flags: <defaults>
</compile_context>

<pallas_src>
import math

import jax
import jax.numpy as jnp
from jax.experimental import pallas as pl
from jax.experimental.pallas import tpu as pltpu

NEG_INF = -1e30


# ----------------------------------------------------------------------------- feature detection
def _detect_buffered_one():
    """Check whether BlockSpec(pipeline_mode=pl.Buffered(1)) works on this install."""
    if not hasattr(pl, "Buffered"):
        return False
    try:
        spec = pl.BlockSpec((8, 128), lambda i: (0, 0), pipeline_mode=pl.Buffered(1))
    except Exception:
        return False
    try:
        def _k(x_ref, o_ref):
            o_ref[...] = x_ref[...] + 1.0

        out = pl.pallas_call(
            _k,
            out_shape=jax.ShapeDtypeStruct((8, 128), jnp.float32),
            grid=(1,),
            in_specs=[spec],
            out_specs=pl.BlockSpec((8, 128), lambda i: (0, 0)),
        )(jnp.zeros((8, 128), jnp.float32))
        jax.block_until_ready(out)
        return True
    except Exception:
        return False


_BUFFERED_ONE_OK = _detect_buffered_one()


def _bcast_spec(shape):
    """BlockSpec for a grid-invariant (broadcast) operand; single-buffered if possible."""
    zeros = (0,) * len(shape)
    if _BUFFERED_ONE_OK:
        return pl.BlockSpec(shape, lambda *_: zeros, pipeline_mode=pl.Buffered(1))
    return pl.BlockSpec(shape, lambda *_: zeros)


def _compiler_params(n_grid_axes, vmem_est_bytes):
    # TODO(synk): re-derive per-target VMEM budgets (v7x has 64 MiB/TC vs 128 MiB
    # on v5e/v6e); at production sizes the fused MLP weights should also get a
    # column grid axis instead of being fully resident.
    limit = int(min(64 << 20, max(32 << 20, 2 * int(vmem_est_bytes))))
    return pltpu.CompilerParams(
        dimension_semantics=("parallel",) * n_grid_axes,
        vmem_limit_bytes=limit,
    )


# ----------------------------------------------------------------------------- in-kernel math (all f32)
def _gelu_tanh(x):
    c = math.sqrt(2.0 / math.pi)
    return 0.5 * x * (1.0 + jnp.tanh(c * (x + 0.044715 * x * x * x)))


def _layernorm(x, g, b, eps):
    mu = jnp.mean(x, axis=-1, keepdims=True)
    xc = x - mu
    var = jnp.mean(xc * xc, axis=-1, keepdims=True)
    return xc * jax.lax.rsqrt(var + eps) * g + b


def _rmsnorm(x, g, eps):
    ms = jnp.mean(x * x, axis=-1, keepdims=True)
    return x * jax.lax.rsqrt(ms + eps) * g


# ----------------------------------------------------------------------------- generic row-gridded launcher
def _row_call(kernel, args, n_rows, out_dims, out_dtype=jnp.bfloat16):
    """Run `kernel` over a 1-D row grid (no pad/slice HBM copies in the common case).

    args: sequence of (2-D array, row_tiled). Row-tiled arrays have leading dim
    == n_rows; other arrays are broadcast whole (single-buffered) to every step.
    """
    M = n_rows
    m8 = -(-M // 8) * 8
    tm = min(256, m8)

    arrays, in_specs, est = [], [], 0
    for a, tiled in args:
        if tiled:
            if M % 8 != 0:  # rare ragged-sublane case; never hit in this script
                a = jnp.pad(a, ((0, m8 - M), (0, 0)))
            in_specs.append(pl.BlockSpec((tm, a.shape[1]), lambda i: (i, 0)))
            est += 2 * tm * a.shape[1] * a.dtype.itemsize
        else:
            in_specs.append(_bcast_spec(a.shape))
            est += (1 if _BUFFERED_ONE_OK else 2) * a.size * a.dtype.itemsize
        arrays.append(a)

    Mout = m8 if M % 8 != 0 else M
    grid = (pl.cdiv(Mout, tm),)
    out_shape = tuple(jax.ShapeDtypeStruct((Mout, d), out_dtype) for d in out_dims)
    out_specs = tuple(pl.BlockSpec((tm, d), lambda i: (i, 0)) for d in out_dims)
    est += sum(2 * tm * d * jnp.dtype(out_dtype).itemsize for d in out_dims)
    est += 4 * tm * max(out_dims)  # f32 accumulator headroom

    single = len(out_dims) == 1
    outs = pl.pallas_call(
        kernel,
        out_shape=out_shape[0] if single else out_shape,
        grid=grid,
        in_specs=in_specs,
        out_specs=out_specs[0] if single else out_specs,
        compiler_params=_compiler_params(1, est),
    )(*arrays)
    if single:
        outs = (outs,)
    if Mout != M:
        outs = tuple(o[:M] for o in outs)
    return outs


# ----------------------------------------------------------------------------- kernels
def _make_linear_kernel(has_bias, has_res, activation):
    def kernel(*refs):
        refs = list(refs)
        x_ref = refs.pop(0)
        w_ref = refs.pop(0)
        b_ref = refs.pop(0) if has_bias else None
        r_ref = refs.pop(0) if has_res else None
        o_ref = refs.pop(0)
        acc = jnp.dot(x_ref[...].astype(jnp.bfloat16), w_ref[...].astype(jnp.bfloat16),
                      preferred_element_type=jnp.float32)
        if has_bias:
            acc = acc + b_ref[...]
        if activation == "gelu":
            acc = _gelu_tanh(acc)
        if has_res:
            acc = acc + r_ref[...].astype(jnp.float32)
        o_ref[...] = acc.astype(o_ref.dtype)
    return kernel


def _make_layernorm_kernel(eps):
    def kernel(x_ref, g_ref, b_ref, o_ref):
        y = _layernorm(x_ref[...].astype(jnp.float32), g_ref[...], b_ref[...], eps)
        o_ref[...] = y.astype(o_ref.dtype)
    return kernel


def _make_rmsnorm_kernel(eps):
    def kernel(x_ref, g_ref, o_ref):
        y = _rmsnorm(x_ref[...].astype(jnp.float32), g_ref[...], eps)
        o_ref[...] = y.astype(o_ref.dtype)
    return kernel


def _make_ln_qkv_kernel(eps):
    # LayerNorm fused with the three QKV projections (ViT attention input).
    def kernel(x_ref, g_ref, b_ref, wq_ref, bq_ref, wk_ref, bk_ref, wv_ref, bv_ref,
               q_ref, k_ref, v_ref):
        h = _layernorm(x_ref[...].astype(jnp.float32), g_ref[...], b_ref[...],
                       eps).astype(jnp.bfloat16)
        q_ref[...] = (jnp.dot(h, wq_ref[...], preferred_element_type=jnp.float32)
                      + bq_ref[...]).astype(q_ref.dtype)
        k_ref[...] = (jnp.dot(h, wk_ref[...], preferred_element_type=jnp.float32)
                      + bk_ref[...]).astype(k_ref.dtype)
        v_ref[...] = (jnp.dot(h, wv_ref[...], preferred_element_type=jnp.float32)
                      + bv_ref[...]).astype(v_ref.dtype)
    return kernel


def _make_rms_qkv_kernel(eps):
    # RMSNorm fused with the three (bias-free) QKV projections (decoder).
    def kernel(x_ref, g_ref, wq_ref, wk_ref, wv_ref, q_ref, k_ref, v_ref):
        h = _rmsnorm(x_ref[...].astype(jnp.float32), g_ref[...], eps).astype(jnp.bfloat16)
        q_ref[...] = jnp.dot(h, wq_ref[...], preferred_element_type=jnp.float32).astype(q_ref.dtype)
        k_ref[...] = jnp.dot(h, wk_ref[...], preferred_element_type=jnp.float32).astype(k_ref.dtype)
        v_ref[...] = jnp.dot(h, wv_ref[...], preferred_element_type=jnp.float32).astype(v_ref.dtype)
    return kernel


def _make_ln_mlp_kernel(eps):
    # Full ViT MLP block: x + fc2(gelu_tanh(fc1(LN(x)))), all in one kernel.
    def kernel(x_ref, g_ref, b_ref, w1_ref, b1_ref, w2_ref, b2_ref, o_ref):
        x = x_ref[...].astype(jnp.float32)
        h = _layernorm(x, g_ref[...], b_ref[...], eps).astype(jnp.bfloat16)
        a = jnp.dot(h, w1_ref[...], preferred_element_type=jnp.float32) + b1_ref[...]
        a = _gelu_tanh(a).astype(jnp.bfloat16)
        y = x + jnp.dot(a, w2_ref[...], preferred_element_type=jnp.float32) + b2_ref[...]
        o_ref[...] = y.astype(o_ref.dtype)
    return kernel


def _make_rms_mlp_kernel(eps):
    # Full decoder MLP block: x + down(silu(gate(RMS(x))) * up(RMS(x))).
    def kernel(x_ref, g_ref, wg_ref, wu_ref, wd_ref, o_ref):
        x = x_ref[...].astype(jnp.float32)
        h = _rmsnorm(x, g_ref[...], eps).astype(jnp.bfloat16)
        gg = jnp.dot(h, wg_ref[...], preferred_element_type=jnp.float32)
        uu = jnp.dot(h, wu_ref[...], preferred_element_type=jnp.float32)
        a = (gg * jax.nn.sigmoid(gg) * uu).astype(jnp.bfloat16)
        y = x + jnp.dot(a, wd_ref[...], preferred_element_type=jnp.float32)
        o_ref[...] = y.astype(o_ref.dtype)
    return kernel


def _make_attn_kernel(n_heads, n_kv, head_dim, scale, causal, has_mask, rope,
                      fuse_out, has_bo):
    # One grid step = one batch element, all heads.
    #   q: (1,T,nH*Dh)  k/v: (1,T,nKV*Dh)  (GQA K/V never repeated)
    #   RoPE is applied once to the full q / k lane slabs (sign folded into sin).
    #   Per KV group, the `rep` query heads are stacked along sublanes so each
    #   group does one QK^T, one softmax, one PV (bigger MXU fill).
    #   Output projection (+bias) + residual are fused in.
    rep = n_heads // n_kv
    half = head_dim // 2

    def rot_slab(x, width):
        # per-head rotate_half on a (T, n*Dh) slab: two slab-wide rolls + select.
        # TODO(synk): use pltpu.roll (XLU slot) for the two rolls instead of
        # slice+concat once verified on sub-128-lane slabs.
        xp = jnp.concatenate([x[:, width - half:], x[:, :width - half]], axis=-1)  # roll +half
        xm = jnp.concatenate([x[:, half:], x[:, :half]], axis=-1)                  # roll -half
        lane = jax.lax.broadcasted_iota(jnp.int32, x.shape, 1)
        return jnp.where((lane % head_dim) < half, xm, xp)

    def kernel(*refs):
        refs = list(refs)
        q_ref = refs.pop(0)
        k_ref = refs.pop(0)
        v_ref = refs.pop(0)
        m_ref = refs.pop(0) if has_mask else None
        if rope:
            cq_ref = refs.pop(0)
            sq_ref = refs.pop(0)
            ck_ref = refs.pop(0)
            sk_ref = refs.pop(0)
        wo_ref = refs.pop(0) if fuse_out else None
        bo_ref = refs.pop(0) if (fuse_out and has_bo) else None
        r_ref = refs.pop(0) if fuse_out else None
        o_ref = refs.pop(0)

        T = q_ref.shape[1]
        WQ = q_ref.shape[2]
        WKV = k_ref.shape[2]

        if rope:
            qf = q_ref[0].astype(jnp.float32)
            kf = k_ref[0].astype(jnp.float32)
            q = (qf * cq_ref[...] + rot_slab(qf, WQ) * sq_ref[...]).astype(jnp.bfloat16)
            k = (kf * ck_ref[...] + rot_slab(kf, WKV) * sk_ref[...]).astype(jnp.bfloat16)
        else:
            q = q_ref[0].astype(jnp.bfloat16)
            k = k_ref[0].astype(jnp.bfloat16)
        v = v_ref[0].astype(jnp.bfloat16)

        rows = rep * T
        allow = None
        if causal:
            qi = jax.lax.broadcasted_iota(jnp.int32, (rows, T), 0) % T
            ki = jax.lax.broadcasted_iota(jnp.int32, (rows, T), 1)
            allow = ki <= qi
        if has_mask:
            kv_ok = m_ref[0] > 0.0                     # (1, T) bool
            allow = kv_ok if allow is None else jnp.logical_and(allow, kv_ok)

        outs = []
        for g in range(n_kv):
            kh = k[:, g * head_dim:(g + 1) * head_dim]
            vh = v[:, g * head_dim:(g + 1) * head_dim]
            if rep == 1:
                qg = q[:, g * head_dim:(g + 1) * head_dim]          # (T, Dh)
            else:
                qg = jnp.concatenate(
                    [q[:, (g * rep + r) * head_dim:(g * rep + r + 1) * head_dim]
                     for r in range(rep)], axis=0)                  # (rep*T, Dh), head-major rows
            s = jax.lax.dot_general(qg, kh, (((1,), (1,)), ((), ())),
                                    preferred_element_type=jnp.float32) * scale
            if allow is not None:
                s = jnp.where(allow, s, NEG_INF)
            s = s - jnp.max(s, axis=-1, keepdims=True)
            p = jnp.exp(s)
            p = p * pl.reciprocal(jnp.sum(p, axis=-1, keepdims=True), approx=True)
            og = jnp.dot(p.astype(jnp.bfloat16), vh,
                         preferred_element_type=jnp.float32)        # (rows, Dh)
            if rep > 1:
                og = jnp.concatenate([og[r * T:(r + 1) * T, :] for r in range(rep)],
                                     axis=-1)                       # (T, rep*Dh)
            outs.append(og)
        attn = outs[0] if len(outs) == 1 else jnp.concatenate(outs, axis=-1)  # (T, WQ) f32

        if fuse_out:
            y = jnp.dot(attn.astype(jnp.bfloat16), wo_ref[...].astype(jnp.bfloat16),
                        preferred_element_type=jnp.float32)
            if has_bo:
                y = y + bo_ref[...]
            y = y + r_ref[0].astype(jnp.float32)
            o_ref[0] = y.astype(o_ref.dtype)
        else:
            o_ref[0] = attn.astype(o_ref.dtype)

    return kernel


# ----------------------------------------------------------------------------- wrappers
def pallas_linear(x, w, b=None, residual=None, activation=None, out_dtype=jnp.bfloat16):
    *lead, K = x.shape
    N = w.shape[1]
    M = math.prod(lead)
    args = [(x.reshape(M, K), True), (w, False)]
    if b is not None:
        args.append((b, False))
    if residual is not None:
        args.append((residual.reshape(M, N), True))
    kernel = _make_linear_kernel(b is not None, residual is not None, activation)
    (out,) = _row_call(kernel, args, M, (N,), out_dtype=out_dtype)
    return out.reshape(*lead, N)


def pallas_layernorm(x, g, b, eps, out_dtype=jnp.bfloat16):
    *lead, D = x.shape
    M = math.prod(lead)
    (out,) = _row_call(_make_layernorm_kernel(eps),
                       [(x.reshape(M, D), True), (g, False), (b, False)],
                       M, (D,), out_dtype=out_dtype)
    return out.reshape(*lead, D)


def pallas_rmsnorm(x, g, eps, out_dtype=jnp.bfloat16):
    *lead, D = x.shape
    M = math.prod(lead)
    (out,) = _row_call(_make_rmsnorm_kernel(eps),
                       [(x.reshape(M, D), True), (g, False)],
                       M, (D,), out_dtype=out_dtype)
    return out.reshape(*lead, D)


def pallas_attention(q, k, v, *, n_heads, n_kv, head_dim, causal,
                     key_mask=None, cos=None, sin=None,
                     wo=None, bo=None, residual=None, out_dtype=jnp.bfloat16):
    """q: (B,T,nH*Dh) bf16, k/v: (B,T,nKV*Dh) bf16 (un-repeated), key_mask: (B,T).

    wo/bo/residual (optional) fuse the output projection + residual add in-kernel.
    """
    B, T, WQ = q.shape
    WKV = k.shape[-1]
    rope = cos is not None
    has_mask = key_mask is not None
    fuse_out = wo is not None
    Dout = wo.shape[1] if fuse_out else WQ
    scale = 1.0 / math.sqrt(head_dim)
    rep = n_heads // n_kv

    kernel = _make_attn_kernel(n_heads, n_kv, head_dim, scale, causal,
                               has_mask, rope, fuse_out, bo is not None)

    args = [q, k, v]
    in_specs = [pl.BlockSpec((1, T, WQ), lambda b: (b, 0, 0)),
                pl.BlockSpec((1, T, WKV), lambda b: (b, 0, 0)),
                pl.BlockSpec((1, T, WKV), lambda b: (b, 0, 0))]
    est = 4 * T * (WQ + 2 * WKV + Dout) + 4 * rep * T * T + 8 * 4 * T * WQ

    if has_mask:
        args.append(key_mask.astype(jnp.float32).reshape(B, 1, T))
        in_specs.append(pl.BlockSpec((1, 1, T), lambda b: (b, 0, 0)))
        est += 8 * T
    if rope:
        half = head_dim // 2
        sign = jnp.concatenate([-jnp.ones((half,), jnp.float32),
                                jnp.ones((half,), jnp.float32)])
        sin_s = sin * sign[None, :]                       # sign folded into sin
        tables = (jnp.tile(cos, (1, n_heads)), jnp.tile(sin_s, (1, n_heads)),
                  jnp.tile(cos, (1, n_kv)), jnp.tile(sin_s, (1, n_kv)))
        for t in tables:
            args.append(t)
            in_specs.append(_bcast_spec(t.shape))
            est += t.size * 4
    if fuse_out:
        args.append(wo)
        in_specs.append(_bcast_spec(wo.shape))
        est += wo.size * 2
        if bo is not None:
            args.append(bo)
            in_specs.append(_bcast_spec(bo.shape))
        args.append(residual)
        in_specs.append(pl.BlockSpec((1, T, Dout), lambda b: (b, 0, 0)))
        est += 4 * T * Dout

    out = pl.pallas_call(
        kernel,
        out_shape=jax.ShapeDtypeStruct((B, T, Dout), out_dtype),
        grid=(B,),
        in_specs=in_specs,
        out_specs=pl.BlockSpec((1, T, Dout), lambda b: (b, 0, 0)),
        compiler_params=_compiler_params(1, est),
    )(*args)
    return out
    # TODO(synk): for long sequences, tile the KV axis (flash-style online
    # softmax) and/or put KV groups on a second grid axis so both v7x TCs stay
    # busy at small batch and the (T,T) score block never materializes.


# ----------------------------------------------------------------------------- model pieces
def vit_forward(p, image, cfg):
    B, C, H, W = image.shape
    P = cfg["vit_patch_size"]
    D = cfg["vit_hidden_dim"]
    nH = cfg["vit_n_heads"]
    eps = cfg["vit_ln_eps"]
    Hp, Wp = H // P, W // P
    N = Hp * Wp
    Dh = D // nH

    # Conv2d(kernel=stride=P) == im2col + matmul; patch vector ordered (c, ph, pw)
    patches = (image.reshape(B, C, Hp, P, Wp, P)
               .transpose(0, 2, 4, 1, 3, 5)
               .reshape(B, N, C * P * P))
    x = pallas_linear(patches, p["patch_w"], p["patch_b"])
    x = x + p["pos_emb"]                     # learned pos-emb; dropout = identity (eval)

    M = B * N
    for blk in p["blocks"]:
        # fused LayerNorm + QKV projection (keeps (B,T,H*Dh) layout, no transposes)
        q2, k2, v2 = _row_call(
            _make_ln_qkv_kernel(eps),
            [(x.reshape(M, D), True),
             (blk["ln1_g"], False), (blk["ln1_b"], False),
             (blk["wq"], False), (blk["bq"], False),
             (blk["wk"], False), (blk["bk"], False),
             (blk["wv"], False), (blk["bv"], False)],
            M, (D, D, D))
        # attention with fused output projection + bias + residual; no mask at all
        x = pallas_attention(q2.reshape(B, N, D), k2.reshape(B, N, D), v2.reshape(B, N, D),
                             n_heads=nH, n_kv=nH, head_dim=Dh, causal=False,
                             wo=blk["wo"], bo=blk["bo"], residual=x)

        # fused LayerNorm + GELU MLP + residual
        (x2,) = _row_call(
            _make_ln_mlp_kernel(eps),
            [(x.reshape(M, D), True),
             (blk["ln2_g"], False), (blk["ln2_b"], False),
             (blk["w1"], False), (blk["b1"], False),
             (blk["w2"], False), (blk["b2"], False)],
            M, (D,))
        x = x2.reshape(B, N, D)

    return pallas_layernorm(x, p["ln_g"], p["ln_b"], eps)


def mp_forward(p, x, cfg):
    # pixel shuffle: (B, S, D) -> (B, S/sf^2, D*sf^2), then bias-free projection
    sf = cfg["mp_pixel_shuffle_factor"]
    B, S, D = x.shape
    r = int(math.isqrt(S))
    h_out = r // sf
    x = x.reshape(B, r, r, D)
    x = x.reshape(B, h_out, sf, h_out, sf, D)
    x = x.transpose(0, 1, 3, 2, 4, 5)
    x = x.reshape(B, h_out * h_out, D * sf * sf)
    return pallas_linear(x, p["proj_w"])


def lm_forward(p, x, attention_mask, cfg):
    B, T, D = x.shape
    nH = cfg["lm_n_heads"]
    nKV = cfg["lm_n_kv_heads"]
    Dh = D // nH
    eps = cfg["lm_rms_eps"]
    DKV = nKV * Dh

    # rotary tables (tiny glue); RoPE itself is applied inside the attention kernel
    pos = jnp.arange(T, dtype=jnp.float32)
    inv_freq = 1.0 / (cfg["lm_re_base"] ** (jnp.arange(0, Dh, 2, dtype=jnp.float32) / Dh))
    freqs = pos[:, None] * inv_freq[None, :]
    emb = jnp.concatenate([freqs, freqs], axis=-1)
    cos, sin = jnp.cos(emb), jnp.sin(emb)          # (T, Dh)

    key_mask = attention_mask.astype(jnp.float32)  # (B, T); causal part built in-kernel
    M = B * T
    for blk in p["blocks"]:
        # fused RMSNorm + QKV projection (K/V stay un-repeated for GQA)
        q2, k2, v2 = _row_call(
            _make_rms_qkv_kernel(eps),
            [(x.reshape(M, D), True), (blk["n1_g"], False),
             (blk["wq"], False), (blk["wk"], False), (blk["wv"], False)],
            M, (D, DKV, DKV))
        # attention with in-kernel RoPE, GQA group batching, fused o-proj + residual
        x = pallas_attention(q2.reshape(B, T, D), k2.reshape(B, T, DKV), v2.reshape(B, T, DKV),
                             n_heads=nH, n_kv=nKV, head_dim=Dh, causal=True,
                             key_mask=key_mask, cos=cos, sin=sin,
                             wo=blk["wo"], residual=x)

        # fused RMSNorm + SwiGLU MLP + residual
        (x2,) = _row_call(
            _make_rms_mlp_kernel(eps),
            [(x.reshape(M, D), True), (blk["n2_g"], False),
             (blk["wg"], False), (blk["wu"], False), (blk["wd"], False)],
            M, (D,))
        x = x2.reshape(B, T, D)

    return pallas_rmsnorm(x, p["norm_g"], eps, out_dtype=jnp.float32)


def vlm_forward(params, input_ids, image, attention_mask, cfg):
    image_embd = vit_forward(params["vit"], image, cfg)          # (B, N_vit, D_vit) bf16
    image_embd = mp_forward(params["mp"], image_embd, cfg)       # (B, N_img, D_lm) bf16
    token_embd = params["lm"]["tok_emb"][input_ids]              # (B, T_txt, D_lm) bf16
    combined = jnp.concatenate([image_embd, token_embd], axis=1)

    B, S_img = image_embd.shape[0], image_embd.shape[1]
    img_mask = jnp.ones((B, S_img), dtype=attention_mask.dtype)
    full_mask = jnp.concatenate([img_mask, attention_mask], axis=1)

    # lm_use_tokens=False and targets=None -> decoder hidden states returned as "logits"
    logits = lm_forward(params["lm"], combined, full_mask, cfg)
    return logits
    # TODO(synk): cross-entropy loss branch (targets is not None) and the
    # multinomial-sampling `generate` loop are not implemented here.
    # TODO(synk): on v7x, store the large decoder weights as fp8 with per-channel
    # scales to halve weight DMA / resident VMEM.


# ----------------------------------------------------------------------------- params (weights pre-cast to bf16 once, outside jit)
class _KeyGen:
    def __init__(self, key):
        self.key = key

    def __call__(self):
        self.key, k = jax.random.split(self.key)
        return k


def init_vlm_params(key, cfg):
    kg = _KeyGen(key)

    def w(shape, scale=0.02):
        return (scale * jax.random.normal(kg(), shape, dtype=jnp.float32)).astype(jnp.bfloat16)

    def zrow(n):
        return jnp.zeros((1, n), jnp.float32)

    def orow(n):
        return jnp.ones((1, n), jnp.float32)

    Dv = cfg["vit_hidden_dim"]
    Iv = cfg["vit_inter_dim"]
    P = cfg["vit_patch_size"]
    n_patch = (cfg["vit_img_size"] // P) ** 2
    vit = {
        "patch_w": w((3 * P * P, Dv)),
        "patch_b": zrow(Dv),
        "pos_emb": w((1, n_patch, Dv)),
        "ln_g": orow(Dv),
        "ln_b": zrow(Dv),
        "blocks": [],
    }
    for _ in range(cfg["vit_n_blocks"]):
        vit["blocks"].append({
            "ln1_g": orow(Dv), "ln1_b": zrow(Dv),
            "wq": w((Dv, Dv)), "bq": zrow(Dv),
            "wk": w((Dv, Dv)), "bk": zrow(Dv),
            "wv": w((Dv, Dv)), "bv": zrow(Dv),
            "wo": w((Dv, Dv)), "bo": zrow(Dv),
            "ln2_g": orow(Dv), "ln2_b": zrow(Dv),
            "w1": w((Dv, Iv)), "b1": zrow(Iv),
            "w2": w((Iv, Dv)), "b2": zrow(Dv),
        })

    sf = cfg["mp_pixel_shuffle_factor"]
    Dl = cfg["lm_hidden_dim"]
    Il = cfg["lm_inter_dim"]
    mp = {"proj_w": w((Dv * sf * sf, Dl))}

    Dh = Dl // cfg["lm_n_heads"]
    DKV = cfg["lm_n_kv_heads"] * Dh
    lm = {
        "tok_emb": w((cfg["lm_vocab_size"], Dl)),
        "norm_g": orow(Dl),
        "blocks": [],
    }
    for _ in range(cfg["lm_n_blocks"]):
        lm["blocks"].append({
            "n1_g": orow(Dl),
            "wq": w((Dl, cfg["lm_n_heads"] * Dh)),
            "wk": w((Dl, DKV)),
            "wv": w((Dl, DKV)),
            "wo": w((cfg["lm_n_heads"] * Dh, Dl)),
            "n2_g": orow(Dl),
            "wg": w((Dl, Il)),
            "wu": w((Dl, Il)),
            "wd": w((Il, Dl)),
        })
    return {"vit": vit, "mp": mp, "lm": lm}


# ----------------------------------------------------------------------------- main
if __name__ == "__main__":
    cfg = dict(
        vit_img_size=16,
        vit_patch_size=4,
        vit_hidden_dim=32,
        vit_inter_dim=64,
        vit_n_heads=4,
        vit_n_blocks=2,
        vit_ln_eps=1e-6,
        mp_pixel_shuffle_factor=2,
        lm_hidden_dim=64,
        lm_inter_dim=128,
        lm_n_heads=4,
        lm_n_kv_heads=2,
        lm_n_blocks=2,
        lm_vocab_size=128,
        lm_re_base=10000.0,
        lm_rms_eps=1e-5,
    )

    key = jax.random.PRNGKey(0)
    pkey, ikey, tkey = jax.random.split(key, 3)

    params = init_vlm_params(pkey, cfg)
    image = jax.random.normal(ikey, (2, 3, 16, 16), dtype=jnp.float32)       # NCHW
    txt_len = 12                                       # 4 image tokens + 12 text = 16 (aligned)
    input_ids = jax.random.randint(tkey, (2, txt_len), 0, cfg["lm_vocab_size"])
    attention_mask = jnp.ones((2, txt_len), dtype=jnp.int32).at[1, -1].set(0)  # one padded token

    fwd = jax.jit(lambda p, ids, img, m: vlm_forward(p, ids, img, m, cfg))
    logits = fwd(params, input_ids, image, attention_mask)
    logits = jax.block_until_ready(logits)

    n_img_tokens = (cfg["vit_img_size"] // cfg["vit_patch_size"]) ** 2 // (
        cfg["mp_pixel_shuffle_factor"] ** 2
    )
    assert logits.shape == (2, n_img_tokens + txt_len, cfg["lm_hidden_dim"]), logits.shape
    assert bool(jnp.all(jnp.isfinite(logits)))
    print("KERNEL_OK")
</pallas_src>

<mosaic_0001>
module attributes {stable_mosaic.version = 11 : i64} {
  func.func @_k(%arg0: i32, %arg1: memref<8x128xf32, #tpu.memory_space<vmem>>, %arg2: memref<8x128xf32, #tpu.memory_space<vmem>>) attributes {dimension_semantics = [#tpu.dimension_semantics<arbitrary>], iteration_bounds = array<i64: 1>, scalar_prefetch = 0 : i64, scratch_operands = 0 : i64, tpu.core_type = #tpu.core_type<tc>, window_params = [{pipeline_mode = #tpu.pipeline_mode<synchronous>, transform_indices = @transform_0, window_bounds = array<i64: 8, 128>}, {pipeline_mode = #tpu.pipeline_mode<synchronous>, transform_indices = @transform_1, window_bounds = array<i64: 8, 128>}]} {
    %c0 = arith.constant 0 : index
    %c0_0 = arith.constant 0 : index
    %0 = vector.load %arg1[%c0, %c0_0] : memref<8x128xf32, #tpu.memory_space<vmem>>, vector<8x128xf32>
    %cst = arith.constant 1.000000e+00 : f32
    %1 = vector.broadcast %cst : f32 to vector<8x128xf32>
    %2 = arith.addf %0, %1 : vector<8x128xf32>
    %c0_1 = arith.constant 0 : index
    %c0_2 = arith.constant 0 : index
    %3 = vector.load %arg2[%c0_1, %c0_2] : memref<8x128xf32, #tpu.memory_space<vmem>>, vector<8x128xf32>
    tpu.vector_store %arg2[%c0_1, %c0_2], %2 {strides = array<i32>} : memref<8x128xf32, #tpu.memory_space<vmem>>, vector<8x128xf32>,
    return
  }
  func.func @transform_0(%arg0: i32) -> (i32, i32) {
    %c0_i32 = arith.constant 0 : i32
    %c0_i32_0 = arith.constant 0 : i32
    %c0_i32_1 = arith.constant 0 : i32
    return %c0_i32, %c0_i32_0 : i32, i32
  }
  func.func @transform_1(%arg0: i32) -> (i32, i32) {
    %c0_i32 = arith.constant 0 : i32
    %c0_i32_0 = arith.constant 0 : i32
    %c0_i32_1 = arith.constant 0 : i32
    return %c0_i32, %c0_i32_0 : i32, i32
  }
}

module attributes {stable_mosaic.version = 11 : i64} {
  func.func @kernel(%arg0: i32, %arg1: memref<32x48xf32, #tpu.memory_space<vmem>>, %arg2: memref<48x32xbf16, #tpu.memory_space<vmem>>, %arg3: memref<1x32xf32, #tpu.memory_space<vmem>>, %arg4: memref<32x32xbf16, #tpu.memory_space<vmem>>) attributes {dimension_semantics = [#tpu.dimension_semantics<parallel>], iteration_bounds = array<i64: 1>, scalar_prefetch = 0 : i64, scratch_operands = 0 : i64, tpu.core_type = #tpu.core_type<tc>, window_params = [{transform_indices = @transform_0, window_bounds = array<i64: 32, 48>}, {pipeline_mode = #tpu.pipeline_mode<synchronous>, transform_indices = @transform_1, window_bounds = array<i64: 48, 32>}, {pipeline_mode = #tpu.pipeline_mode<synchronous>, transform_indices = @transform_2, window_bounds = array<i64: 1, 32>}, {transform_indices = @transform_3, window_bounds = array<i64: 32, 32>}]} {
    %c0 = arith.constant 0 : index
    %c0_0 = arith.constant 0 : index
    %0 = vector.load %arg1[%c0, %c0_0] : memref<32x48xf32, #tpu.memory_space<vmem>>, vector<32x48xf32>
    %1 = arith.truncf %0 : vector<32x48xf32> to vector<32x48xbf16>
    %c0_1 = arith.constant 0 : index
    %c0_2 = arith.constant 0 : index
    %2 = vector.load %arg2[%c0_1, %c0_2] : memref<48x32xbf16, #tpu.memory_space<vmem>>, vector<48x32xbf16>
    %cst = arith.constant dense<0.000000e+00> : vector<32x32xf32>
    %3 = tpu.matmul %1, %2, %cst {dimension_numbers = #tpu.dot_dimension_numbers<[1], [0], [0], [1], [0, 0, 1, 1], [], []>} : vector<32x48xbf16>, vector<48x32xbf16>, vector<32x32xf32> -> vector<32x32xf32>
    %c0_3 = arith.constant 0 : index
    %c0_4 = arith.constant 0 : index
    %4 = vector.load %arg3[%c0_3, %c0_4] : memref<1x32xf32, #tpu.memory_space<vmem>>, vector<1x32xf32>
    %5 = vector.broadcast %4 : vector<1x32xf32> to vector<32x32xf32>
    %6 = arith.addf %3, %5 : vector<32x32xf32>
    %7 = arith.truncf %6 : vector<32x32xf32> to vector<32x32xbf16>
    %c0_5 = arith.constant 0 : index
    %c0_6 = arith.constant 0 : index
    %8 = vector.load %arg4[%c0_5, %c0_6] : memref<32x32xbf16, #tpu.memory_space<vmem>>, vector<32x32xbf16>
    tpu.vector_store %arg4[%c0_5, %c0_6], %7 {strides = array<i32>} : memref<32x32xbf16, #tpu.memory_space<vmem>>, vector<32x32xbf16>,
    return
  }
  func.func @transform_0(%arg0: i32) -> (i32, i32) {
    %c0_i32 = arith.constant 0 : i32
    %c0_i32_0 = arith.constant 0 : i32
    return %arg0, %c0_i32 : i32, i32
  }
  func.func @transform_1(%arg0: i32) -> (i32, i32) {
    %c0_i32 = arith.constant 0 : i32
    %c0_i32_0 = arith.constant 0 : i32
    %c0_i32_1 = arith.constant 0 : i32
    return %c0_i32, %c0_i32_0 : i32, i32
  }
  func.func @transform_2(%arg0: i32) -> (i32, i32) {
    %c0_i32 = arith.constant 0 : i32
    %c0_i32_0 = arith.constant 0 : i32
    %c0_i32_1 = arith.constant 0 : i32
    return %c0_i32, %c0_i32_0 : i32, i32
  }
  func.func @transform_3(%arg0: i32) -> (i32, i32) {
    %c0_i32 = arith.constant 0 : i32
    %c0_i32_0 = arith.constant 0 : i32
    return %arg0, %c0_i32 : i32, i32
  }
}

module attributes {stable_mosaic.version = 11 : i64} {
  func.func @kernel(%arg0: i32, %arg1: memref<1x16x32xbf16, #tpu.memory_space<vmem>>, %arg2: memref<1x16x32xbf16, #tpu.memory_space<vmem>>, %arg3: memref<1x16x32xbf16, #tpu.memory_space<vmem>>, %arg4: memref<32x32xbf16, #tpu.memory_space<vmem>>, %arg5: memref<1x32xf32, #tpu.memory_space<vmem>>, %arg6: memref<1x16x32xbf16, #tpu.memory_space<vmem>>, %arg7: memref<1x16x32xbf16, #tpu.memory_space<vmem>>) attributes {dimension_semantics = [#tpu.dimension_semantics<parallel>], iteration_bounds = array<i64: 2>, scalar_prefetch = 0 : i64, scratch_operands = 0 : i64, tpu.core_type = #tpu.core_type<tc>, window_params = [{transform_indices = @transform_0, window_bounds = array<i64: 1, 16, 32>}, {transform_indices = @transform_1, window_bounds = array<i64: 1, 16, 32>}, {transform_indices = @transform_2, window_bounds = array<i64: 1, 16, 32>}, {pipeline_mode = #tpu.pipeline_mode<synchronous>, transform_indices = @transform_3, window_bounds = array<i64: 32, 32>}, {pipeline_mode = #tpu.pipeline_mode<synchronous>, transform_indices = @transform_4, window_bounds = array<i64: 1, 32>}, {transform_indices = @transform_5, window_bounds = array<i64: 1, 16, 32>}, {transform_indices = @transform_6, window_bounds = array<i64: 1, 16, 32>}]} {
    %c0 = arith.constant 0 : index
    %c0_0 = arith.constant 0 : index
    %c0_1 = arith.constant 0 : index
    %0 = vector.load %arg1[%c0, %c0_0, %c0_1] : memref<1x16x32xbf16, #tpu.memory_space<vmem>>, vector<1x16x32xbf16>
    %1 = vector.shape_cast %0 : vector<1x16x32xbf16> to vector<16x32xbf16>
    %c0_2 = arith.constant 0 : index
    %c0_3 = arith.constant 0 : index
    %c0_4 = arith.constant 0 : index
    %2 = vector.load %arg2[%c0_2, %c0_3, %c0_4] : memref<1x16x32xbf16, #tpu.memory_space<vmem>>, vector<1x16x32xbf16>
    %3 = vector.shape_cast %2 : vector<1x16x32xbf16> to vector<16x32xbf16>
    %c0_5 = arith.constant 0 : index
    %c0_6 = arith.constant 0 : index
    %c0_7 = arith.constant 0 : index
    %4 = vector.load %arg3[%c0_5, %c0_6, %c0_7] : memref<1x16x32xbf16, #tpu.memory_space<vmem>>, vector<1x16x32xbf16>
    %5 = vector.shape_cast %4 : vector<1x16x32xbf16> to vector<16x32xbf16>
    %6 = vector.extract_strided_slice %3 {offsets = [0, 0], sizes = [16, 8], strides = [1, 1]} : vector<16x32xbf16> to vector<16x8xbf16>
    %7 = vector.extract_strided_slice %5 {offsets = [0, 0], sizes = [16, 8], strides = [1, 1]} : vector<16x32xbf16> to vector<16x8xbf16>
    %8 = vector.extract_strided_slice %1 {offsets = [0, 0], sizes = [16, 8], strides = [1, 1]} : vector<16x32xbf16> to vector<16x8xbf16>
    %cst = arith.constant dense<0.000000e+00> : vector<16x16xf32>
    %9 = tpu.matmul %8, %6, %cst {dimension_numbers = #tpu.dot_dimension_numbers<[1], [1], [0], [0], [0, 0, 1, 0], [], []>} : vector<16x8xbf16>, vector<16x8xbf16>, vector<16x16xf32> -> vector<16x16xf32>
    %cst_8 = arith.constant 0.353553385 : f32
    %10 = vector.broadcast %cst_8 : f32 to vector<16x16xf32>
    %11 = arith.mulf %9, %10 : vector<16x16xf32>
    %cst_9 = arith.constant dense<0xFF800000> : vector<16xf32>
    %12 = vector.multi_reduction <maximumf>, %11, %cst_9 [1] : vector<16x16xf32> to vector<16xf32>
    %13 = vector.shape_cast %12 : vector<16xf32> to vector<16x1xf32>
    %14 = vector.broadcast %13 : vector<16x1xf32> to vector<16x16xf32>
    %15 = arith.subf %11, %14 : vector<16x16xf32>
    %16 = math.exp %15 : vector<16x16xf32>
    %cst_10 = arith.constant dense<0.000000e+00> : vector<16xf32>
    %17 = vector.multi_reduction <add>, %16, %cst_10 [1] : vector<16x16xf32> to vector<16xf32>
    %18 = vector.shape_cast %17 : vector<16xf32> to vector<16x1xf32>
    %19 = tpu.reciprocal %18 {approx = true} : vector<16x1xf32> -> vector<16x1xf32>
    %20 = vector.broadcast %19 : vector<16x1xf32> to vector<16x16xf32>
    %21 = arith.mulf %16, %20 : vector<16x16xf32>
    %22 = arith.truncf %21 : vector<16x16xf32> to vector<16x16xbf16>
    %cst_11 = arith.constant dense<0.000000e+00> : vector<16x8xf32>
    %23 = tpu.matmul %22, %7, %cst_11 {dimension_numbers = #tpu.dot_dimension_numbers<[1], [0], [0], [1], [0, 0, 1, 1], [], []>} : vector<16x16xbf16>, vector<16x8xbf16>, vector<16x8xf32> -> vector<16x8xf32>
    %24 = vector.extract_strided_slice %3 {offsets = [0, 8], sizes = [16, 8], strides = [1, 1]} : vector<16x32xbf16> to vector<16x8xbf16>
    %25 = vector.extract_strided_slice %5 {offsets = [0, 8], sizes = [16, 8], strides = [1, 1]} : vector<16x32xbf16> to vector<16x8xbf16>
    %26 = vector.extract_strided_slice %1 {offsets = [0, 8], sizes = [16, 8], strides = [1, 1]} : vector<16x32xbf16> to vector<16x8xbf16>
    %cst_12 = arith.constant dense<0.000000e+00> : vector<16x16xf32>
    %27 = tpu.matmul %26, %24, %cst_12 {dimension_numbers = #tpu.dot_dimension_numbers<[1], [1], [0], [0], [0, 0, 1, 0], [], []>} : vector<16x8xbf16>, vector<16x8xbf16>, vector<16x16xf32> -> vector<16x16xf32>
    %cst_13 = arith.constant 0.353553385 : f32
    %28 = vector.broadcast %cst_13 : f32 to vector<16x16xf32>
    %29 = arith.mulf %27, %28 : vector<16x16xf32>
    %cst_14 = arith.constant dense<0xFF800000> : vector<16xf32>
    %30 = vector.multi_reduction <maximumf>, %29, %cst_14 [1] : vector<16x16xf32> to vector<16xf32>
    %31 = vector.shape_cast %30 : vector<16xf32> to vector<16x1xf32>
    %32 = vector.broadcast %31 : vector<16x1xf32> to vector<16x16xf32>
    %33 = arith.subf %29, %32 : vector<16x16xf32>
    %34 = math.exp %33 : vector<16x16xf32>
    %cst_15 = arith.constant dense<0.000000e+00> : vector<16xf32>
    %35 = vector.multi_reduction <add>, %34, %cst_15 [1] : vector<16x16xf32> to vector<16xf32>
    %36 = vector.shape_cast %35 : vector<16xf32> to vector<16x1xf32>
    %37 = tpu.reciprocal %36 {approx = true} : vector<16x1xf32> -> vector<16x1xf32>
    %38 = vector.broadcast %37 : vector<16x1xf32> to vector<16x16xf32>
    %39 = arith.mulf %34, %38 : vector<16x16xf32>
    %40 = arith.truncf %39 : vector<16x16xf32> to vector<16x16xbf16>
    %cst_16 = arith.constant dense<0.000000e+00> : vector<16x8xf32>
    %41 = tpu.matmul %40, %25, %cst_16 {dimension_numbers = #tpu.dot_dimension_numbers<[1], [0], [0], [1], [0, 0, 1, 1], [], []>} : vector<16x16xbf16>, vector<16x8xbf16>, vector<16x8xf32> -> vector<16x8xf32>
    %42 = vector.extract_strided_slice %3 {offsets = [0, 16], sizes = [16, 8], strides = [1, 1]} : vector<16x32xbf16> to vector<16x8xbf16>
    %43 = vector.extract_strided_slice %5 {offsets = [0, 16], sizes = [16, 8], strides = [1, 1]} : vector<16x32xbf16> to vector<16x8xbf16>
    %44 = vector.extract_strided_slice %1 {offsets = [0, 16], sizes = [16, 8], strides = [1, 1]} : vector<16x32xbf16> to vector<16x8xbf16>
    %cst_17 = arith.constant dense<0.000000e+00> : vector<16x16xf32>
    %45 = tpu.matmul %44, %42, %cst_17 {dimension_numbers = #tpu.dot_dimension_numbers<[1], [1], [0], [0], [0, 0, 1, 0], [], []>} : vector<16x8xbf16>, vector<16x8xbf16>, vector<16x16xf32> -> vector<16x16xf32>
    %cst_18 = arith.constant 0.353553385 : f32
    %46 = vector.broadcast %cst_18 : f32 to vector<16x16xf32>
    %47 = arith.mulf %45, %46 : vector<16x16xf32>
    %cst_19 = arith.constant dense<0xFF800000> : vector<16xf32>
    %48 = vector.multi_reduction <maximumf>, %47, %cst_19 [1] : vector<16x16xf32> to vector<16xf32>
    %49 = vector.shape_cast %48 : vector<16xf32> to vector<16x1xf32>
    %50 = vector.broadcast %49 : vector<16x1xf32> to vector<16x16xf32>
    %51 = arith.subf %47, %50 : vector<16x16xf32>
    %52 = math.exp %51 : vector<16x16xf32>
    %cst_20 = arith.constant dense<0.000000e+00> : vector<16xf32>
    %53 = vector.multi_reduction <add>, %52, %cst_20 [1] : vector<16x16xf32> to vector<16xf32>
    %54 = vector.shape_cast %53 : vector<16xf32> to vector<16x1xf32>
    %55 = tpu.reciprocal %54 {approx = true} : vector<16x1xf32> -> vector<16x1xf32>
    %56 = vector.broadcast %55 : vector<16x1xf32> to vector<16x16xf32>
    %57 = arith.mulf %52, %56 : vector<16x16xf32>
    %58 = arith.truncf %57 : vector<16x16xf32> to vector<16x16xbf16>
    %cst_21 = arith.constant dense<0.000000e+00> : vector<16x8xf32>
    %59 = tpu.matmul %58, %43, %cst_21 {dimension_numbers = #tpu.dot_dimension_numbers<[1], [0], [0], [1], [0, 0, 1, 1], [], []>} : vector<16x16xbf16>, vector<16x8xbf16>, vector<16x8xf32> -> vector<16x8xf32>
    %60 = vector.extract_strided_slice %3 {offsets = [0, 24], sizes = [16, 8], strides = [1, 1]} : vector<16x32xbf16> to vector<16x8xbf16>
    %61 = vector.extract_strided_slice %5 {offsets = [0, 24], sizes = [16, 8], strides = [1, 1]} : vector<16x32xbf16> to vector<16x8xbf16>
    %62 = vector.extract_strided_slice %1 {offsets = [0, 24], sizes = [16, 8], strides = [1, 1]} : vector<16x32xbf16> to vector<16x8xbf16>
    %cst_22 = arith.constant dense<0.000000e+00> : vector<16x16xf32>
    %63 = tpu.matmul %62, %60, %cst_22 {dimension_numbers = #tpu.dot_dimension_numbers<[1], [1], [0], [0], [0, 0, 1, 0], [], []>} : vector<16x8xbf16>, vector<16x8xbf16>, vector<16x16xf32> -> vector<16x16xf32>
    %cst_23 = arith.constant 0.353553385 : f32
    %64 = vector.broadcast %cst_23 : f32 to vector<16x16xf32>
    %65 = arith.mulf %63, %64 : vector<16x16xf32>
    %cst_24 = arith.constant dense<0xFF800000> : vector<16xf32>
    %66 = vector.multi_reduction <maximumf>, %65, %cst_24 [1] : vector<16x16xf32> to vector<16xf32>
    %67 = vector.shape_cast %66 : vector<16xf32> to vector<16x1xf32>
    %68 = vector.broadcast %67 : vector<16x1xf32> to vector<16x16xf32>
    %69 = arith.subf %65, %68 : vector<16x16xf32>
    %70 = math.exp %69 : vector<16x16xf32>
    %cst_25 = arith.constant dense<0.000000e+00> : vector<16xf32>
    %71 = vector.multi_reduction <add>, %70, %cst_25 [1] : vector<16x16xf32> to vector<16xf32>
    %72 = vector.shape_cast %71 : vector<16xf32> to vector<16x1xf32>
    %73 = tpu.reciprocal %72 {approx = true} : vector<16x1xf32> -> vector<16x1xf32>
    %74 = vector.broadcast %73 : vector<16x1xf32> to vector<16x16xf32>
    %75 = arith.mulf %70, %74 : vector<16x16xf32>
    %76 = arith.truncf %75 : vector<16x16xf32> to vector<16x16xbf16>
    %cst_26 = arith.constant dense<0.000000e+00> : vector<16x8xf32>
    %77 = tpu.matmul %76, %61, %cst_26 {dimension_numbers = #tpu.dot_dimension_numbers<[1], [0], [0], [1], [0, 0, 1, 1], [], []>} : vector<16x16xbf16>, vector<16x8xbf16>, vector<16x8xf32> -> vector<16x8xf32>
    %78 = tpu.concatenate %23, %41, %59, %77 in 1 : vector<16x8xf32>, vector<16x8xf32>, vector<16x8xf32>, vector<16x8xf32> -> vector<16x32xf32>
    %79 = arith.truncf %78 : vector<16x32xf32> to vector<16x32xbf16>
    %c0_27 = arith.constant 0 : index
    %c0_28 = arith.constant 0 : index
    %80 = vector.load %arg4[%c0_27, %c0_28] : memref<32x32xbf16, #tpu.memory_space<vmem>>, vector<32x32xbf16>
    %cst_29 = arith.constant dense<0.000000e+00> : vector<16x32xf32>
    %81 = tpu.matmul %79, %80, %cst_29 {dimension_numbers = #tpu.dot_dimension_numbers<[1], [0], [0], [1], [0, 0, 1, 1], [], []>} : vector<16x32xbf16>, vector<32x32xbf16>, vector<16x32xf32> -> vector<16x32xf32>
    %c0_30 = arith.constant 0 : index
    %c0_31 = arith.constant 0 : index
    %82 = vector.load %arg5[%c0_30, %c0_31] : memref<1x32xf32, #tpu.memory_space<vmem>>, vector<1x32xf32>
    %83 = vector.broadcast %82 : vector<1x32xf32> to vector<16x32xf32>
    %84 = arith.addf %81, %83 : vector<16x32xf32>
    %c0_32 = arith.constant 0 : index
    %c0_33 = arith.constant 0 : index
    %c0_34 = arith.constant 0 : index
    %85 = vector.load %arg6[%c0_32, %c0_33, %c0_34] : memref<1x16x32xbf16, #tpu.memory_space<vmem>>, vector<1x16x32xbf16>
    %86 = vector.shape_cast %85 : vector<1x16x32xbf16> to vector<16x32xbf16>
    %87 = arith.extf %86 : vector<16x32xbf16> to vector<16x32xf32>
    %88 = arith.addf %84, %87 : vector<16x32xf32>
    %89 = arith.truncf %88 : vector<16x32xf32> to vector<16x32xbf16>
    %c0_35 = arith.constant 0 : index
    %c0_36 = arith.constant 0 : index
    %c0_37 = arith.constant 0 : index
    %90 = vector.load %arg7[%c0_35, %c0_36, %c0_37] : memref<1x16x32xbf16, #tpu.memory_space<vmem>>, vector<1x16x32xbf16>
    %91 = vector.shape_cast %90 : vector<1x16x32xbf16> to vector<16x32xbf16>
    %92 = vector.shape_cast %89 : vector<16x32xbf16> to vector<1x16x32xbf16>
    tpu.vector_store %arg7[%c0_35, %c0_36, %c0_37], %92 {strides = array<i32>} : memref<1x16x32xbf16, #tpu.memory_space<vmem>>, vector<1x16x32xbf16>,
    return
  }
  func.func @transform_0(%arg0: i32) -> (i32, i32, i32) {
    %c0_i32 = arith.constant 0 : i32
    %c0_i32_0 = arith.constant 0 : i32
    %c0_i32_1 = arith.constant 0 : i32
    return %arg0, %c0_i32, %c0_i32_0 : i32, i32, i32
  }
  func.func @transform_1(%arg0: i32) -> (i32, i32, i32) {
    %c0_i32 = arith.constant 0 : i32
    %c0_i32_0 = arith.constant 0 : i32
    %c0_i32_1 = arith.constant 0 : i32
    return %arg0, %c0_i32, %c0_i32_0 : i32, i32, i32
  }
  func.func @transform_2(%arg0: i32) -> (i32, i32, i32) {
    %c0_i32 = arith.constant 0 : i32
    %c0_i32_0 = arith.constant 0 : i32
    %c0_i32_1 = arith.constant 0 : i32
    return %arg0, %c0_i32, %c0_i32_0 : i32, i32, i32
  }
  func.func @transform_3(%arg0: i32) -> (i32, i32) {
    %c0_i32 = arith.constant 0 : i32
    %c0_i32_0 = arith.constant 0 : i32
    %c0_i32_1 = arith.constant 0 : i32
    return %c0_i32, %c0_i32_0 : i32, i32
  }
  func.func @transform_4(%arg0: i32) -> (i32, i32) {
    %c0_i32 = arith.constant 0 : i32
    %c0_i32_0 = arith.constant 0 : i32
    %c0_i32_1 = arith.constant 0 : i32
    return %c0_i32, %c0_i32_0 : i32, i32
  }
  func.func @transform_5(%arg0: i32) -> (i32, i32, i32) {
    %c0_i32 = arith.constant 0 : i32
    %c0_i32_0 = arith.constant 0 : i32
    %c0_i32_1 = arith.constant 0 : i32
    return %arg0, %c0_i32, %c0_i32_0 : i32, i32, i32
  }
  func.func @transform_6(%arg0: i32) -> (i32, i32, i32) {
    %c0_i32 = arith.constant 0 : i32
    %c0_i32_0 = arith.constant 0 : i32
    %c0_i32_1 = arith.constant 0 : i32
    return %arg0, %c0_i32, %c0_i32_0 : i32, i32, i32
  }
}

module attributes {stable_mosaic.version = 11 : i64} {
  func.func @kernel(%arg0: i32, %arg1: memref<32x32xbf16, #tpu.memory_space<vmem>>, %arg2: memref<1x32xf32, #tpu.memory_space<vmem>>, %arg3: memref<1x32xf32, #tpu.memory_space<vmem>>, %arg4: memref<32x64xbf16, #tpu.memory_space<vmem>>, %arg5: memref<1x64xf32, #tpu.memory_space<vmem>>, %arg6: memref<64x32xbf16, #tpu.memory_space<vmem>>, %arg7: memref<1x32xf32, #tpu.memory_space<vmem>>, %arg8: memref<32x32xbf16, #tpu.memory_space<vmem>>) attributes {dimension_semantics = [#tpu.dimension_semantics<parallel>], iteration_bounds = array<i64: 1>, scalar_prefetch = 0 : i64, scratch_operands = 0 : i64, tpu.core_type = #tpu.core_type<tc>, window_params = [{transform_indices = @transform_0, window_bounds = array<i64: 32, 32>}, {pipeline_mode = #tpu.pipeline_mode<synchronous>, transform_indices = @transform_1, window_bounds = array<i64: 1, 32>}, {pipeline_mode = #tpu.pipeline_mode<synchronous>, transform_indices = @transform_2, window_bounds = array<i64: 1, 32>}, {pipeline_mode = #tpu.pipeline_mode<synchronous>, transform_indices = @transform_3, window_bounds = array<i64: 32, 64>}, {pipeline_mode = #tpu.pipeline_mode<synchronous>, transform_indices = @transform_4, window_bounds = array<i64: 1, 64>}, {pipeline_mode = #tpu.pipeline_mode<synchronous>, transform_indices = @transform_5, window_bounds = array<i64: 64, 32>}, {pipeline_mode = #tpu.pipeline_mode<synchronous>, transform_indices = @transform_6, window_bounds = array<i64: 1, 32>}, {transform_indices = @transform_7, window_bounds = array<i64: 32, 32>}]} {
    %c0 = arith.constant 0 : index
    %c0_0 = arith.constant 0 : index
    %0 = vector.load %arg1[%c0, %c0_0] : memref<32x32xbf16, #tpu.memory_space<vmem>>, vector<32x32xbf16>
    %1 = arith.extf %0 : vector<32x32xbf16> to vector<32x32xf32>
    %c0_1 = arith.constant 0 : index
    %c0_2 = arith.constant 0 : index
    %2 = vector.load %arg2[%c0_1, %c0_2] : memref<1x32xf32, #tpu.memory_space<vmem>>, vector<1x32xf32>
    %c0_3 = arith.constant 0 : index
    %c0_4 = arith.constant 0 : index
    %3 = vector.load %arg3[%c0_3, %c0_4] : memref<1x32xf32, #tpu.memory_space<vmem>>, vector<1x32xf32>
    %cst = arith.constant dense<0.000000e+00> : vector<32xf32>
    %4 = vector.multi_reduction <add>, %1, %cst [1] : vector<32x32xf32> to vector<32xf32>
    %5 = vector.shape_cast %4 : vector<32xf32> to vector<32x1xf32>
    %cst_5 = arith.constant 3.200000e+01 : f32
    %6 = vector.broadcast %cst_5 : f32 to vector<32x1xf32>
    %7 = arith.divf %5, %6 : vector<32x1xf32>
    %8 = vector.broadcast %7 : vector<32x1xf32> to vector<32x32xf32>
    %9 = arith.subf %1, %8 : vector<32x32xf32>
    %10 = arith.mulf %9, %9 : vector<32x32xf32>
    %cst_6 = arith.constant dense<0.000000e+00> : vector<32xf32>
    %11 = vector.multi_reduction <add>, %10, %cst_6 [1] : vector<32x32xf32> to vector<32xf32>
    %12 = vector.shape_cast %11 : vector<32xf32> to vector<32x1xf32>
    %cst_7 = arith.constant 3.200000e+01 : f32
    %13 = vector.broadcast %cst_7 : f32 to vector<32x1xf32>
    %14 = arith.divf %12, %13 : vector<32x1xf32>
    %cst_8 = arith.constant 9.99999997E-7 : f32
    %15 = vector.broadcast %cst_8 : f32 to vector<32x1xf32>
    %16 = arith.addf %14, %15 : vector<32x1xf32>
    %17 = math.rsqrt %16 : vector<32x1xf32>
    %18 = vector.broadcast %17 : vector<32x1xf32> to vector<32x32xf32>
    %19 = arith.mulf %9, %18 : vector<32x32xf32>
    %20 = vector.broadcast %2 : vector<1x32xf32> to vector<32x32xf32>
    %21 = arith.mulf %19, %20 : vector<32x32xf32>
    %22 = vector.broadcast %3 : vector<1x32xf32> to vector<32x32xf32>
    %23 = arith.addf %21, %22 : vector<32x32xf32>
    %24 = arith.truncf %23 : vector<32x32xf32> to vector<32x32xbf16>
    %c0_9 = arith.constant 0 : index
    %c0_10 = arith.constant 0 : index
    %25 = vector.load %arg4[%c0_9, %c0_10] : memref<32x64xbf16, #tpu.memory_space<vmem>>, vector<32x64xbf16>
    %cst_11 = arith.constant dense<0.000000e+00> : vector<32x64xf32>
    %26 = tpu.matmul %24, %25, %cst_11 {dimension_numbers = #tpu.dot_dimension_numbers<[1], [0], [0], [1], [0, 0, 1, 1], [], []>} : vector<32x32xbf16>, vector<32x64xbf16>, vector<32x64xf32> -> vector<32x64xf32>
    %c0_12 = arith.constant 0 : index
    %c0_13 = arith.constant 0 : index
    %27 = vector.load %arg5[%c0_12, %c0_13] : memref<1x64xf32, #tpu.memory_space<vmem>>, vector<1x64xf32>
    %28 = vector.broadcast %27 : vector<1x64xf32> to vector<32x64xf32>
    %29 = arith.addf %26, %28 : vector<32x64xf32>
    %cst_14 = arith.constant 5.000000e-01 : f32
    %30 = vector.broadcast %cst_14 : f32 to vector<32x64xf32>
    %31 = arith.mulf %30, %29 : vector<32x64xf32>
    %cst_15 = arith.constant 4.471500e-02 : f32
    %32 = vector.broadcast %cst_15 : f32 to vector<32x64xf32>
    %33 = arith.mulf %32, %29 : vector<32x64xf32>
    %34 = arith.mulf %33, %29 : vector<32x64xf32>
    %35 = arith.mulf %34, %29 : vector<32x64xf32>
    %36 = arith.addf %29, %35 : vector<32x64xf32>
    %cst_16 = arith.constant 0.797884583 : f32
    %37 = vector.broadcast %cst_16 : f32 to vector<32x64xf32>
    %38 = arith.mulf %37, %36 : vector<32x64xf32>
    %39 = math.tanh %38 : vector<32x64xf32>
    %cst_17 = arith.constant 1.000000e+00 : f32
    %40 = vector.broadcast %cst_17 : f32 to vector<32x64xf32>
    %41 = arith.addf %40, %39 : vector<32x64xf32>
    %42 = arith.mulf %31, %41 : vector<32x64xf32>
    %43 = arith.truncf %42 : vector<32x64xf32> to vector<32x64xbf16>
    %c0_18 = arith.constant 0 : index
    %c0_19 = arith.constant 0 : index
    %44 = vector.load %arg6[%c0_18, %c0_19] : memref<64x32xbf16, #tpu.memory_space<vmem>>, vector<64x32xbf16>
    %cst_20 = arith.constant dense<0.000000e+00> : vector<32x32xf32>
    %45 = tpu.matmul %43, %44, %cst_20 {dimension_numbers = #tpu.dot_dimension_numbers<[1], [0], [0], [1], [0, 0, 1, 1], [], []>} : vector<32x64xbf16>, vector<64x32xbf16>, vector<32x32xf32> -> vector<32x32xf32>
    %46 = arith.addf %1, %45 : vector<32x32xf32>
    %c0_21 = arith.constant 0 : index
    %c0_22 = arith.constant 0 : index
    %47 = vector.load %arg7[%c0_21, %c0_22] : memref<1x32xf32, #tpu.memory_space<vmem>>, vector<1x32xf32>
    %48 = vector.broadcast %47 : vector<1x32xf32> to vector<32x32xf32>
    %49 = arith.addf %46, %48 : vector<32x32xf32>
    %50 = arith.truncf %49 : vector<32x32xf32> to vector<32x32xbf16>
    %c0_23 = arith.constant 0 : index
    %c0_24 = arith.constant 0 : index
    %51 = vector.load %arg8[%c0_23, %c0_24] : memref<32x32xbf16, #tpu.memory_space<vmem>>, vector<32x32xbf16>
    tpu.vector_store %arg8[%c0_23, %c0_24], %50 {strides = array<i32>} : memref<32x32xbf16, #tpu.memory_space<vmem>>, vector<32x32xbf16>,
    return
  }
  func.func @transform_0(%arg0: i32) -> (i32, i32) {
    %c0_i32 = arith.constant 0 : i32
    %c0_i32_0 = arith.constant 0 : i32
    return %arg0, %c0_i32 : i32, i32
  }
  func.func @transform_1(%arg0: i32) -> (i32, i32) {
    %c0_i32 = arith.constant 0 : i32
    %c0_i32_0 = arith.constant 0 : i32
    %c0_i32_1 = arith.constant 0 : i32
    return %c0_i32, %c0_i32_0 : i32, i32
  }
  func.func @transform_2(%arg0: i32) -> (i32, i32) {
    %c0_i32 = arith.constant 0 : i32
    %c0_i32_0 = arith.constant 0 : i32
    %c0_i32_1 = arith.constant 0 : i32
    return %c0_i32, %c0_i32_0 : i32, i32
  }
  func.func @transform_3(%arg0: i32) -> (i32, i32) {
    %c0_i32 = arith.constant 0 : i32
    %c0_i32_0 = arith.constant 0 : i32
    %c0_i32_1 = arith.constant 0 : i32
    return %c0_i32, %c0_i32_0 : i32, i32
  }
  func.func @transform_4(%arg0: i32) -> (i32, i32) {
    %c0_i32 = arith.constant 0 : i32
    %c0_i32_0 = arith.constant 0 : i32
    %c0_i32_1 = arith.constant 0 : i32
    return %c0_i32, %c0_i32_0 : i32, i32
  }
  func.func @transform_5(%arg0: i32) -> (i32, i32) {
    %c0_i32 = arith.constant 0 : i32
    %c0_i32_0 = arith.constant 0 : i32
    %c0_i32_1 = arith.constant 0 : i32
    return %c0_i32, %c0_i32_0 : i32, i32
  }
  func.func @transform_6(%arg0: i32) -> (i32, i32) {
    %c0_i32 = arith.constant 0 : i32
    %c0_i32_0 = arith.constant 0 : i32
    %c0_i32_1 = arith.constant 0 : i32
    return %c0_i32, %c0_i32_0 : i32, i32
  }
  func.func @transform_7(%arg0: i32) -> (i32, i32) {
    %c0_i32 = arith.constant 0 : i32
    %c0_i32_0 = arith.constant 0 : i32
    return %arg0, %c0_i32 : i32, i32
  }
}

module attributes {stable_mosaic.version = 11 : i64} {
  func.func @kernel(%arg0: i32, %arg1: memref<32x32xbf16, #tpu.memory_space<vmem>>, %arg2: memref<1x32xf32, #tpu.memory_space<vmem>>, %arg3: memref<1x32xf32, #tpu.memory_space<vmem>>, %arg4: memref<32x32xbf16, #tpu.memory_space<vmem>>, %arg5: memref<1x32xf32, #tpu.memory_space<vmem>>, %arg6: memref<32x32xbf16, #tpu.memory_space<vmem>>, %arg7: memref<1x32xf32, #tpu.memory_space<vmem>>, %arg8: memref<32x32xbf16, #tpu.memory_space<vmem>>, %arg9: memref<1x32xf32, #tpu.memory_space<vmem>>, %arg10: memref<32x32xbf16, #tpu.memory_space<vmem>>, %arg11: memref<32x32xbf16, #tpu.memory_space<vmem>>, %arg12: memref<32x32xbf16, #tpu.memory_space<vmem>>) attributes {dimension_semantics = [#tpu.dimension_semantics<parallel>], iteration_bounds = array<i64: 1>, scalar_prefetch = 0 : i64, scratch_operands = 0 : i64, tpu.core_type = #tpu.core_type<tc>, window_params = [{transform_indices = @transform_0, window_bounds = array<i64: 32, 32>}, {pipeline_mode = #tpu.pipeline_mode<synchronous>, transform_indices = @transform_1, window_bounds = array<i64: 1, 32>}, {pipeline_mode = #tpu.pipeline_mode<synchronous>, transform_indices = @transform_2, window_bounds = array<i64: 1, 32>}, {pipeline_mode = #tpu.pipeline_mode<synchronous>, transform_indices = @transform_3, window_bounds = array<i64: 32, 32>}, {pipeline_mode = #tpu.pipeline_mode<synchronous>, transform_indices = @transform_4, window_bounds = array<i64: 1, 32>}, {pipeline_mode = #tpu.pipeline_mode<synchronous>, transform_indices = @transform_5, window_bounds = array<i64: 32, 32>}, {pipeline_mode = #tpu.pipeline_mode<synchronous>, transform_indices = @transform_6, window_bounds = array<i64: 1, 32>}, {pipeline_mode = #tpu.pipeline_mode<synchronous>, transform_indices = @transform_7, window_bounds = array<i64: 32, 32>}, {pipeline_mode = #tpu.pipeline_mode<synchronous>, transform_indices = @transform_8, window_bounds = array<i64: 1, 32>}, {transform_indices = @transform_9, window_bounds = array<i64: 32, 32>}, {transform_indices = @transform_10, window_bounds = array<i64: 32, 32>}, {transform_indices = @transform_11, window_bounds = array<i64: 32, 32>}]} {
    %c0 = arith.constant 0 : index
    %c0_0 = arith.constant 0 : index
    %0 = vector.load %arg1[%c0, %c0_0] : memref<32x32xbf16, #tpu.memory_space<vmem>>, vector<32x32xbf16>
    %1 = arith.extf %0 : vector<32x32xbf16> to vector<32x32xf32>
    %c0_1 = arith.constant 0 : index
    %c0_2 = arith.constant 0 : index
    %2 = vector.load %arg2[%c0_1, %c0_2] : memref<1x32xf32, #tpu.memory_space<vmem>>, vector<1x32xf32>
    %c0_3 = arith.constant 0 : index
    %c0_4 = arith.constant 0 : index
    %3 = vector.load %arg3[%c0_3, %c0_4] : memref<1x32xf32, #tpu.memory_space<vmem>>, vector<1x32xf32>
    %cst = arith.constant dense<0.000000e+00> : vector<32xf32>
    %4 = vector.multi_reduction <add>, %1, %cst [1] : vector<32x32xf32> to vector<32xf32>
    %5 = vector.shape_cast %4 : vector<32xf32> to vector<32x1xf32>
    %cst_5 = arith.constant 3.200000e+01 : f32
    %6 = vector.broadcast %cst_5 : f32 to vector<32x1xf32>
    %7 = arith.divf %5, %6 : vector<32x1xf32>
    %8 = vector.broadcast %7 : vector<32x1xf32> to vector<32x32xf32>
    %9 = arith.subf %1, %8 : vector<32x32xf32>
    %10 = arith.mulf %9, %9 : vector<32x32xf32>
    %cst_6 = arith.constant dense<0.000000e+00> : vector<32xf32>
    %11 = vector.multi_reduction <add>, %10, %cst_6 [1] : vector<32x32xf32> to vector<32xf32>
    %12 = vector.shape_cast %11 : vector<32xf32> to vector<32x1xf32>
    %cst_7 = arith.constant 3.200000e+01 : f32
    %13 = vector.broadcast %cst_7 : f32 to vector<32x1xf32>
    %14 = arith.divf %12, %13 : vector<32x1xf32>
    %cst_8 = arith.constant 9.99999997E-7 : f32
    %15 = vector.broadcast %cst_8 : f32 to vector<32x1xf32>
    %16 = arith.addf %14, %15 : vector<32x1xf32>
    %17 = math.rsqrt %16 : vector<32x1xf32>
    %18 = vector.broadcast %17 : vector<32x1xf32> to vector<32x32xf32>
    %19 = arith.mulf %9, %18 : vector<32x32xf32>
    %20 = vector.broadcast %2 : vector<1x32xf32> to vector<32x32xf32>
    %21 = arith.mulf %19, %20 : vector<32x32xf32>
    %22 = vector.broadcast %3 : vector<1x32xf32> to vector<32x32xf32>
    %23 = arith.addf %21, %22 : vector<32x32xf32>
    %24 = arith.truncf %23 : vector<32x32xf32> to vector<32x32xbf16>
    %c0_9 = arith.constant 0 : index
    %c0_10 = arith.constant 0 : index
    %25 = vector.load %arg4[%c0_9, %c0_10] : memref<32x32xbf16, #tpu.memory_space<vmem>>, vector<32x32xbf16>
    %cst_11 = arith.constant dense<0.000000e+00> : vector<32x32xf32>
    %26 = tpu.matmul %24, %25, %cst_11 {dimension_numbers = #tpu.dot_dimension_numbers<[1], [0], [0], [1], [0, 0, 1, 1], [], []>} : vector<32x32xbf16>, vector<32x32xbf16>, vector<32x32xf32> -> vector<32x32xf32>
    %c0_12 = arith.constant 0 : index
    %c0_13 = arith.constant 0 : index
    %27 = vector.load %arg5[%c0_12, %c0_13] : memref<1x32xf32, #tpu.memory_space<vmem>>, vector<1x32xf32>
    %28 = vector.broadcast %27 : vector<1x32xf32> to vector<32x32xf32>
    %29 = arith.addf %26, %28 : vector<32x32xf32>
    %30 = arith.truncf %29 : vector<32x32xf32> to vector<32x32xbf16>
    %c0_14 = arith.constant 0 : index
    %c0_15 = arith.constant 0 : index
    %31 = vector.load %arg10[%c0_14, %c0_15] : memref<32x32xbf16, #tpu.memory_space<vmem>>, vector<32x32xbf16>
    tpu.vector_store %arg10[%c0_14, %c0_15], %30 {strides = array<i32>} : memref<32x32xbf16, #tpu.memory_space<vmem>>, vector<32x32xbf16>,
    %c0_16 = arith.constant 0 : index
    %c0_17 = arith.constant 0 : index
    %32 = vector.load %arg6[%c0_16, %c0_17] : memref<32x32xbf16, #tpu.memory_space<vmem>>, vector<32x32xbf16>
    %cst_18 = arith.constant dense<0.000000e+00> : vector<32x32xf32>
    %33 = tpu.matmul %24, %32, %cst_18 {dimension_numbers = #tpu.dot_dimension_numbers<[1], [0], [0], [1], [0, 0, 1, 1], [], []>} : vector<32x32xbf16>, vector<32x32xbf16>, vector<32x32xf32> -> vector<32x32xf32>
    %c0_19 = arith.constant 0 : index
    %c0_20 = arith.constant 0 : index
    %34 = vector.load %arg7[%c0_19, %c0_20] : memref<1x32xf32, #tpu.memory_space<vmem>>, vector<1x32xf32>
    %35 = vector.broadcast %34 : vector<1x32xf32> to vector<32x32xf32>
    %36 = arith.addf %33, %35 : vector<32x32xf32>
    %37 = arith.truncf %36 : vector<32x32xf32> to vector<32x32xbf16>
    %c0_21 = arith.constant 0 : index
    %c0_22 = arith.constant 0 : index
    %38 = vector.load %arg11[%c0_21, %c0_22] : memref<32x32xbf16, #tpu.memory_space<vmem>>, vector<32x32xbf16>
    tpu.vector_store %arg11[%c0_21, %c0_22], %37 {strides = array<i32>} : memref<32x32xbf16, #tpu.memory_space<vmem>>, vector<32x32xbf16>,
    %c0_23 = arith.constant 0 : index
    %c0_24 = arith.constant 0 : index
    %39 = vector.load %arg8[%c0_23, %c0_24] : memref<32x32xbf16, #tpu.memory_space<vmem>>, vector<32x32xbf16>
    %cst_25 = arith.constant dense<0.000000e+00> : vector<32x32xf32>
    %40 = tpu.matmul %24, %39, %cst_25 {dimension_numbers = #tpu.dot_dimension_numbers<[1], [0], [0], [1], [0, 0, 1, 1], [], []>} : vector<32x32xbf16>, vector<32x32xbf16>, vector<32x32xf32> -> vector<32x32xf32>
    %c0_26 = arith.constant 0 : index
    %c0_27 = arith.constant 0 : index
    %41 = vector.load %arg9[%c0_26, %c0_27] : memref<1x32xf32, #tpu.memory_space<vmem>>, vector<1x32xf32>
    %42 = vector.broadcast %41 : vector<1x32xf32> to vector<32x32xf32>
    %43 = arith.addf %40, %42 : vector<32x32xf32>
    %44 = arith.truncf %43 : vector<32x32xf32> to vector<32x32xbf16>
    %c0_28 = arith.constant 0 : index
    %c0_29 = arith.constant 0 : index
    %45 = vector.load %arg12[%c0_28, %c0_29] : memref<32x32xbf16, #tpu.memory_space<vmem>>, vector<32x32xbf16>
    tpu.vector_store %arg12[%c0_28, %c0_29], %44 {strides = array<i32>} : memref<32x32xbf16, #tpu.memory_space<vmem>>, vector<32x32xbf16>,
    return
  }
  func.func @transform_0(%arg0: i32) -> (i32, i32) {
    %c0_i32 = arith.constant 0 : i32
    %c0_i32_0 = arith.constant 0 : i32
    return %arg0, %c0_i32 : i32, i32
  }
  func.func @transform_1(%arg0: i32) -> (i32, i32) {
    %c0_i32 = arith.constant 0 : i32
    %c0_i32_0 = arith.constant 0 : i32
    %c0_i32_1 = arith.constant 0 : i32
    return %c0_i32, %c0_i32_0 : i32, i32
  }
  func.func @transform_2(%arg0: i32) -> (i32, i32) {
    %c0_i32 = arith.constant 0 : i32
    %c0_i32_0 = arith.constant 0 : i32
    %c0_i32_1 = arith.constant 0 : i32
    return %c0_i32, %c0_i32_0 : i32, i32
  }
  func.func @transform_3(%arg0: i32) -> (i32, i32) {
    %c0_i32 = arith.constant 0 : i32
    %c0_i32_0 = arith.constant 0 : i32
    %c0_i32_1 = arith.constant 0 : i32
    return %c0_i32, %c0_i32_0 : i32, i32
  }
  func.func @transform_4(%arg0: i32) -> (i32, i32) {
    %c0_i32 = arith.constant 0 : i32
    %c0_i32_0 = arith.constant 0 : i32
    %c0_i32_1 = arith.constant 0 : i32
    return %c0_i32, %c0_i32_0 : i32, i32
  }
  func.func @transform_5(%arg0: i32) -> (i32, i32) {
    %c0_i32 = arith.constant 0 : i32
    %c0_i32_0 = arith.constant 0 : i32
    %c0_i32_1 = arith.constant 0 : i32
    return %c0_i32, %c0_i32_0 : i32, i32
  }
  func.func @transform_6(%arg0: i32) -> (i32, i32) {
    %c0_i32 = arith.constant 0 : i32
    %c0_i32_0 = arith.constant 0 : i32
    %c0_i32_1 = arith.constant 0 : i32
    return %c0_i32, %c0_i32_0 : i32, i32
  }
  func.func @transform_7(%arg0: i32) -> (i32, i32) {
    %c0_i32 = arith.constant 0 : i32
    %c0_i32_0 = arith.constant 0 : i32
    %c0_i32_1 = arith.constant 0 : i32
    return %c0_i32, %c0_i32_0 : i32, i32
  }
  func.func @transform_8(%arg0: i32) -> (i32, i32) {
    %c0_i32 = arith.constant 0 : i32
    %c0_i32_0 = arith.constant 0 : i32
    %c0_i32_1 = arith.constant 0 : i32
    return %c0_i32, %c0_i32_0 : i32, i32
  }
  func.func @transform_9(%arg0: i32) -> (i32, i32) {
    %c0_i32 = arith.constant 0 : i32
    %c0_i32_0 = arith.constant 0 : i32
    return %arg0, %c0_i32 : i32, i32
  }
  func.func @transform_10(%arg0: i32) -> (i32, i32) {
    %c0_i32 = arith.constant 0 : i32
    %c0_i32_0 = arith.constant 0 : i32
    return %arg0, %c0_i32 : i32, i32
  }
  func.func @transform_11(%arg0: i32) -> (i32, i32) {
    %c0_i32 = arith.constant 0 : i32
    %c0_i32_0 = arith.constant 0 : i32
    return %arg0, %c0_i32 : i32, i32
  }
}

module attributes {stable_mosaic.version = 11 : i64} {
  func.func @kernel(%arg0: i32, %arg1: memref<32x32xbf16, #tpu.memory_space<vmem>>, %arg2: memref<1x32xf32, #tpu.memory_space<vmem>>, %arg3: memref<1x32xf32, #tpu.memory_space<vmem>>, %arg4: memref<32x32xbf16, #tpu.memory_space<vmem>>) attributes {dimension_semantics = [#tpu.dimension_semantics<parallel>], iteration_bounds = array<i64: 1>, scalar_prefetch = 0 : i64, scratch_operands = 0 : i64, tpu.core_type = #tpu.core_type<tc>, window_params = [{transform_indices = @transform_0, window_bounds = array<i64: 32, 32>}, {pipeline_mode = #tpu.pipeline_mode<synchronous>, transform_indices = @transform_1, window_bounds = array<i64: 1, 32>}, {pipeline_mode = #tpu.pipeline_mode<synchronous>, transform_indices = @transform_2, window_bounds = array<i64: 1, 32>}, {transform_indices = @transform_3, window_bounds = array<i64: 32, 32>}]} {
    %c0 = arith.constant 0 : index
    %c0_0 = arith.constant 0 : index
    %0 = vector.load %arg1[%c0, %c0_0] : memref<32x32xbf16, #tpu.memory_space<vmem>>, vector<32x32xbf16>
    %1 = arith.extf %0 : vector<32x32xbf16> to vector<32x32xf32>
    %c0_1 = arith.constant 0 : index
    %c0_2 = arith.constant 0 : index
    %2 = vector.load %arg2[%c0_1, %c0_2] : memref<1x32xf32, #tpu.memory_space<vmem>>, vector<1x32xf32>
    %c0_3 = arith.constant 0 : index
    %c0_4 = arith.constant 0 : index
    %3 = vector.load %arg3[%c0_3, %c0_4] : memref<1x32xf32, #tpu.memory_space<vmem>>, vector<1x32xf32>
    %cst = arith.constant dense<0.000000e+00> : vector<32xf32>
    %4 = vector.multi_reduction <add>, %1, %cst [1] : vector<32x32xf32> to vector<32xf32>
    %5 = vector.shape_cast %4 : vector<32xf32> to vector<32x1xf32>
    %cst_5 = arith.constant 3.200000e+01 : f32
    %6 = vector.broadcast %cst_5 : f32 to vector<32x1xf32>
    %7 = arith.divf %5, %6 : vector<32x1xf32>
    %8 = vector.broadcast %7 : vector<32x1xf32> to vector<32x32xf32>
    %9 = arith.subf %1, %8 : vector<32x32xf32>
    %10 = arith.mulf %9, %9 : vector<32x32xf32>
    %cst_6 = arith.constant dense<0.000000e+00> : vector<32xf32>
    %11 = vector.multi_reduction <add>, %10, %cst_6 [1] : vector<32x32xf32> to vector<32xf32>
    %12 = vector.shape_cast %11 : vector<32xf32> to vector<32x1xf32>
    %cst_7 = arith.constant 3.200000e+01 : f32
    %13 = vector.broadcast %cst_7 : f32 to vector<32x1xf32>
    %14 = arith.divf %12, %13 : vector<32x1xf32>
    %cst_8 = arith.constant 9.99999997E-7 : f32
    %15 = vector.broadcast %cst_8 : f32 to vector<32x1xf32>
    %16 = arith.addf %14, %15 : vector<32x1xf32>
    %17 = math.rsqrt %16 : vector<32x1xf32>
    %18 = vector.broadcast %17 : vector<32x1xf32> to vector<32x32xf32>
    %19 = arith.mulf %9, %18 : vector<32x32xf32>
    %20 = vector.broadcast %2 : vector<1x32xf32> to vector<32x32xf32>
    %21 = arith.mulf %19, %20 : vector<32x32xf32>
    %22 = vector.broadcast %3 : vector<1x32xf32> to vector<32x32xf32>
    %23 = arith.addf %21, %22 : vector<32x32xf32>
    %24 = arith.truncf %23 : vector<32x32xf32> to vector<32x32xbf16>
    %c0_9 = arith.constant 0 : index
    %c0_10 = arith.constant 0 : index
    %25 = vector.load %arg4[%c0_9, %c0_10] : memref<32x32xbf16, #tpu.memory_space<vmem>>, vector<32x32xbf16>
    tpu.vector_store %arg4[%c0_9, %c0_10], %24 {strides = array<i32>} : memref<32x32xbf16, #tpu.memory_space<vmem>>, vector<32x32xbf16>,
    return
  }
  func.func @transform_0(%arg0: i32) -> (i32, i32) {
    %c0_i32 = arith.constant 0 : i32
    %c0_i32_0 = arith.constant 0 : i32
    return %arg0, %c0_i32 : i32, i32
  }
  func.func @transform_1(%arg0: i32) -> (i32, i32) {
    %c0_i32 = arith.constant 0 : i32
    %c0_i32_0 = arith.constant 0 : i32
    %c0_i32_1 = arith.constant 0 : i32
    return %c0_i32, %c0_i32_0 : i32, i32
  }
  func.func @transform_2(%arg0: i32) -> (i32, i32) {
    %c0_i32 = arith.constant 0 : i32
    %c0_i32_0 = arith.constant 0 : i32
    %c0_i32_1 = arith.constant 0 : i32
    return %c0_i32, %c0_i32_0 : i32, i32
  }
  func.func @transform_3(%arg0: i32) -> (i32, i32) {
    %c0_i32 = arith.constant 0 : i32
    %c0_i32_0 = arith.constant 0 : i32
    return %arg0, %c0_i32 : i32, i32
  }
}

module attributes {stable_mosaic.version = 11 : i64} {
  func.func @kernel(%arg0: i32, %arg1: memref<8x128xbf16, #tpu.memory_space<vmem>>, %arg2: memref<128x64xbf16, #tpu.memory_space<vmem>>, %arg3: memref<8x64xbf16, #tpu.memory_space<vmem>>) attributes {dimension_semantics = [#tpu.dimension_semantics<parallel>], iteration_bounds = array<i64: 1>, scalar_prefetch = 0 : i64, scratch_operands = 0 : i64, tpu.core_type = #tpu.core_type<tc>, window_params = [{transform_indices = @transform_0, window_bounds = array<i64: 8, 128>}, {pipeline_mode = #tpu.pipeline_mode<synchronous>, transform_indices = @transform_1, window_bounds = array<i64: 128, 64>}, {transform_indices = @transform_2, window_bounds = array<i64: 8, 64>}]} {
    %c0 = arith.constant 0 : index
    %c0_0 = arith.constant 0 : index
    %0 = vector.load %arg1[%c0, %c0_0] : memref<8x128xbf16, #tpu.memory_space<vmem>>, vector<8x128xbf16>
    %c0_1 = arith.constant 0 : index
    %c0_2 = arith.constant 0 : index
    %1 = vector.load %arg2[%c0_1, %c0_2] : memref<128x64xbf16, #tpu.memory_space<vmem>>, vector<128x64xbf16>
    %cst = arith.constant dense<0.000000e+00> : vector<8x64xf32>
    %2 = tpu.matmul %0, %1, %cst {dimension_numbers = #tpu.dot_dimension_numbers<[1], [0], [0], [1], [0, 0, 1, 1], [], []>} : vector<8x128xbf16>, vector<128x64xbf16>, vector<8x64xf32> -> vector<8x64xf32>
    %3 = arith.truncf %2 : vector<8x64xf32> to vector<8x64xbf16>
    %c0_3 = arith.constant 0 : index
    %c0_4 = arith.constant 0 : index
    %4 = vector.load %arg3[%c0_3, %c0_4] : memref<8x64xbf16, #tpu.memory_space<vmem>>, vector<8x64xbf16>
    tpu.vector_store %arg3[%c0_3, %c0_4], %3 {strides = array<i32>} : memref<8x64xbf16, #tpu.memory_space<vmem>>, vector<8x64xbf16>,
    return
  }
  func.func @transform_0(%arg0: i32) -> (i32, i32) {
    %c0_i32 = arith.constant 0 : i32
    %c0_i32_0 = arith.constant 0 : i32
    return %arg0, %c0_i32 : i32, i32
  }
  func.func @transform_1(%arg0: i32) -> (i32, i32) {
    %c0_i32 = arith.constant 0 : i32
    %c0_i32_0 = arith.constant 0 : i32
    %c0_i32_1 = arith.constant 0 : i32
    return %c0_i32, %c0_i32_0 : i32, i32
  }
  func.func @transform_2(%arg0: i32) -> (i32, i32) {
    %c0_i32 = arith.constant 0 : i32
    %c0_i32_0 = arith.constant 0 : i32
    return %arg0, %c0_i32 : i32, i32
  }
}

module attributes {stable_mosaic.version = 11 : i64} {
  func.func @kernel(%arg0: i32, %arg1: memref<32x64xbf16, #tpu.memory_space<vmem>>, %arg2: memref<1x64xf32, #tpu.memory_space<vmem>>, %arg3: memref<64x64xbf16, #tpu.memory_space<vmem>>, %arg4: memref<64x32xbf16, #tpu.memory_space<vmem>>, %arg5: memref<64x32xbf16, #tpu.memory_space<vmem>>, %arg6: memref<32x64xbf16, #tpu.memory_space<vmem>>, %arg7: memref<32x32xbf16, #tpu.memory_space<vmem>>, %arg8: memref<32x32xbf16, #tpu.memory_space<vmem>>) attributes {dimension_semantics = [#tpu.dimension_semantics<parallel>], iteration_bounds = array<i64: 1>, scalar_prefetch = 0 : i64, scratch_operands = 0 : i64, tpu.core_type = #tpu.core_type<tc>, window_params = [{transform_indices = @transform_0, window_bounds = array<i64: 32, 64>}, {pipeline_mode = #tpu.pipeline_mode<synchronous>, transform_indices = @transform_1, window_bounds = array<i64: 1, 64>}, {pipeline_mode = #tpu.pipeline_mode<synchronous>, transform_indices = @transform_2, window_bounds = array<i64: 64, 64>}, {pipeline_mode = #tpu.pipeline_mode<synchronous>, transform_indices = @transform_3, window_bounds = array<i64: 64, 32>}, {pipeline_mode = #tpu.pipeline_mode<synchronous>, transform_indices = @transform_4, window_bounds = array<i64: 64, 32>}, {transform_indices = @transform_5, window_bounds = array<i64: 32, 64>}, {transform_indices = @transform_6, window_bounds = array<i64: 32, 32>}, {transform_indices = @transform_7, window_bounds = array<i64: 32, 32>}]} {
    %c0 = arith.constant 0 : index
    %c0_0 = arith.constant 0 : index
    %0 = vector.load %arg1[%c0, %c0_0] : memref<32x64xbf16, #tpu.memory_space<vmem>>, vector<32x64xbf16>
    %1 = arith.extf %0 : vector<32x64xbf16> to vector<32x64xf32>
    %c0_1 = arith.constant 0 : index
    %c0_2 = arith.constant 0 : index
    %2 = vector.load %arg2[%c0_1, %c0_2] : memref<1x64xf32, #tpu.memory_space<vmem>>, vector<1x64xf32>
    %3 = arith.mulf %1, %1 : vector<32x64xf32>
    %cst = arith.constant dense<0.000000e+00> : vector<32xf32>
    %4 = vector.multi_reduction <add>, %3, %cst [1] : vector<32x64xf32> to vector<32xf32>
    %5 = vector.shape_cast %4 : vector<32xf32> to vector<32x1xf32>
    %cst_3 = arith.constant 6.400000e+01 : f32
    %6 = vector.broadcast %cst_3 : f32 to vector<32x1xf32>
    %7 = arith.divf %5, %6 : vector<32x1xf32>
    %cst_4 = arith.constant 9.99999974E-6 : f32
    %8 = vector.broadcast %cst_4 : f32 to vector<32x1xf32>
    %9 = arith.addf %7, %8 : vector<32x1xf32>
    %10 = math.rsqrt %9 : vector<32x1xf32>
    %11 = vector.broadcast %10 : vector<32x1xf32> to vector<32x64xf32>
    %12 = arith.mulf %1, %11 : vector<32x64xf32>
    %13 = vector.broadcast %2 : vector<1x64xf32> to vector<32x64xf32>
    %14 = arith.mulf %12, %13 : vector<32x64xf32>
    %15 = arith.truncf %14 : vector<32x64xf32> to vector<32x64xbf16>
    %c0_5 = arith.constant 0 : index
    %c0_6 = arith.constant 0 : index
    %16 = vector.load %arg3[%c0_5, %c0_6] : memref<64x64xbf16, #tpu.memory_space<vmem>>, vector<64x64xbf16>
    %cst_7 = arith.constant dense<0.000000e+00> : vector<32x64xf32>
    %17 = tpu.matmul %15, %16, %cst_7 {dimension_numbers = #tpu.dot_dimension_numbers<[1], [0], [0], [1], [0, 0, 1, 1], [], []>} : vector<32x64xbf16>, vector<64x64xbf16>, vector<32x64xf32> -> vector<32x64xf32>
    %18 = arith.truncf %17 : vector<32x64xf32> to vector<32x64xbf16>
    %c0_8 = arith.constant 0 : index
    %c0_9 = arith.constant 0 : index
    %19 = vector.load %arg6[%c0_8, %c0_9] : memref<32x64xbf16, #tpu.memory_space<vmem>>, vector<32x64xbf16>
    tpu.vector_store %arg6[%c0_8, %c0_9], %18 {strides = array<i32>} : memref<32x64xbf16, #tpu.memory_space<vmem>>, vector<32x64xbf16>,
    %c0_10 = arith.constant 0 : index
    %c0_11 = arith.constant 0 : index
    %20 = vector.load %arg4[%c0_10, %c0_11] : memref<64x32xbf16, #tpu.memory_space<vmem>>, vector<64x32xbf16>
    %cst_12 = arith.constant dense<0.000000e+00> : vector<32x32xf32>
    %21 = tpu.matmul %15, %20, %cst_12 {dimension_numbers = #tpu.dot_dimension_numbers<[1], [0], [0], [1], [0, 0, 1, 1], [], []>} : vector<32x64xbf16>, vector<64x32xbf16>, vector<32x32xf32> -> vector<32x32xf32>
    %22 = arith.truncf %21 : vector<32x32xf32> to vector<32x32xbf16>
    %c0_13 = arith.constant 0 : index
    %c0_14 = arith.constant 0 : index
    %23 = vector.load %arg7[%c0_13, %c0_14] : memref<32x32xbf16, #tpu.memory_space<vmem>>, vector<32x32xbf16>
    tpu.vector_store %arg7[%c0_13, %c0_14], %22 {strides = array<i32>} : memref<32x32xbf16, #tpu.memory_space<vmem>>, vector<32x32xbf16>,
    %c0_15 = arith.constant 0 : index
    %c0_16 = arith.constant 0 : index
    %24 = vector.load %arg5[%c0_15, %c0_16] : memref<64x32xbf16, #tpu.memory_space<vmem>>, vector<64x32xbf16>
    %cst_17 = arith.constant dense<0.000000e+00> : vector<32x32xf32>
    %25 = tpu.matmul %15, %24, %cst_17 {dimension_numbers = #tpu.dot_dimension_numbers<[1], [0], [0], [1], [0, 0, 1, 1], [], []>} : vector<32x64xbf16>, vector<64x32xbf16>, vector<32x32xf32> -> vector<32x32xf32>
    %26 = arith.truncf %25 : vector<32x32xf32> to vector<32x32xbf16>
    %c0_18 = arith.constant 0 : index
    %c0_19 = arith.constant 0 : index
    %27 = vector.load %arg8[%c0_18, %c0_19] : memref<32x32xbf16, #tpu.memory_space<vmem>>, vector<32x32xbf16>
    tpu.vector_store %arg8[%c0_18, %c0_19], %26 {strides = array<i32>} : memref<32x32xbf16, #tpu.memory_space<vmem>>, vector<32x32xbf16>,
    return
  }
  func.func @transform_0(%arg0: i32) -> (i32, i32) {
    %c0_i32 = arith.constant 0 : i32
    %c0_i32_0 = arith.constant 0 : i32
    return %arg0, %c0_i32 : i32, i32
  }
  func.func @transform_1(%arg0: i32) -> (i32, i32) {
    %c0_i32 = arith.constant 0 : i32
    %c0_i32_0 = arith.constant 0 : i32
    %c0_i32_1 = arith.constant 0 : i32
    return %c0_i32, %c0_i32_0 : i32, i32
  }
  func.func @transform_2(%arg0: i32) -> (i32, i32) {
    %c0_i32 = arith.constant 0 : i32
    %c0_i32_0 = arith.constant 0 : i32
    %c0_i32_1 = arith.constant 0 : i32
    return %c0_i32, %c0_i32_0 : i32, i32
  }
  func.func @transform_3(%arg0: i32) -> (i32, i32) {
    %c0_i32 = arith.constant 0 : i32
    %c0_i32_0 = arith.constant 0 : i32
    %c0_i32_1 = arith.constant 0 : i32
    return %c0_i32, %c0_i32_0 : i32, i32
  }
  func.func @transform_4(%arg0: i32) -> (i32, i32) {
    %c0_i32 = arith.constant 0 : i32
    %c0_i32_0 = arith.constant 0 : i32
    %c0_i32_1 = arith.constant 0 : i32
    return %c0_i32, %c0_i32_0 : i32, i32
  }
  func.func @transform_5(%arg0: i32) -> (i32, i32) {
    %c0_i32 = arith.constant 0 : i32
    %c0_i32_0 = arith.constant 0 : i32
    return %arg0, %c0_i32 : i32, i32
  }
  func.func @transform_6(%arg0: i32) -> (i32, i32) {
    %c0_i32 = arith.constant 0 : i32
    %c0_i32_0 = arith.constant 0 : i32
    return %arg0, %c0_i32 : i32, i32
  }
  func.func @transform_7(%arg0: i32) -> (i32, i32) {
    %c0_i32 = arith.constant 0 : i32
    %c0_i32_0 = arith.constant 0 : i32
    return %arg0, %c0_i32 : i32, i32
  }
}

module attributes {stable_mosaic.version = 11 : i64} {
  func.func @kernel(%arg0: i32, %arg1: memref<32x64xbf16, #tpu.memory_space<vmem>>, %arg2: memref<1x64xf32, #tpu.memory_space<vmem>>, %arg3: memref<64x128xbf16, #tpu.memory_space<vmem>>, %arg4: memref<64x128xbf16, #tpu.memory_space<vmem>>, %arg5: memref<128x64xbf16, #tpu.memory_space<vmem>>, %arg6: memref<32x64xbf16, #tpu.memory_space<vmem>>) attributes {dimension_semantics = [#tpu.dimension_semantics<parallel>], iteration_bounds = array<i64: 1>, scalar_prefetch = 0 : i64, scratch_operands = 0 : i64, tpu.core_type = #tpu.core_type<tc>, window_params = [{transform_indices = @transform_0, window_bounds = array<i64: 32, 64>}, {pipeline_mode = #tpu.pipeline_mode<synchronous>, transform_indices = @transform_1, window_bounds = array<i64: 1, 64>}, {pipeline_mode = #tpu.pipeline_mode<synchronous>, transform_indices = @transform_2, window_bounds = array<i64: 64, 128>}, {pipeline_mode = #tpu.pipeline_mode<synchronous>, transform_indices = @transform_3, window_bounds = array<i64: 64, 128>}, {pipeline_mode = #tpu.pipeline_mode<synchronous>, transform_indices = @transform_4, window_bounds = array<i64: 128, 64>}, {transform_indices = @transform_5, window_bounds = array<i64: 32, 64>}]} {
    %c0 = arith.constant 0 : index
    %c0_0 = arith.constant 0 : index
    %0 = vector.load %arg1[%c0, %c0_0] : memref<32x64xbf16, #tpu.memory_space<vmem>>, vector<32x64xbf16>
    %1 = arith.extf %0 : vector<32x64xbf16> to vector<32x64xf32>
    %c0_1 = arith.constant 0 : index
    %c0_2 = arith.constant 0 : index
    %2 = vector.load %arg2[%c0_1, %c0_2] : memref<1x64xf32, #tpu.memory_space<vmem>>, vector<1x64xf32>
    %3 = arith.mulf %1, %1 : vector<32x64xf32>
    %cst = arith.constant dense<0.000000e+00> : vector<32xf32>
    %4 = vector.multi_reduction <add>, %3, %cst [1] : vector<32x64xf32> to vector<32xf32>
    %5 = vector.shape_cast %4 : vector<32xf32> to vector<32x1xf32>
    %cst_3 = arith.constant 6.400000e+01 : f32
    %6 = vector.broadcast %cst_3 : f32 to vector<32x1xf32>
    %7 = arith.divf %5, %6 : vector<32x1xf32>
    %cst_4 = arith.constant 9.99999974E-6 : f32
    %8 = vector.broadcast %cst_4 : f32 to vector<32x1xf32>
    %9 = arith.addf %7, %8 : vector<32x1xf32>
    %10 = math.rsqrt %9 : vector<32x1xf32>
    %11 = vector.broadcast %10 : vector<32x1xf32> to vector<32x64xf32>
    %12 = arith.mulf %1, %11 : vector<32x64xf32>
    %13 = vector.broadcast %2 : vector<1x64xf32> to vector<32x64xf32>
    %14 = arith.mulf %12, %13 : vector<32x64xf32>
    %15 = arith.truncf %14 : vector<32x64xf32> to vector<32x64xbf16>
    %c0_5 = arith.constant 0 : index
    %c0_6 = arith.constant 0 : index
    %16 = vector.load %arg3[%c0_5, %c0_6] : memref<64x128xbf16, #tpu.memory_space<vmem>>, vector<64x128xbf16>
    %cst_7 = arith.constant dense<0.000000e+00> : vector<32x128xf32>
    %17 = tpu.matmul %15, %16, %cst_7 {dimension_numbers = #tpu.dot_dimension_numbers<[1], [0], [0], [1], [0, 0, 1, 1], [], []>} : vector<32x64xbf16>, vector<64x128xbf16>, vector<32x128xf32> -> vector<32x128xf32>
    %c0_8 = arith.constant 0 : index
    %c0_9 = arith.constant 0 : index
    %18 = vector.load %arg4[%c0_8, %c0_9] : memref<64x128xbf16, #tpu.memory_space<vmem>>, vector<64x128xbf16>
    %cst_10 = arith.constant dense<0.000000e+00> : vector<32x128xf32>
    %19 = tpu.matmul %15, %18, %cst_10 {dimension_numbers = #tpu.dot_dimension_numbers<[1], [0], [0], [1], [0, 0, 1, 1], [], []>} : vector<32x64xbf16>, vector<64x128xbf16>, vector<32x128xf32> -> vector<32x128xf32>
    %20 = arith.negf %17 : vector<32x128xf32>
    %21 = math.exp %20 : vector<32x128xf32>
    %cst_11 = arith.constant 1.000000e+00 : f32
    %22 = vector.broadcast %cst_11 : f32 to vector<32x128xf32>
    %23 = arith.addf %22, %21 : vector<32x128xf32>
    %24 = arith.divf %22, %23 : vector<32x128xf32>
    %25 = arith.mulf %17, %24 : vector<32x128xf32>
    %26 = arith.mulf %25, %19 : vector<32x128xf32>
    %27 = arith.truncf %26 : vector<32x128xf32> to vector<32x128xbf16>
    %c0_12 = arith.constant 0 : index
    %c0_13 = arith.constant 0 : index
    %28 = vector.load %arg5[%c0_12, %c0_13] : memref<128x64xbf16, #tpu.memory_space<vmem>>, vector<128x64xbf16>
    %cst_14 = arith.constant dense<0.000000e+00> : vector<32x64xf32>
    %29 = tpu.matmul %27, %28, %cst_14 {dimension_numbers = #tpu.dot_dimension_numbers<[1], [0], [0], [1], [0, 0, 1, 1], [], []>} : vector<32x128xbf16>, vector<128x64xbf16>, vector<32x64xf32> -> vector<32x64xf32>
    %30 = arith.addf %1, %29 : vector<32x64xf32>
    %31 = arith.truncf %30 : vector<32x64xf32> to vector<32x64xbf16>
    %c0_15 = arith.constant 0 : index
    %c0_16 = arith.constant 0 : index
    %32 = vector.load %arg6[%c0_15, %c0_16] : memref<32x64xbf16, #tpu.memory_space<vmem>>, vector<32x64xbf16>
    tpu.vector_store %arg6[%c0_15, %c0_16], %31 {strides = array<i32>} : memref<32x64xbf16, #tpu.memory_space<vmem>>, vector<32x64xbf16>,
    return
  }
  func.func @transform_0(%arg0: i32) -> (i32, i32) {
    %c0_i32 = arith.constant 0 : i32
    %c0_i32_0 = arith.constant 0 : i32
    return %arg0, %c0_i32 : i32, i32
  }
  func.func @transform_1(%arg0: i32) -> (i32, i32) {
    %c0_i32 = arith.constant 0 : i32
    %c0_i32_0 = arith.constant 0 : i32
    %c0_i32_1 = arith.constant 0 : i32
    return %c0_i32, %c0_i32_0 : i32, i32
  }
  func.func @transform_2(%arg0: i32) -> (i32, i32) {
    %c0_i32 = arith.constant 0 : i32
    %c0_i32_0 = arith.constant 0 : i32
    %c0_i32_1 = arith.constant 0 : i32
    return %c0_i32, %c0_i32_0 : i32, i32
  }
  func.func @transform_3(%arg0: i32) -> (i32, i32) {
    %c0_i32 = arith.constant 0 : i32
    %c0_i32_0 = arith.constant 0 : i32
    %c0_i32_1 = arith.constant 0 : i32
    return %c0_i32, %c0_i32_0 : i32, i32
  }
  func.func @transform_4(%arg0: i32) -> (i32, i32) {
    %c0_i32 = arith.constant 0 : i32
    %c0_i32_0 = arith.constant 0 : i32
    %c0_i32_1 = arith.constant 0 : i32
    return %c0_i32, %c0_i32_0 : i32, i32
  }
  func.func @transform_5(%arg0: i32) -> (i32, i32) {
    %c0_i32 = arith.constant 0 : i32
    %c0_i32_0 = arith.constant 0 : i32
    return %arg0, %c0_i32 : i32, i32
  }
}

module attributes {stable_mosaic.version = 11 : i64} {
  func.func @kernel(%arg0: i32, %arg1: memref<32x64xbf16, #tpu.memory_space<vmem>>, %arg2: memref<1x64xf32, #tpu.memory_space<vmem>>, %arg3: memref<32x64xf32, #tpu.memory_space<vmem>>) attributes {dimension_semantics = [#tpu.dimension_semantics<parallel>], iteration_bounds = array<i64: 1>, scalar_prefetch = 0 : i64, scratch_operands = 0 : i64, tpu.core_type = #tpu.core_type<tc>, window_params = [{transform_indices = @transform_0, window_bounds = array<i64: 32, 64>}, {pipeline_mode = #tpu.pipeline_mode<synchronous>, transform_indices = @transform_1, window_bounds = array<i64: 1, 64>}, {transform_indices = @transform_2, window_bounds = array<i64: 32, 64>}]} {
    %c0 = arith.constant 0 : index
    %c0_0 = arith.constant 0 : index
    %0 = vector.load %arg1[%c0, %c0_0] : memref<32x64xbf16, #tpu.memory_space<vmem>>, vector<32x64xbf16>
    %1 = arith.extf %0 : vector<32x64xbf16> to vector<32x64xf32>
    %c0_1 = arith.constant 0 : index
    %c0_2 = arith.constant 0 : index
    %2 = vector.load %arg2[%c0_1, %c0_2] : memref<1x64xf32, #tpu.memory_space<vmem>>, vector<1x64xf32>
    %3 = arith.mulf %1, %1 : vector<32x64xf32>
    %cst = arith.constant dense<0.000000e+00> : vector<32xf32>
    %4 = vector.multi_reduction <add>, %3, %cst [1] : vector<32x64xf32> to vector<32xf32>
    %5 = vector.shape_cast %4 : vector<32xf32> to vector<32x1xf32>
    %cst_3 = arith.constant 6.400000e+01 : f32
    %6 = vector.broadcast %cst_3 : f32 to vector<32x1xf32>
    %7 = arith.divf %5, %6 : vector<32x1xf32>
    %cst_4 = arith.constant 9.99999974E-6 : f32
    %8 = vector.broadcast %cst_4 : f32 to vector<32x1xf32>
    %9 = arith.addf %7, %8 : vector<32x1xf32>
    %10 = math.rsqrt %9 : vector<32x1xf32>
    %11 = vector.broadcast %10 : vector<32x1xf32> to vector<32x64xf32>
    %12 = arith.mulf %1, %11 : vector<32x64xf32>
    %13 = vector.broadcast %2 : vector<1x64xf32> to vector<32x64xf32>
    %14 = arith.mulf %12, %13 : vector<32x64xf32>
    %c0_5 = arith.constant 0 : index
    %c0_6 = arith.constant 0 : index
    %15 = vector.load %arg3[%c0_5, %c0_6] : memref<32x64xf32, #tpu.memory_space<vmem>>, vector<32x64xf32>
    tpu.vector_store %arg3[%c0_5, %c0_6], %14 {strides = array<i32>} : memref<32x64xf32, #tpu.memory_space<vmem>>, vector<32x64xf32>,
    return
  }
  func.func @transform_0(%arg0: i32) -> (i32, i32) {
    %c0_i32 = arith.constant 0 : i32
    %c0_i32_0 = arith.constant 0 : i32
    return %arg0, %c0_i32 : i32, i32
  }
  func.func @transform_1(%arg0: i32) -> (i32, i32) {
    %c0_i32 = arith.constant 0 : i32
    %c0_i32_0 = arith.constant 0 : i32
    %c0_i32_1 = arith.constant 0 : i32
    return %c0_i32, %c0_i32_0 : i32, i32
  }
  func.func @transform_2(%arg0: i32) -> (i32, i32) {
    %c0_i32 = arith.constant 0 : i32
    %c0_i32_0 = arith.constant 0 : i32
    return %arg0, %c0_i32 : i32, i32
  }
}

module attributes {stable_mosaic.version = 11 : i64} {
  func.func @kernel(%arg0: i32, %arg1: memref<1x16x64xbf16, #tpu.memory_space<vmem>>, %arg2: memref<1x16x32xbf16, #tpu.memory_space<vmem>>, %arg3: memref<1x16x32xbf16, #tpu.memory_space<vmem>>, %arg4: memref<1x1x16xf32, #tpu.memory_space<vmem>>, %arg5: memref<16x64xf32, #tpu.memory_space<vmem>>, %arg6: memref<16x64xf32, #tpu.memory_space<vmem>>, %arg7: memref<16x32xf32, #tpu.memory_space<vmem>>, %arg8: memref<16x32xf32, #tpu.memory_space<vmem>>, %arg9: memref<64x64xbf16, #tpu.memory_space<vmem>>, %arg10: memref<1x16x64xbf16, #tpu.memory_space<vmem>>, %arg11: memref<1x16x64xbf16, #tpu.memory_space<vmem>>) attributes {dimension_semantics = [#tpu.dimension_semantics<parallel>], iteration_bounds = array<i64: 2>, scalar_prefetch = 0 : i64, scratch_operands = 0 : i64, tpu.core_type = #tpu.core_type<tc>, window_params = [{transform_indices = @transform_0, window_bounds = array<i64: 1, 16, 64>}, {transform_indices = @transform_1, window_bounds = array<i64: 1, 16, 32>}, {transform_indices = @transform_2, window_bounds = array<i64: 1, 16, 32>}, {transform_indices = @transform_3, window_bounds = array<i64: 1, 1, 16>}, {pipeline_mode = #tpu.pipeline_mode<synchronous>, transform_indices = @transform_4, window_bounds = array<i64: 16, 64>}, {pipeline_mode = #tpu.pipeline_mode<synchronous>, transform_indices = @transform_5, window_bounds = array<i64: 16, 64>}, {pipeline_mode = #tpu.pipeline_mode<synchronous>, transform_indices = @transform_6, window_bounds = array<i64: 16, 32>}, {pipeline_mode = #tpu.pipeline_mode<synchronous>, transform_indices = @transform_7, window_bounds = array<i64: 16, 32>}, {pipeline_mode = #tpu.pipeline_mode<synchronous>, transform_indices = @transform_8, window_bounds = array<i64: 64, 64>}, {transform_indices = @transform_9, window_bounds = array<i64: 1, 16, 64>}, {transform_indices = @transform_10, window_bounds = array<i64: 1, 16, 64>}]} {
    %c0 = arith.constant 0 : index
    %c0_0 = arith.constant 0 : index
    %c0_1 = arith.constant 0 : index
    %0 = vector.load %arg1[%c0, %c0_0, %c0_1] : memref<1x16x64xbf16, #tpu.memory_space<vmem>>, vector<1x16x64xbf16>
    %1 = vector.shape_cast %0 : vector<1x16x64xbf16> to vector<16x64xbf16>
    %2 = arith.extf %1 : vector<16x64xbf16> to vector<16x64xf32>
    %c0_2 = arith.constant 0 : index
    %c0_3 = arith.constant 0 : index
    %c0_4 = arith.constant 0 : index
    %3 = vector.load %arg2[%c0_2, %c0_3, %c0_4] : memref<1x16x32xbf16, #tpu.memory_space<vmem>>, vector<1x16x32xbf16>
    %4 = vector.shape_cast %3 : vector<1x16x32xbf16> to vector<16x32xbf16>
    %5 = arith.extf %4 : vector<16x32xbf16> to vector<16x32xf32>
    %c0_5 = arith.constant 0 : index
    %c0_6 = arith.constant 0 : index
    %6 = vector.load %arg5[%c0_5, %c0_6] : memref<16x64xf32, #tpu.memory_space<vmem>>, vector<16x64xf32>
    %7 = arith.mulf %2, %6 : vector<16x64xf32>
    %8 = vector.extract_strided_slice %2 {offsets = [0, 56], sizes = [16, 8], strides = [1, 1]} : vector<16x64xf32> to vector<16x8xf32>
    %9 = vector.extract_strided_slice %2 {offsets = [0, 0], sizes = [16, 56], strides = [1, 1]} : vector<16x64xf32> to vector<16x56xf32>
    %10 = tpu.concatenate %8, %9 in 1 : vector<16x8xf32>, vector<16x56xf32> -> vector<16x64xf32>
    %11 = vector.extract_strided_slice %2 {offsets = [0, 8], sizes = [16, 56], strides = [1, 1]} : vector<16x64xf32> to vector<16x56xf32>
    %12 = vector.extract_strided_slice %2 {offsets = [0, 0], sizes = [16, 8], strides = [1, 1]} : vector<16x64xf32> to vector<16x8xf32>
    %13 = tpu.concatenate %11, %12 in 1 : vector<16x56xf32>, vector<16x8xf32> -> vector<16x64xf32>
    %14 = tpu.iota {dimensions = array<i32: 1>} : vector<16x64xi32>
    %c16_i32 = arith.constant 16 : i32
    %c0_i32 = arith.constant 0 : i32
    %15 = arith.cmpi eq, %c16_i32, %c0_i32 : i32
    %c1_i32 = arith.constant 1 : i32
    %16 = arith.select %15, %c1_i32, %c16_i32 : i32
    %17 = vector.broadcast %16 : i32 to vector<16x64xi32>
    %18 = arith.remsi %14, %17 : vector<16x64xi32>
    %c0_i32_7 = arith.constant 0 : i32
    %19 = vector.broadcast %c0_i32_7 : i32 to vector<16x64xi32>
    %20 = arith.cmpi ne, %18, %19 : vector<16x64xi32>
    %c0_i32_8 = arith.constant 0 : i32
    %21 = vector.broadcast %c0_i32_8 : i32 to vector<16x64xi32>
    %22 = arith.cmpi slt, %18, %21 : vector<16x64xi32>
    %c0_i32_9 = arith.constant 0 : i32
    %23 = arith.cmpi slt, %16, %c0_i32_9 : i32
    %24 = vector.broadcast %23 : i1 to vector<16x64xi1>
    %25 = vector.broadcast %24 : vector<16x64xi1> to vector<16x64xi1>
    %26 = arith.xori %22, %25 : vector<16x64xi1>
    %27 = arith.andi %26, %20 : vector<16x64xi1>
    %28 = vector.broadcast %16 : i32 to vector<16x64xi32>
    %29 = arith.addi %18, %28 : vector<16x64xi32>
    %30 = arith.select %27, %29, %18 : vector<16x64xi1>, vector<16x64xi32>
    %c8_i32 = arith.constant 8 : i32
    %31 = vector.broadcast %c8_i32 : i32 to vector<16x64xi32>
    %32 = arith.cmpi slt, %30, %31 : vector<16x64xi32>
    %33 = arith.select %32, %13, %10 : vector<16x64xi1>, vector<16x64xf32>
    %c0_10 = arith.constant 0 : index
    %c0_11 = arith.constant 0 : index
    %34 = vector.load %arg6[%c0_10, %c0_11] : memref<16x64xf32, #tpu.memory_space<vmem>>, vector<16x64xf32>
    %35 = arith.mulf %33, %34 : vector<16x64xf32>
    %36 = arith.addf %7, %35 : vector<16x64xf32>
    %37 = arith.truncf %36 : vector<16x64xf32> to vector<16x64xbf16>
    %c0_12 = arith.constant 0 : index
    %c0_13 = arith.constant 0 : index
    %38 = vector.load %arg7[%c0_12, %c0_13] : memref<16x32xf32, #tpu.memory_space<vmem>>, vector<16x32xf32>
    %39 = arith.mulf %5, %38 : vector<16x32xf32>
    %40 = vector.extract_strided_slice %5 {offsets = [0, 24], sizes = [16, 8], strides = [1, 1]} : vector<16x32xf32> to vector<16x8xf32>
    %41 = vector.extract_strided_slice %5 {offsets = [0, 0], sizes = [16, 24], strides = [1, 1]} : vector<16x32xf32> to vector<16x24xf32>
    %42 = tpu.concatenate %40, %41 in 1 : vector<16x8xf32>, vector<16x24xf32> -> vector<16x32xf32>
    %43 = vector.extract_strided_slice %5 {offsets = [0, 8], sizes = [16, 24], strides = [1, 1]} : vector<16x32xf32> to vector<16x24xf32>
    %44 = vector.extract_strided_slice %5 {offsets = [0, 0], sizes = [16, 8], strides = [1, 1]} : vector<16x32xf32> to vector<16x8xf32>
    %45 = tpu.concatenate %43, %44 in 1 : vector<16x24xf32>, vector<16x8xf32> -> vector<16x32xf32>
    %46 = tpu.iota {dimensions = array<i32: 1>} : vector<16x32xi32>
    %c16_i32_14 = arith.constant 16 : i32
    %c0_i32_15 = arith.constant 0 : i32
    %47 = arith.cmpi eq, %c16_i32_14, %c0_i32_15 : i32
    %c1_i32_16 = arith.constant 1 : i32
    %48 = arith.select %47, %c1_i32_16, %c16_i32_14 : i32
    %49 = vector.broadcast %48 : i32 to vector<16x32xi32>
    %50 = arith.remsi %46, %49 : vector<16x32xi32>
    %c0_i32_17 = arith.constant 0 : i32
    %51 = vector.broadcast %c0_i32_17 : i32 to vector<16x32xi32>
    %52 = arith.cmpi ne, %50, %51 : vector<16x32xi32>
    %c0_i32_18 = arith.constant 0 : i32
    %53 = vector.broadcast %c0_i32_18 : i32 to vector<16x32xi32>
    %54 = arith.cmpi slt, %50, %53 : vector<16x32xi32>
    %c0_i32_19 = arith.constant 0 : i32
    %55 = arith.cmpi slt, %48, %c0_i32_19 : i32
    %56 = vector.broadcast %55 : i1 to vector<16x32xi1>
    %57 = vector.broadcast %56 : vector<16x32xi1> to vector<16x32xi1>
    %58 = arith.xori %54, %57 : vector<16x32xi1>
    %59 = arith.andi %58, %52 : vector<16x32xi1>
    %60 = vector.broadcast %48 : i32 to vector<16x32xi32>
    %61 = arith.addi %50, %60 : vector<16x32xi32>
    %62 = arith.select %59, %61, %50 : vector<16x32xi1>, vector<16x32xi32>
    %c8_i32_20 = arith.constant 8 : i32
    %63 = vector.broadcast %c8_i32_20 : i32 to vector<16x32xi32>
    %64 = arith.cmpi slt, %62, %63 : vector<16x32xi32>
    %65 = arith.select %64, %45, %42 : vector<16x32xi1>, vector<16x32xf32>
    %c0_21 = arith.constant 0 : index
    %c0_22 = arith.constant 0 : index
    %66 = vector.load %arg8[%c0_21, %c0_22] : memref<16x32xf32, #tpu.memory_space<vmem>>, vector<16x32xf32>
    %67 = arith.mulf %65, %66 : vector<16x32xf32>
    %68 = arith.addf %39, %67 : vector<16x32xf32>
    %69 = arith.truncf %68 : vector<16x32xf32> to vector<16x32xbf16>
    %c0_23 = arith.constant 0 : index
    %c0_24 = arith.constant 0 : index
    %c0_25 = arith.constant 0 : index
    %70 = vector.load %arg3[%c0_23, %c0_24, %c0_25] : memref<1x16x32xbf16, #tpu.memory_space<vmem>>, vector<1x16x32xbf16>
    %71 = vector.shape_cast %70 : vector<1x16x32xbf16> to vector<16x32xbf16>
    %72 = tpu.iota {dimensions = array<i32: 0>} : vector<32x16xi32>
    %c16_i32_26 = arith.constant 16 : i32
    %c0_i32_27 = arith.constant 0 : i32
    %73 = arith.cmpi eq, %c16_i32_26, %c0_i32_27 : i32
    %c1_i32_28 = arith.constant 1 : i32
    %74 = arith.select %73, %c1_i32_28, %c16_i32_26 : i32
    %75 = vector.broadcast %74 : i32 to vector<32x16xi32>
    %76 = arith.remsi %72, %75 : vector<32x16xi32>
    %c0_i32_29 = arith.constant 0 : i32
    %77 = vector.broadcast %c0_i32_29 : i32 to vector<32x16xi32>
    %78 = arith.cmpi ne, %76, %77 : vector<32x16xi32>
    %c0_i32_30 = arith.constant 0 : i32
    %79 = vector.broadcast %c0_i32_30 : i32 to vector<32x16xi32>
    %80 = arith.cmpi slt, %76, %79 : vector<32x16xi32>
    %c0_i32_31 = arith.constant 0 : i32
    %81 = arith.cmpi slt, %74, %c0_i32_31 : i32
    %82 = vector.broadcast %81 : i1 to vector<32x16xi1>
    %83 = vector.broadcast %82 : vector<32x16xi1> to vector<32x16xi1>
    %84 = arith.xori %80, %83 : vector<32x16xi1>
    %85 = arith.andi %84, %78 : vector<32x16xi1>
    %86 = vector.broadcast %74 : i32 to vector<32x16xi32>
    %87 = arith.addi %76, %86 : vector<32x16xi32>
    %88 = arith.select %85, %87, %76 : vector<32x16xi1>, vector<32x16xi32>
    %89 = tpu.iota {dimensions = array<i32: 1>} : vector<32x16xi32>
    %90 = arith.cmpi sle, %89, %88 : vector<32x16xi32>
    %c0_32 = arith.constant 0 : index
    %c0_33 = arith.constant 0 : index
    %c0_34 = arith.constant 0 : index
    %91 = vector.load %arg4[%c0_32, %c0_33, %c0_34] : memref<1x1x16xf32, #tpu.memory_space<vmem>>, vector<1x1x16xf32>
    %92 = vector.shape_cast %91 : vector<1x1x16xf32> to vector<1x16xf32>
    %cst = arith.constant 0.000000e+00 : f32
    %93 = vector.broadcast %cst : f32 to vector<1x16xf32>
    %94 = arith.cmpf ogt, %92, %93 : vector<1x16xf32>
    %95 = vector.broadcast %94 : vector<1x16xi1> to vector<32x16xi1>
    %96 = arith.andi %90, %95 : vector<32x16xi1>
    %97 = vector.extract_strided_slice %69 {offsets = [0, 0], sizes = [16, 16], strides = [1, 1]} : vector<16x32xbf16> to vector<16x16xbf16>
    %98 = vector.extract_strided_slice %71 {offsets = [0, 0], sizes = [16, 16], strides = [1, 1]} : vector<16x32xbf16> to vector<16x16xbf16>
    %99 = vector.extract_strided_slice %37 {offsets = [0, 0], sizes = [16, 16], strides = [1, 1]} : vector<16x64xbf16> to vector<16x16xbf16>
    %100 = vector.extract_strided_slice %37 {offsets = [0, 16], sizes = [16, 16], strides = [1, 1]} : vector<16x64xbf16> to vector<16x16xbf16>
    %101 = tpu.concatenate %99, %100 in 0 : vector<16x16xbf16>, vector<16x16xbf16> -> vector<32x16xbf16>
    %cst_35 = arith.constant dense<0.000000e+00> : vector<32x16xf32>
    %102 = tpu.matmul %101, %97, %cst_35 {dimension_numbers = #tpu.dot_dimension_numbers<[1], [1], [0], [0], [0, 0, 1, 0], [], []>} : vector<32x16xbf16>, vector<16x16xbf16>, vector<32x16xf32> -> vector<32x16xf32>
    %cst_36 = arith.constant 2.500000e-01 : f32
    %103 = vector.broadcast %cst_36 : f32 to vector<32x16xf32>
    %104 = arith.mulf %102, %103 : vector<32x16xf32>
    %cst_37 = arith.constant -1.000000e+30 : f32
    %105 = vector.broadcast %cst_37 : f32 to vector<32x16xf32>
    %106 = arith.select %96, %104, %105 : vector<32x16xi1>, vector<32x16xf32>
    %cst_38 = arith.constant dense<0xFF800000> : vector<32xf32>
    %107 = vector.multi_reduction <maximumf>, %106, %cst_38 [1] : vector<32x16xf32> to vector<32xf32>
    %108 = vector.shape_cast %107 : vector<32xf32> to vector<32x1xf32>
    %109 = vector.broadcast %108 : vector<32x1xf32> to vector<32x16xf32>
    %110 = arith.subf %106, %109 : vector<32x16xf32>
    %111 = math.exp %110 : vector<32x16xf32>
    %cst_39 = arith.constant dense<0.000000e+00> : vector<32xf32>
    %112 = vector.multi_reduction <add>, %111, %cst_39 [1] : vector<32x16xf32> to vector<32xf32>
    %113 = vector.shape_cast %112 : vector<32xf32> to vector<32x1xf32>
    %114 = tpu.reciprocal %113 {approx = true} : vector<32x1xf32> -> vector<32x1xf32>
    %115 = vector.broadcast %114 : vector<32x1xf32> to vector<32x16xf32>
    %116 = arith.mulf %111, %115 : vector<32x16xf32>
    %117 = arith.truncf %116 : vector<32x16xf32> to vector<32x16xbf16>
    %cst_40 = arith.constant dense<0.000000e+00> : vector<32x16xf32>
    %118 = tpu.matmul %117, %98, %cst_40 {dimension_numbers = #tpu.dot_dimension_numbers<[1], [0], [0], [1], [0, 0, 1, 1], [], []>} : vector<32x16xbf16>, vector<16x16xbf16>, vector<32x16xf32> -> vector<32x16xf32>
    %119 = vector.extract_strided_slice %118 {offsets = [0, 0], sizes = [16, 16], strides = [1, 1]} : vector<32x16xf32> to vector<16x16xf32>
    %120 = vector.extract_strided_slice %118 {offsets = [16, 0], sizes = [16, 16], strides = [1, 1]} : vector<32x16xf32> to vector<16x16xf32>
    %121 = tpu.concatenate %119, %120 in 1 : vector<16x16xf32>, vector<16x16xf32> -> vector<16x32xf32>
    %122 = vector.extract_strided_slice %69 {offsets = [0, 16], sizes = [16, 16], strides = [1, 1]} : vector<16x32xbf16> to vector<16x16xbf16>
    %123 = vector.extract_strided_slice %71 {offsets = [0, 16], sizes = [16, 16], strides = [1, 1]} : vector<16x32xbf16> to vector<16x16xbf16>
    %124 = vector.extract_strided_slice %37 {offsets = [0, 32], sizes = [16, 16], strides = [1, 1]} : vector<16x64xbf16> to vector<16x16xbf16>
    %125 = vector.extract_strided_slice %37 {offsets = [0, 48], sizes = [16, 16], strides = [1, 1]} : vector<16x64xbf16> to vector<16x16xbf16>
    %126 = tpu.concatenate %124, %125 in 0 : vector<16x16xbf16>, vector<16x16xbf16> -> vector<32x16xbf16>
    %cst_41 = arith.constant dense<0.000000e+00> : vector<32x16xf32>
    %127 = tpu.matmul %126, %122, %cst_41 {dimension_numbers = #tpu.dot_dimension_numbers<[1], [1], [0], [0], [0, 0, 1, 0], [], []>} : vector<32x16xbf16>, vector<16x16xbf16>, vector<32x16xf32> -> vector<32x16xf32>
    %cst_42 = arith.constant 2.500000e-01 : f32
    %128 = vector.broadcast %cst_42 : f32 to vector<32x16xf32>
    %129 = arith.mulf %127, %128 : vector<32x16xf32>
    %cst_43 = arith.constant -1.000000e+30 : f32
    %130 = vector.broadcast %cst_43 : f32 to vector<32x16xf32>
    %131 = arith.select %96, %129, %130 : vector<32x16xi1>, vector<32x16xf32>
    %cst_44 = arith.constant dense<0xFF800000> : vector<32xf32>
    %132 = vector.multi_reduction <maximumf>, %131, %cst_44 [1] : vector<32x16xf32> to vector<32xf32>
    %133 = vector.shape_cast %132 : vector<32xf32> to vector<32x1xf32>
    %134 = vector.broadcast %133 : vector<32x1xf32> to vector<32x16xf32>
    %135 = arith.subf %131, %134 : vector<32x16xf32>
    %136 = math.exp %135 : vector<32x16xf32>
    %cst_45 = arith.constant dense<0.000000e+00> : vector<32xf32>
    %137 = vector.multi_reduction <add>, %136, %cst_45 [1] : vector<32x16xf32> to vector<32xf32>
    %138 = vector.shape_cast %137 : vector<32xf32> to vector<32x1xf32>
    %139 = tpu.reciprocal %138 {approx = true} : vector<32x1xf32> -> vector<32x1xf32>
    %140 = vector.broadcast %139 : vector<32x1xf32> to vector<32x16xf32>
    %141 = arith.mulf %136, %140 : vector<32x16xf32>
    %142 = arith.truncf %141 : vector<32x16xf32> to vector<32x16xbf16>
    %cst_46 = arith.constant dense<0.000000e+00> : vector<32x16xf32>
    %143 = tpu.matmul %142, %123, %cst_46 {dimension_numbers = #tpu.dot_dimension_numbers<[1], [0], [0], [1], [0, 0, 1, 1], [], []>} : vector<32x16xbf16>, vector<16x16xbf16>, vector<32x16xf32> -> vector<32x16xf32>
    %144 = vector.extract_strided_slice %143 {offsets = [0, 0], sizes = [16, 16], strides = [1, 1]} : vector<32x16xf32> to vector<16x16xf32>
    %145 = vector.extract_strided_slice %143 {offsets = [16, 0], sizes = [16, 16], strides = [1, 1]} : vector<32x16xf32> to vector<16x16xf32>
    %146 = tpu.concatenate %144, %145 in 1 : vector<16x16xf32>, vector<16x16xf32> -> vector<16x32xf32>
    %147 = tpu.concatenate %121, %146 in 1 : vector<16x32xf32>, vector<16x32xf32> -> vector<16x64xf32>
    %148 = arith.truncf %147 : vector<16x64xf32> to vector<16x64xbf16>
    %c0_47 = arith.constant 0 : index
    %c0_48 = arith.constant 0 : index
    %149 = vector.load %arg9[%c0_47, %c0_48] : memref<64x64xbf16, #tpu.memory_space<vmem>>, vector<64x64xbf16>
    %cst_49 = arith.constant dense<0.000000e+00> : vector<16x64xf32>
    %150 = tpu.matmul %148, %149, %cst_49 {dimension_numbers = #tpu.dot_dimension_numbers<[1], [0], [0], [1], [0, 0, 1, 1], [], []>} : vector<16x64xbf16>, vector<64x64xbf16>, vector<16x64xf32> -> vector<16x64xf32>
    %c0_50 = arith.constant 0 : index
    %c0_51 = arith.constant 0 : index
    %c0_52 = arith.constant 0 : index
    %151 = vector.load %arg10[%c0_50, %c0_51, %c0_52] : memref<1x16x64xbf16, #tpu.memory_space<vmem>>, vector<1x16x64xbf16>
    %152 = vector.shape_cast %151 : vector<1x16x64xbf16> to vector<16x64xbf16>
    %153 = arith.extf %152 : vector<16x64xbf16> to vector<16x64xf32>
    %154 = arith.addf %150, %153 : vector<16x64xf32>
    %155 = arith.truncf %154 : vector<16x64xf32> to vector<16x64xbf16>
    %c0_53 = arith.constant 0 : index
    %c0_54 = arith.constant 0 : index
    %c0_55 = arith.constant 0 : index
    %156 = vector.load %arg11[%c0_53, %c0_54, %c0_55] : memref<1x16x64xbf16, #tpu.memory_space<vmem>>, vector<1x16x64xbf16>
    %157 = vector.shape_cast %156 : vector<1x16x64xbf16> to vector<16x64xbf16>
    %158 = vector.shape_cast %155 : vector<16x64xbf16> to vector<1x16x64xbf16>
    tpu.vector_store %arg11[%c0_53, %c0_54, %c0_55], %158 {strides = array<i32>} : memref<1x16x64xbf16, #tpu.memory_space<vmem>>, vector<1x16x64xbf16>,
    return
  }
  func.func @transform_0(%arg0: i32) -> (i32, i32, i32) {
    %c0_i32 = arith.constant 0 : i32
    %c0_i32_0 = arith.constant 0 : i32
    %c0_i32_1 = arith.constant 0 : i32
    return %arg0, %c0_i32, %c0_i32_0 : i32, i32, i32
  }
  func.func @transform_1(%arg0: i32) -> (i32, i32, i32) {
    %c0_i32 = arith.constant 0 : i32
    %c0_i32_0 = arith.constant 0 : i32
    %c0_i32_1 = arith.constant 0 : i32
    return %arg0, %c0_i32, %c0_i32_0 : i32, i32, i32
  }
  func.func @transform_2(%arg0: i32) -> (i32, i32, i32) {
    %c0_i32 = arith.constant 0 : i32
    %c0_i32_0 = arith.constant 0 : i32
    %c0_i32_1 = arith.constant 0 : i32
    return %arg0, %c0_i32, %c0_i32_0 : i32, i32, i32
  }
  func.func @transform_3(%arg0: i32) -> (i32, i32, i32) {
    %c0_i32 = arith.constant 0 : i32
    %c0_i32_0 = arith.constant 0 : i32
    %c0_i32_1 = arith.constant 0 : i32
    return %arg0, %c0_i32, %c0_i32_0 : i32, i32, i32
  }
  func.func @transform_4(%arg0: i32) -> (i32, i32) {
    %c0_i32 = arith.constant 0 : i32
    %c0_i32_0 = arith.constant 0 : i32
    %c0_i32_1 = arith.constant 0 : i32
    return %c0_i32, %c0_i32_0 : i32, i32
  }
  func.func @transform_5(%arg0: i32) -> (i32, i32) {
    %c0_i32 = arith.constant 0 : i32
    %c0_i32_0 = arith.constant 0 : i32
    %c0_i32_1 = arith.constant 0 : i32
    return %c0_i32, %c0_i32_0 : i32, i32
  }
  func.func @transform_6(%arg0: i32) -> (i32, i32) {
    %c0_i32 = arith.constant 0 : i32
    %c0_i32_0 = arith.constant 0 : i32
    %c0_i32_1 = arith.constant 0 : i32
    return %c0_i32, %c0_i32_0 : i32, i32
  }
  func.func @transform_7(%arg0: i32) -> (i32, i32) {
    %c0_i32 = arith.constant 0 : i32
    %c0_i32_0 = arith.constant 0 : i32
    %c0_i32_1 = arith.constant 0 : i32
    return %c0_i32, %c0_i32_0 : i32, i32
  }
  func.func @transform_8(%arg0: i32) -> (i32, i32) {
    %c0_i32 = arith.constant 0 : i32
    %c0_i32_0 = arith.constant 0 : i32
    %c0_i32_1 = arith.constant 0 : i32
    return %c0_i32, %c0_i32_0 : i32, i32
  }
  func.func @transform_9(%arg0: i32) -> (i32, i32, i32) {
    %c0_i32 = arith.constant 0 : i32
    %c0_i32_0 = arith.constant 0 : i32
    %c0_i32_1 = arith.constant 0 : i32
    return %arg0, %c0_i32, %c0_i32_0 : i32, i32, i32
  }
  func.func @transform_10(%arg0: i32) -> (i32, i32, i32) {
    %c0_i32 = arith.constant 0 : i32
    %c0_i32_0 = arith.constant 0 : i32
    %c0_i32_1 = arith.constant 0 : i32
    return %arg0, %c0_i32, %c0_i32_0 : i32, i32, i32
  }
}

</mosaic_0001>

<llo_original>
// kernel: tpu_custom_call.1
$region0: #{tpu_custom_call.1}
  #allocation0 [shape = 'u32[]', space=smem, size = 0x4, offset = 0x4, fixed_abs, tag = 'smem constant byte address 0x4 - core index']
  #allocation1 [shape = 'u32[72,128]{1,0:T(1,128)}', space=vmem, size = 0x9000, scoped, tag = 'internal scratch']
  %s0 = inlined_call_operand.hbm [shape: f32[8,128], index: 0, kind: input, shape index: {}]
  %s1 = inlined_call_operand.hbm [shape: f32[8,128], index: 1, kind: output, shape index: {}]
  %s2 = sld [smem:[#allocation0]]
  $region18: #{tpu_custom_call.1} parent=0
    _
  %s4 = ssub.s32 1, %s2
  %s5 = scalar_select 0, %s4, %s2
  $region1: #{tpu_custom_call.1} parent=0
    #allocation2 [shape = 'u8[4096]{0}', space=vmem, size = 0x1000, scoped, tag = 'input window, operand 0, single buffered']
    #allocation3 [shape = 's32[1]{0}', space=sflag, size = 0x4, scoped, tag = 'scoped memory for tpu_custom_call.1']
    #allocation4 [shape = 's32[1]{0}', space=sflag, size = 0x4, scoped, tag = 'scoped memory for tpu_custom_call.1']
    #allocation5 [shape = 'u8[4096]{0}', space=vmem, size = 0x1000, scoped, tag = 'output window, operand 0, single buffered']
    %6 = vsyncpa [#allocation3], 0
    %7 = vsyncpa [#allocation4], 0
    // Predicated region
    $region2: #{tpu_custom_call.1} parent=1 // pred_check
      _
    $region3: #{tpu_custom_call.1} parent=1 // pred_check_branch
      %9 = sbr.rel (0) target = $region5
    $region4: #{tpu_custom_call.1} parent=1 // pred_region
      %11 = vsyncadd [#allocation3], 0
      %s13 = sshll.u32 %s0, 4
      %s14 = int_to_ptr.hbm [resolvable:$true] %s13
      %s15 = sshll.u32 [#allocation2], 4
      %s16 = int_to_ptr.vmem [resolvable:$true] %s15
      %18 = dma.hbm_to_vmem [thread:$0]  %s14, 128, %s16, [#allocation3]
    $region5: #{tpu_custom_call.1} parent=1 // pred_fallthru
      _
    // Predicated region
    $region6: #{tpu_custom_call.1} parent=1 // pred_check
      _
    $region7: #{tpu_custom_call.1} parent=1 // pred_check_branch
      %20 = sbr.rel (0) target = $region9
    $region8: #{tpu_custom_call.1} parent=1 // pred_region
      %22 = dma.done [#allocation3], 128
    $region9: #{tpu_custom_call.1} parent=1 // pred_fallthru
      _
    %v23 = vld [vmem:[#allocation2] sm:$0xff]
    %v24 = vadd.f32 %v23, 1.0
    %25 = vst [vmem:[#allocation5] sm:$0xff] %v24
    // Predicated region
    $region10: #{tpu_custom_call.1} parent=1 // pred_check
      _
    $region11: #{tpu_custom_call.1} parent=1 // pred_check_branch
      %27 = sbr.rel (0) target = $region13
    $region12: #{tpu_custom_call.1} parent=1 // pred_region
      %29 = vsyncadd [#allocation4], 0
      %s31 = sshll.u32 [#allocation5], 4
      %s32 = int_to_ptr.vmem [resolvable:$true] %s31
      %s33 = sshll.u32 %s1, 4
      %s34 = int_to_ptr.hbm [resolvable:$true] %s33
      %36 = dma.vmem_to_hbm [thread:$0]  %s32, 128, %s34, [#allocation4]
    $region13: #{tpu_custom_call.1} parent=1 // pred_fallthru
      _
    // Predicated region
    $region14: #{tpu_custom_call.1} parent=1 // pred_check
      _
    $region15: #{tpu_custom_call.1} parent=1 // pred_check_branch
      %38 = sbr.rel (0) target = $region17
    $region16: #{tpu_custom_call.1} parent=1 // pred_region
      %40 = dma.done [#allocation4], 128
    $region17: #{tpu_custom_call.1} parent=1 // pred_fallthru
      _
    %41 = vsyncpa [#allocation3], 1
    %42 = vsyncpa [#allocation4], 1

// kernel: _lambda_.16
$region0: #{_lambda_.16}
  #allocation0 [shape = 'u32[]', space=smem, size = 0x4, offset = 0x4, fixed_abs, tag = 'smem constant byte address 0x4 - core index']
  #allocation1 [shape = 'u32[72,128]{1,0:T(1,128)}', space=vmem, size = 0x9000, scoped, tag = 'internal scratch']
  %s0 = inlined_call_operand.vmem [shape: f32[32,48], index: 0, kind: input, shape index: {}]
  %s1 = inlined_call_operand.vmem [shape: bf16[48,32], index: 1, kind: input, shape index: {}]
  %s2 = inlined_call_operand.vmem [shape: f32[1,32], index: 2, kind: input, shape index: {}]
  %s3 = inlined_call_operand.vmem [shape: bf16[32,32], index: 3, kind: output, shape index: {}]
  %s4 = sld [smem:[#allocation0]]
  $region22: #{_lambda_.16} parent=0
    _
  %s6 = ssub.s32 1, %s4
  %s7 = scalar_select 0, %s6, %s4
  // Predicated region
  $region2: #{_lambda_.16} parent=0 // pred_check
    _
  $region3: #{_lambda_.16} parent=0 // pred_check_branch
    %9 = sbr.rel (0) target = $region5
  $region4: #{_lambda_.16} parent=0 // pred_region
    _
  $region5: #{_lambda_.16} parent=0 // pred_fallthru
    _
  // Predicated region
  $region6: #{_lambda_.16} parent=0 // pred_check
    _
  $region7: #{_lambda_.16} parent=0 // pred_check_branch
    %11 = sbr.rel (0) target = $region9
  $region8: #{_lambda_.16} parent=0 // pred_region
    _
  $region9: #{_lambda_.16} parent=0 // pred_fallthru
    _
  // Predicated region
  $region10: #{_lambda_.16} parent=0 // pred_check
    _
  $region11: #{_lambda_.16} parent=0 // pred_check_branch
    %13 = sbr.rel (0) target = $region13
  $region12: #{_lambda_.16} parent=0 // pred_region
    _
  $region13: #{_lambda_.16} parent=0 // pred_fallthru
    _
  %v15 = vld [vmem:[%s0] sm:$0xff]
  %v16 = vld [vmem:[%s0 + $0x8] sm:$0xff]
  %v17 = vld [vmem:[%s0 + $0x10] sm:$0xff]
  %v18 = vld [vmem:[%s0 + $0x18] sm:$0xff]
  %v19 = vpack.c.bf16 %v16, %v15
  %v20 = vpack.c.bf16 %v18, %v17
  %v21 = vld [vmem:[%s1] sm:$0xf]
  %v22 = vld [vmem:[%s1 + $0x4] sm:$0xf]
  %v23 = vld [vmem:[%s1 + $0x8] sm:$0xf]
  %v24 = vld [vmem:[%s1 + $0xc] sm:$0xf]
  %v25 = vld [vmem:[%s1 + $0x10] sm:$0xf]
  %v26 = vld [vmem:[%s1 + $0x14] sm:$0xf]
  %v27 = vld [vmem:[%s2] sm:$0x1]
  %v29 = vperm.slane %v27, 0
  %v37 = vunpack.c.l.b16 %v21
  %v38 = vunpack.c.l.b16 %v22
  %v39 = vunpack.c.l.b16 %v23
  %v40 = vunpack.c.l.b16 %v24
  %v41 = vunpack.c.l.b16 %v25
  %v42 = vunpack.c.l.b16 %v26
  %v43 = vpack.c.b16 %v38, %v37
  %v44 = vpack.c.b16 %v40, %v39
  %v45 = vpack.c.b16 %v42, %v41
  %vm49 = vcmask 392192
  %v51 = vsel %vm49, %v19, 0
  %v54 = vsel %vm49, %v20, 0
  %56 = vmatpush.bf16.msra.mxu0 0
  %57 = vmatpush.bf16.msra.mxu0 0
  %58 = vmatpush.bf16.msra.mxu0 0
  %59 = vmatpush.bf16.msra.mxu0 0
  %60 = vmatpush.bf16.msra.mxu0 0
  %61 = vmatpush.bf16.msra.mxu0 %v45
  %62 = vmatpush.bf16.msra.mxu0 %v44
  %63 = vmatpush.bf16.msra.mxu0 %v43
  %64 = vmatmul.bf16.gmra.mxu0 %v51
  %v65 = vpop.f32.mrf.mxu0
  %v66 = vadd.f32 %v29, %v65
  %v67 = vpop.f32.mrf.mxu0
  %v68 = vadd.f32 %v29, %v67
  %69 = vmatmul.bf16.gmra.mxu0 %v54
  %v70 = vpop.f32.mrf.mxu0
  %v71 = vadd.f32 %v29, %v70
  %v72 = vpop.f32.mrf.mxu0
  %v73 = vadd.f32 %v29, %v72
  %74 = vdwg.mxu0
  %v75 = vpack.c.bf16 %v66, %v66
  %v76 = vpack.c.bf16 %v68, %v68
  %v77 = vpack.c.bf16 %v71, %v71
  %v78 = vpack.c.bf16 %v73, %v73
  %vm79 = vcmask 257024
  %80 = vst.msk [vmem:[%s3] sm:$0xf] %vm79, %v75
  %81 = vst.msk [vmem:[%s3 + $0x4] sm:$0xf] %vm79, %v76
  %82 = vst.msk [vmem:[%s3 + $0x8] sm:$0xf] %vm79, %v77
  %83 = vst.msk [vmem:[%s3 + $0xc] sm:$0xf] %vm79, %v78
  // Predicated region
  $region14: #{_lambda_.16} parent=0 // pred_check
    _
  $region15: #{_lambda_.16} parent=0 // pred_check_branch
    %85 = sbr.rel (0) target = $region17
  $region16: #{_lambda_.16} parent=0 // pred_region
    _
  $region17: #{_lambda_.16} parent=0 // pred_fallthru
    _
  // Predicated region
  $region18: #{_lambda_.16} parent=0 // pred_check
    _
  $region19: #{_lambda_.16} parent=0 // pred_check_branch
    %87 = sbr.rel (0) target = $region21
  $region20: #{_lambda_.16} parent=0 // pred_region
    _
  $region21: #{_lambda_.16} parent=0 // pred_fallthru
    _

// kernel: _lambda_.18
$region0: #{_lambda_.18}
  #allocation0 [shape = 'u32[]', space=smem, size = 0x4, offset = 0x4, fixed_abs, tag = 'smem constant byte address 0x4 - core index']
  #allocation1 [shape = 'u32[72,128]{1,0:T(1,128)}', space=vmem, size = 0x9000, scoped, tag = 'internal scratch']
  %s0 = inlined_call_operand.vmem [shape: bf16[2,16,32], index: 0, kind: input, shape index: {}]
  %s1 = inlined_call_operand.vmem [shape: bf16[2,16,32], index: 1, kind: input, shape index: {}]
  %s2 = inlined_call_operand.vmem [shape: bf16[2,16,32], index: 2, kind: input, shape index: {}]
  %s3 = inlined_call_operand.vmem [shape: bf16[32,32], index: 3, kind: input, shape index: {}]
  %s4 = inlined_call_operand.vmem [shape: f32[1,32], index: 4, kind: input, shape index: {}]
  %s5 = inlined_call_operand.vmem [shape: bf16[2,16,32], index: 5, kind: input, shape index: {}]
  %s6 = inlined_call_operand.vmem [shape: bf16[2,16,32], index: 6, kind: output, shape index: {}]
  %s7 = sld [smem:[#allocation0]]
  $region57: #{_lambda_.18} parent=0
    _
  %s9 = ssub.s32 1, %s7
  %s10 = scalar_select 0, %s9, %s7
  loop: start=0, step=1, limit=4
  $region2: #{_lambda_.18} parent=0 // loop_pre_header
    _
  $region3: #{_lambda_.18} parent=0 // loop_header
    %s12 = sphi 0, %s16
    %p13 = scmp.ge.s32.totalorder %s12, 4
    %s22 = sphi 0, %s24
    %s25 = sphi 0, %s22
    %s26 = sphi 0, %s25
    %s42 = sphi 0, %s26
    %s48 = sphi 0, %s50
    %s51 = sphi 0, %s48
    %s52 = sphi 0, %s51
    %s68 = sphi 0, %s52
    %s74 = sphi 0, %s76
    %s77 = sphi 0, %s74
    %s78 = sphi 0, %s77
    %s94 = sphi 0, %s78
    %s98 = sphi 0, %s98
    %s100 = sphi 0, %s98
    %s101 = sphi 0, %s100
    %s115 = sphi 0, %s101
    %s119 = sphi 0, %s119
    %s121 = sphi 0, %s119
    %s122 = sphi 0, %s121
    %s136 = sphi 0, %s122
    %s142 = sphi 0, %s144
    %s145 = sphi 0, %s142
    %s146 = sphi 0, %s145
    %s162 = sphi 0, %s146
    %s168 = sphi 0, %s170
    %s171 = sphi 0, %s168
    %s172 = sphi 0, %s171
    %s188 = sphi 0, %s172
  $region4: #{_lambda_.18} parent=0 // loop_header_branch
    %15 = sbr.rel (%p13) target = $region8
  $region5: #{_lambda_.18} parent=0 // loop_body
    %s17 = ssub.s32 %s12, 1
    %s18 = ssub.s32 %s12, 2
    %s19 = sadd.s32 %s12, 1
    %s20 = ssub.s32 %s12, %s19
    %p21 = scmp.eq.s32.totalorder %s20, 0
    %s23 = sadd.s32 %s22, 1
    %s24 = scalar_select %p21, %s22, %s23
    %p27 = pneg %p21
    %p28 = scmp.eq.s32.totalorder %s12, 1
    %p29 = por %p27, %p28
    %p30 = scmp.ne.s32.totalorder %s22, %s25
    %p31 = scmp.eq.s32.totalorder %s12, 0
    %p32 = por %p30, %p31
    %p33 = scmp.ne.s32.totalorder %s22, %s25
    %p34 = scmp.eq.s32.totalorder %s17, 1
    %p35 = por %p33, %p34
    %p36 = scmp.ne.s32.totalorder %s25, %s26
    %p37 = scmp.eq.s32.totalorder %s17, 0
    %p38 = por %p36, %p37
    %p39 = scmp.ne.s32.totalorder %s25, %s26
    %p40 = scmp.eq.s32.totalorder %s18, 1
    %p41 = por %p39, %p40
    %p43 = scmp.ne.s32.totalorder %s26, %s42
    %p44 = scmp.eq.s32.totalorder %s18, 0
    %p45 = por %p43, %p44
    %s46 = ssub.s32 %s12, %s19
    %p47 = scmp.eq.s32.totalorder %s46, 0
    %s49 = sadd.s32 %s48, 1
    %s50 = scalar_select %p47, %s48, %s49
    %p53 = pneg %p47
    %p54 = scmp.eq.s32.totalorder %s12, 1
    %p55 = por %p53, %p54
    %p56 = scmp.ne.s32.totalorder %s48, %s51
    %p57 = scmp.eq.s32.totalorder %s12, 0
    %p58 = por %p56, %p57
    %p59 = scmp.ne.s32.totalorder %s48, %s51
    %p60 = scmp.eq.s32.totalorder %s17, 1
    %p61 = por %p59, %p60
    %p62 = scmp.ne.s32.totalorder %s51, %s52
    %p63 = scmp.eq.s32.totalorder %s17, 0
    %p64 = por %p62, %p63
    %p65 = scmp.ne.s32.totalorder %s51, %s52
    %p66 = scmp.eq.s32.totalorder %s18, 1
    %p67 = por %p65, %p66
    %p69 = scmp.ne.s32.totalorder %s52, %s68
    %p70 = scmp.eq.s32.totalorder %s18, 0
    %p71 = por %p69, %p70
    %s72 = ssub.s32 %s12, %s19
    %p73 = scmp.eq.s32.totalorder %s72, 0
    %s75 = sadd.s32 %s74, 1
    %s76 = scalar_select %p73, %s74, %s75
    %p79 = pneg %p73
    %p80 = scmp.eq.s32.totalorder %s12, 1
    %p81 = por %p79, %p80
    %p82 = scmp.ne.s32.totalorder %s74, %s77
    %p83 = scmp.eq.s32.totalorder %s12, 0
    %p84 = por %p82, %p83
    %p85 = scmp.ne.s32.totalorder %s74, %s77
    %p86 = scmp.eq.s32.totalorder %s17, 1
    %p87 = por %p85, %p86
    %p88 = scmp.ne.s32.totalorder %s77, %s78
    %p89 = scmp.eq.s32.totalorder %s17, 0
    %p90 = por %p88, %p89
    %p91 = scmp.ne.s32.totalorder %s77, %s78
    %p92 = scmp.eq.s32.totalorder %s18, 1
    %p93 = por %p91, %p92
    %p95 = scmp.ne.s32.totalorder %s78, %s94
    %p96 = scmp.eq.s32.totalorder %s18, 0
    %p97 = por %p95, %p96
    %s99 = sadd.s32 %s98, 1
    %p102 = scmp.eq.s32.totalorder %s12, 1
    %p103 = scmp.ne.s32.totalorder %s98, %s100
    %p104 = scmp.eq.s32.totalorder %s12, 0
    %p105 = por %p103, %p104
    %p106 = scmp.ne.s32.totalorder %s98, %s100
    %p107 = scmp.eq.s32.totalorder %s17, 1
    %p108 = por %p106, %p107
    %p109 = scmp.ne.s32.totalorder %s100, %s101
    %p110 = scmp.eq.s32.totalorder %s17, 0
    %p111 = por %p109, %p110
    %p112 = scmp.ne.s32.totalorder %s100, %s101
    %p113 = scmp.eq.s32.totalorder %s18, 1
    %p114 = por %p112, %p113
    %p116 = scmp.ne.s32.totalorder %s101, %s115
    %p117 = scmp.eq.s32.totalorder %s18, 0
    %p118 = por %p116, %p117
    %s120 = sadd.s32 %s119, 1
    %p123 = scmp.eq.s32.totalorder %s12, 1
    %p124 = scmp.ne.s32.totalorder %s119, %s121
    %p125 = scmp.eq.s32.totalorder %s12, 0
    %p126 = por %p124, %p125
    %p127 = scmp.ne.s32.totalorder %s119, %s121
    %p128 = scmp.eq.s32.totalorder %s17, 1
    %p129 = por %p127, %p128
    %p130 = scmp.ne.s32.totalorder %s121, %s122
    %p131 = scmp.eq.s32.totalorder %s17, 0
    %p132 = por %p130, %p131
    %p133 = scmp.ne.s32.totalorder %s121, %s122
    %p134 = scmp.eq.s32.totalorder %s18, 1
    %p135 = por %p133, %p134
    %p137 = scmp.ne.s32.totalorder %s122, %s136
    %p138 = scmp.eq.s32.totalorder %s18, 0
    %p139 = por %p137, %p138
    %s140 = ssub.s32 %s12, %s19
    %p141 = scmp.eq.s32.totalorder %s140, 0
    %s143 = sadd.s32 %s142, 1
    %s144 = scalar_select %p141, %s142, %s143
    %p147 = pneg %p141
    %p148 = scmp.eq.s32.totalorder %s12, 1
    %p149 = por %p147, %p148
    %p150 = scmp.ne.s32.totalorder %s142, %s145
    %p151 = scmp.eq.s32.totalorder %s12, 0
    %p152 = por %p150, %p151
    %p153 = scmp.ne.s32.totalorder %s142, %s145
    %p154 = scmp.eq.s32.totalorder %s17, 1
    %p155 = por %p153, %p154
    %p156 = scmp.ne.s32.totalorder %s145, %s146
    %p157 = scmp.eq.s32.totalorder %s17, 0
    %p158 = por %p156, %p157
    %p159 = scmp.ne.s32.totalorder %s145, %s146
    %p160 = scmp.eq.s32.totalorder %s18, 1
    %p161 = por %p159, %p160
    %p163 = scmp.ne.s32.totalorder %s146, %s162
    %p164 = scmp.eq.s32.totalorder %s18, 0
    %p165 = por %p163, %p164
    %s166 = ssub.s32 %s12, %s19
    %p167 = scmp.eq.s32.totalorder %s166, 0
    %s169 = sadd.s32 %s168, 1
    %s170 = scalar_select %p167, %s168, %s169
    %p173 = pneg %p167
    %p174 = scmp.eq.s32.totalorder %s12, 1
    %p175 = por %p173, %p174
    %p176 = scmp.ne.s32.totalorder %s168, %s171
    %p177 = scmp.eq.s32.totalorder %s12, 0
    %p178 = por %p176, %p177
    %p179 = scmp.ne.s32.totalorder %s168, %s171
    %p180 = scmp.eq.s32.totalorder %s17, 1
    %p181 = por %p179, %p180
    %p182 = scmp.ne.s32.totalorder %s171, %s172
    %p183 = scmp.eq.s32.totalorder %s17, 0
    %p184 = por %p182, %p183
    %p185 = scmp.ne.s32.totalorder %s171, %s172
    %p186 = scmp.eq.s32.totalorder %s18, 1
    %p187 = por %p185, %p186
    %p189 = scmp.ne.s32.totalorder %s172, %s188
    %p190 = scmp.eq.s32.totalorder %s18, 0
    %p191 = por %p189, %p190
    %p192 = scmp.le.s32.totalorder 1, %s12
    %p193 = scmp.lt.s32.totalorder %s12, 3
    %p194 = pnand %p192, %p193
    %p195 = pneg %p194
    // Predicated region
    $region9: #{_lambda_.18} parent=5 // pred_check
      _
    $region10: #{_lambda_.18} parent=5 // pred_check_branch
      %197 = sbr.rel (%p194) target = $region12
    $region11: #{_lambda_.18} parent=5 // pred_region
      %s198 = ssub.s32 %s12, 1
      // Predicated region
      $region13: #{_lambda_.18} parent=11 // pred_check
        %p199 = pneg %p111
      $region14: #{_lambda_.18} parent=11 // pred_check_branch
        %201 = sbr.rel (%p199) target = $region16
      $region15: #{_lambda_.18} parent=11 // pred_region
        _
      $region16: #{_lambda_.18} parent=11 // pred_fallthru
        _
      // Predicated region
      $region17: #{_lambda_.18} parent=11 // pred_check
        %p202 = pneg %p132
      $region18: #{_lambda_.18} parent=11 // pred_check_branch
        %204 = sbr.rel (%p202) target = $region20
      $region19: #{_lambda_.18} parent=11 // pred_region
        _
      $region20: #{_lambda_.18} parent=11 // pred_fallthru
        _
    $region12: #{_lambda_.18} parent=5 // pred_fallthru
      _
    %p205 = scmp.lt.s32.totalorder %s12, 2
    // Predicated region
    $region21: #{_lambda_.18} parent=5 // pred_check
      %p206 = pneg %p205
    $region22: #{_lambda_.18} parent=5 // pred_check_branch
      %208 = sbr.rel (%p206) target = $region24
    $region23: #{_lambda_.18} parent=5 // pred_region
      // Predicated region
      $region25: #{_lambda_.18} parent=23 // pred_check
        %p209 = pneg %p32
      $region26: #{_lambda_.18} parent=23 // pred_check_branch
        %211 = sbr.rel (%p209) target = $region28
      $region27: #{_lambda_.18} parent=23 // pred_region
        %p212 = scmp.lt.s32.totalorder %s12, 1
        %s213 = scalar_select %p212, %s12, 1
        %s214 = smul.addr %s213, 2
        %s215 = smul.addr %s214, 4
        %s216 = scalar_lea.vmem %s0, %s215
      $region28: #{_lambda_.18} parent=23 // pred_fallthru
        _
      // Predicated region
      $region29: #{_lambda_.18} parent=23 // pred_check
        %p217 = pneg %p58
      $region30: #{_lambda_.18} parent=23 // pred_check_branch
        %219 = sbr.rel (%p217) target = $region32
      $region31: #{_lambda_.18} parent=23 // pred_region
        %p220 = scmp.lt.s32.totalorder %s12, 1
        %s221 = scalar_select %p220, %s12, 1
        %s222 = smul.addr %s221, 2
        %s223 = smul.addr %s222, 4
        %s224 = scalar_lea.vmem %s1, %s223
      $region32: #{_lambda_.18} parent=23 // pred_fallthru
        _
      // Predicated region
      $region33: #{_lambda_.18} parent=23 // pred_check
        %p225 = pneg %p84
      $region34: #{_lambda_.18} parent=23 // pred_check_branch
        %227 = sbr.rel (%p225) target = $region36
      $region35: #{_lambda_.18} parent=23 // pred_region
        %p228 = scmp.lt.s32.totalorder %s12, 1
        %s229 = scalar_select %p228, %s12, 1
        %s230 = smul.addr %s229, 2
        %s231 = smul.addr %s230, 4
        %s232 = scalar_lea.vmem %s2, %s231
      $region36: #{_lambda_.18} parent=23 // pred_fallthru
        _
      // Predicated region
      $region37: #{_lambda_.18} parent=23 // pred_check
        %p233 = pneg %p152
      $region38: #{_lambda_.18} parent=23 // pred_check_branch
        %235 = sbr.rel (%p233) target = $region40
      $region39: #{_lambda_.18} parent=23 // pred_region
        %p236 = scmp.lt.s32.totalorder %s12, 1
        %s237 = scalar_select %p236, %s12, 1
        %s238 = smul.addr %s237, 2
        %s239 = smul.addr %s238, 4
        %s240 = scalar_lea.vmem %s5, %s239
      $region40: #{_lambda_.18} parent=23 // pred_fallthru
        _
    $region24: #{_lambda_.18} parent=5 // pred_fallthru
      _
    %p241 = scmp.le.s32.totalorder 1, %s12
    %p242 = scmp.lt.s32.totalorder %s12, 3
    %p243 = pnand %p241, %p242
    %p244 = pneg %p243
    // Predicated region
    $region41: #{_lambda_.18} parent=5 // pred_check
      _
    $region42: #{_lambda_.18} parent=5 // pred_check_branch
      %246 = sbr.rel (%p243) target = $region44
    $region43: #{_lambda_.18} parent=5 // pred_region
      %s247 = ssub.s32 %s12, 1
      %p248 = scmp.lt.s32.totalorder %s17, 1
      %s249 = scalar_select %p248, %s17, 1
      %s250 = smul.addr %s249, 2
      %s251 = smul.addr %s250, 4
      %s252 = scalar_lea.vmem %s0, %s251
      %p253 = pneg %p38
      %p254 = pneg %p35
      %p255 = scmp.lt.s32.totalorder %s17, 1
      %s256 = scalar_select %p255, %s17, 1
      %s257 = smul.addr %s256, 2
      %s258 = smul.addr %s257, 4
      %s259 = scalar_lea.vmem %s1, %s258
      %p260 = pneg %p64
      %p261 = pneg %p61
      %p262 = scmp.lt.s32.totalorder %s17, 1
      %s263 = scalar_select %p262, %s17, 1
      %s264 = smul.addr %s263, 2
      %s265 = smul.addr %s264, 4
      %s266 = scalar_lea.vmem %s2, %s265
      %p267 = pneg %p90
      %p268 = pneg %p87
      %p269 = pneg %p111
      %p270 = pneg %p108
      %p271 = pneg %p132
      %p272 = pneg %p129
      %p273 = scmp.lt.s32.totalorder %s17, 1
      %s274 = scalar_select %p273, %s17, 1
      %s275 = smul.addr %s274, 2
      %s276 = smul.addr %s275, 4
      %s277 = scalar_lea.vmem %s5, %s276
      %p278 = pneg %p158
      %p279 = pneg %p155
      %p280 = pneg %p184
      %p281 = pneg %p181
      %p282 = scmp.lt.s32.totalorder %s17, 1
      %s283 = scalar_select %p282, %s17, 1
      %s284 = smul.addr %s283, 2
      %s285 = smul.addr %s284, 4
      %s286 = scalar_lea.vmem %s6, %s285
      %p287 = scmp.lt.s32.totalorder %s17, 1
      %s288 = scalar_select %p287, %s17, 1
      %s289 = smul.addr %s288, 2
      %s290 = smul.addr %s289, 4
      %s291 = scalar_lea.vmem %s0, %s290
      %p292 = scmp.lt.s32.totalorder %s17, 1
      %s293 = scalar_select %p292, %s17, 1
      %s294 = smul.addr %s293, 2
      %s295 = smul.addr %s294, 4
      %s296 = scalar_lea.vmem %s1, %s295
      %p297 = scmp.lt.s32.totalorder %s17, 1
      %s298 = scalar_select %p297, %s17, 1
      %s299 = smul.addr %s298, 2
      %s300 = smul.addr %s299, 4
      %s301 = scalar_lea.vmem %s2, %s300
      %p302 = scmp.lt.s32.totalorder %s17, 1
      %s303 = scalar_select %p302, %s17, 1
      %s304 = smul.addr %s303, 2
      %s305 = smul.addr %s304, 4
      %s306 = scalar_lea.vmem %s5, %s305
      %p307 = scmp.lt.s32.totalorder %s17, 1
      %s308 = scalar_select %p307, %s17, 1
      %s309 = smul.addr %s308, 2
      %s310 = smul.addr %s309, 4
      %s311 = scalar_lea.vmem %s6, %s310
      %v313 = vld [vmem:[%s291] sm:$0xf]
      %v314 = vld [vmem:[%s291 + $0x4] sm:$0xf]
      %v315 = vld [vmem:[%s296] sm:$0xf]
      %v316 = vld [vmem:[%s296 + $0x4] sm:$0xf]
      %v317 = vld [vmem:[%s301] sm:$0xf]
      %v318 = vld [vmem:[%s301 + $0x4] sm:$0xf]
      %v321 = vunpack.c.l.b16 %v313
      %v322 = vunpack.c.l.b16 %v314
      %v323 = vpack.c.b16 %v322, %v321
      %v326 = vunpack.c.l.b16 %v315
      %v327 = vunpack.c.l.b16 %v316
      %v328 = vpack.c.b16 %v327, %v326
      %vm329 = vcmask 64512
      %v331 = vsel %vm329, %v323, 0
      %v334 = vsel %vm329, %v328, 0
      %336 = vmatpush.bf16.xpose.msra.mxu0 0
      %337 = vmatpush.bf16.xpose.msra.mxu0 0
      %338 = vmatpush.bf16.xpose.msra.mxu0 0
      %339 = vmatpush.bf16.xpose.msra.mxu0 0
      %340 = vmatpush.bf16.xpose.msra.mxu0 0
      %341 = vmatpush.bf16.xpose.msra.mxu0 0
      %342 = vmatpush.bf16.xpose.msra.mxu0 0
      %343 = vmatpush.bf16.xpose.msra.mxu0 %v334
      %344 = vmatmul.bf16.gmra.mxu0 %v331
      %v345 = vpop.f32.mrf.mxu0
      %v346 = vadd.f32 0.0, %v345
      %v347 = vpop.f32.mrf.mxu0
      %v348 = vadd.f32 0.0, %v347
      %349 = vdwg.mxu0
      %v350 = vmul.f32 %v346, 0.35355338
      %v351 = vmul.f32 %v348, 0.35355338
      %vm352 = vcmask 130048
      %v353 = vsel %vm352, %v350, -inf
      %354 = vmax.xlane.f32.xlu0 %v353
      %v355 = vpop.xlane.xlu0 %354
      %v356 = vsel %vm352, %v351, -inf
      %357 = vmax.xlane.f32.xlu0 %v356
      %v358 = vpop.xlane.xlu0 %357
      %v359 = vsub.f32 %v350, %v355
      %v360 = vsub.f32 %v351, %v358
      %v361 = vmul.f32 %v359, 1.442695
      %v362 = vpow.pop %v361
      %v363 = vmul.f32 %v360, 1.442695
      %v364 = vpow.pop %v363
      %v365 = vsel %vm352, %v362, 0.0
      %366 = vadd.xlane.f32.xlu0 %v365
      %v367 = vpop.xlane.xlu0 %366
      %v368 = vsel %vm352, %v364, 0.0
      %369 = vadd.xlane.f32.xlu0 %v368
      %v370 = vpop.xlane.xlu0 %369
      %v371 = vrcp.pop %v367
      %v372 = vrcp.pop %v370
      %v373 = vmul.f32 %v362, %v371
      %v374 = vmul.f32 %v364, %v372
      %v375 = vpack.c.bf16 %v374, %v373
      %v378 = vunpack.c.l.b16 %v317
      %v379 = vunpack.c.l.b16 %v318
      %v380 = vpack.c.b16 %v379, %v378
      %v383 = vsel %vm352, %v375, 0
      %385 = vmatpush.bf16.msra.mxu0 0
      %386 = vmatpush.bf16.msra.mxu0 0
      %387 = vmatpush.bf16.msra.mxu0 0
      %388 = vmatpush.bf16.msra.mxu0 0
      %389 = vmatpush.bf16.msra.mxu0 0
      %390 = vmatpush.bf16.msra.mxu0 0
      %391 = vmatpush.bf16.msra.mxu0 0
      %392 = vmatpush.bf16.msra.mxu0 %v380
      %393 = vmatmul.bf16.gmra.mxu0 %v383
      %v394 = vpop.f32.mrf.mxu0
      %v395 = vadd.f32 0.0, %v394
      %v396 = vpop.f32.mrf.mxu0
      %v397 = vadd.f32 0.0, %v396
      %398 = vdwg.mxu0
      %399 = vrot.lane.b32.xlu0 %v323, 120
      %v400 = vpop.permute.xlu0 %399
      %401 = vrot.lane.b32.xlu0 %v328, 120
      %v402 = vpop.permute.xlu0 %401
      %v404 = vsel %vm329, %v400, 0
      %v407 = vsel %vm329, %v402, 0
      %409 = vmatpush.bf16.xpose.msra.mxu0 0
      %410 = vmatpush.bf16.xpose.msra.mxu0 0
      %411 = vmatpush.bf16.xpose.msra.mxu0 0
      %412 = vmatpush.bf16.xpose.msra.mxu0 0
      %413 = vmatpush.bf16.xpose.msra.mxu0 0
      %414 = vmatpush.bf16.xpose.msra.mxu0 0
      %415 = vmatpush.bf16.xpose.msra.mxu0 0
      %416 = vmatpush.bf16.xpose.msra.mxu0 %v407
      %417 = vmatmul.bf16.gmra.mxu0 %v404
      %v418 = vpop.f32.mrf.mxu0
      %v419 = vadd.f32 0.0, %v418
      %v420 = vpop.f32.mrf.mxu0
      %v421 = vadd.f32 0.0, %v420
      %422 = vdwg.mxu0
      %v423 = vmul.f32 %v419, 0.35355338
      %v424 = vmul.f32 %v421, 0.35355338
      %v425 = vsel %vm352, %v423, -inf
      %426 = vmax.xlane.f32.xlu0 %v425
      %v427 = vpop.xlane.xlu0 %426
      %v428 = vsel %vm352, %v424, -inf
      %429 = vmax.xlane.f32.xlu0 %v428
      %v430 = vpop.xlane.xlu0 %429
      %v431 = vsub.f32 %v423, %v427
      %v432 = vsub.f32 %v424, %v430
      %v433 = vmul.f32 %v431, 1.442695
      %v434 = vpow.pop %v433
      %v435 = vmul.f32 %v432, 1.442695
      %v436 = vpow.pop %v435
      %v437 = vsel %vm352, %v434, 0.0
      %438 = vadd.xlane.f32.xlu0 %v437
      %v439 = vpop.xlane.xlu0 %438
      %v440 = vsel %vm352, %v436, 0.0
      %441 = vadd.xlane.f32.xlu0 %v440
      %v442 = vpop.xlane.xlu0 %441
      %v443 = vrcp.pop %v439
      %v444 = vrcp.pop %v442
      %v445 = vmul.f32 %v434, %v443
      %v446 = vmul.f32 %v436, %v444
      %v447 = vpack.c.bf16 %v446, %v445
      %448 = vrot.lane.b32.xlu0 %v380, 120
      %v449 = vpop.permute.xlu0 %448
      %v452 = vsel %vm352, %v447, 0
      %454 = vmatpush.bf16.msra.mxu0 0
      %455 = vmatpush.bf16.msra.mxu0 0
      %456 = vmatpush.bf16.msra.mxu0 0
      %457 = vmatpush.bf16.msra.mxu0 0
      %458 = vmatpush.bf16.msra.mxu0 0
      %459 = vmatpush.bf16.msra.mxu0 0
      %460 = vmatpush.bf16.msra.mxu0 0
      %461 = vmatpush.bf16.msra.mxu0 %v449
      %462 = vmatmul.bf16.gmra.mxu0 %v452
      %v463 = vpop.f32.mrf.mxu0
      %v464 = vadd.f32 0.0, %v463
      %v465 = vpop.f32.mrf.mxu0
      %v466 = vadd.f32 0.0, %v465
      %467 = vdwg.mxu0
      %468 = vrot.lane.b32.xlu0 %v323, 112
      %v469 = vpop.permute.xlu0 %468
      %470 = vrot.lane.b32.xlu0 %v328, 112
      %v471 = vpop.permute.xlu0 %470
      %v473 = vsel %vm329, %v469, 0
      %v476 = vsel %vm329, %v471, 0
      %478 = vmatpush.bf16.xpose.msra.mxu0 0
      %479 = vmatpush.bf16.xpose.msra.mxu0 0
      %480 = vmatpush.bf16.xpose.msra.mxu0 0
      %481 = vmatpush.bf16.xpose.msra.mxu0 0
      %482 = vmatpush.bf16.xpose.msra.mxu0 0
      %483 = vmatpush.bf16.xpose.msra.mxu0 0
      %484 = vmatpush.bf16.xpose.msra.mxu0 0
      %485 = vmatpush.bf16.xpose.msra.mxu0 %v476
      %486 = vmatmul.bf16.gmra.mxu0 %v473
      %v487 = vpop.f32.mrf.mxu0
      %v488 = vadd.f32 0.0, %v487
      %v489 = vpop.f32.mrf.mxu0
      %v490 = vadd.f32 0.0, %v489
      %491 = vdwg.mxu0
      %v492 = vmul.f32 %v488, 0.35355338
      %v493 = vmul.f32 %v490, 0.35355338
      %v494 = vsel %vm352, %v492, -inf
      %495 = vmax.xlane.f32.xlu0 %v494
      %v496 = vpop.xlane.xlu0 %495
      %v497 = vsel %vm352, %v493, -inf
      %498 = vmax.xlane.f32.xlu0 %v497
      %v499 = vpop.xlane.xlu0 %498
      %v500 = vsub.f32 %v492, %v496
      %v501 = vsub.f32 %v493, %v499
      %v502 = vmul.f32 %v500, 1.442695
      %v503 = vpow.pop %v502
      %v504 = vmul.f32 %v501, 1.442695
      %v505 = vpow.pop %v504
      %v506 = vsel %vm352, %v503, 0.0
      %507 = vadd.xlane.f32.xlu0 %v506
      %v508 = vpop.xlane.xlu0 %507
      %v509 = vsel %vm352, %v505, 0.0
      %510 = vadd.xlane.f32.xlu0 %v509
      %v511 = vpop.xlane.xlu0 %510
      %v512 = vrcp.pop %v508
      %v513 = vrcp.pop %v511
      %v514 = vmul.f32 %v503, %v512
      %v515 = vmul.f32 %v505, %v513
      %v516 = vpack.c.bf16 %v515, %v514
      %517 = vrot.lane.b32.xlu0 %v380, 112
      %v518 = vpop.permute.xlu0 %517
      %v521 = vsel %vm352, %v516, 0
      %523 = vmatpush.bf16.msra.mxu0 0
      %524 = vmatpush.bf16.msra.mxu0 0
      %525 = vmatpush.bf16.msra.mxu0 0
      %526 = vmatpush.bf16.msra.mxu0 0
      %527 = vmatpush.bf16.msra.mxu0 0
      %528 = vmatpush.bf16.msra.mxu0 0
      %529 = vmatpush.bf16.msra.mxu0 0
      %530 = vmatpush.bf16.msra.mxu0 %v518
      %531 = vmatmul.bf16.gmra.mxu0 %v521
      %v532 = vpop.f32.mrf.mxu0
      %v533 = vadd.f32 0.0, %v532
      %v534 = vpop.f32.mrf.mxu0
      %v535 = vadd.f32 0.0, %v534
      %536 = vdwg.mxu0
      %537 = vrot.lane.b32.xlu0 %v323, 104
      %v538 = vpop.permute.xlu0 %537
      %539 = vrot.lane.b32.xlu0 %v328, 104
      %v540 = vpop.permute.xlu0 %539
      %v542 = vsel %vm329, %v538, 0
      %v545 = vsel %vm329, %v540, 0
      %547 = vmatpush.bf16.xpose.msra.mxu0 0
      %548 = vmatpush.bf16.xpose.msra.mxu0 0
      %549 = vmatpush.bf16.xpose.msra.mxu0 0
      %550 = vmatpush.bf16.xpose.msra.mxu0 0
      %551 = vmatpush.bf16.xpose.msra.mxu0 0
      %552 = vmatpush.bf16.xpose.msra.mxu0 0
      %553 = vmatpush.bf16.xpose.msra.mxu0 0
      %554 = vmatpush.bf16.xpose.msra.mxu0 %v545
      %555 = vmatmul.bf16.gmra.mxu0 %v542
      %v556 = vpop.f32.mrf.mxu0
      %v557 = vadd.f32 0.0, %v556
      %v558 = vpop.f32.mrf.mxu0
      %v559 = vadd.f32 0.0, %v558
      %560 = vdwg.mxu0
      %v561 = vmul.f32 %v557, 0.35355338
      %v562 = vmul.f32 %v559, 0.35355338
      %v563 = vsel %vm352, %v561, -inf
      %564 = vmax.xlane.f32.xlu0 %v563
      %v565 = vpop.xlane.xlu0 %564
      %v566 = vsel %vm352, %v562, -inf
      %567 = vmax.xlane.f32.xlu0 %v566
      %v568 = vpop.xlane.xlu0 %567
      %v569 = vsub.f32 %v561, %v565
      %v570 = vsub.f32 %v562, %v568
      %v571 = vmul.f32 %v569, 1.442695
      %v572 = vpow.pop %v571
      %v573 = vmul.f32 %v570, 1.442695
      %v574 = vpow.pop %v573
      %v575 = vsel %vm352, %v572, 0.0
      %576 = vadd.xlane.f32.xlu0 %v575
      %v577 = vpop.xlane.xlu0 %576
      %v578 = vsel %vm352, %v574, 0.0
      %579 = vadd.xlane.f32.xlu0 %v578
      %v580 = vpop.xlane.xlu0 %579
      %v581 = vrcp.pop %v577
      %v582 = vrcp.pop %v580
      %v583 = vmul.f32 %v572, %v581
      %v584 = vmul.f32 %v574, %v582
      %v585 = vpack.c.bf16 %v584, %v583
      %586 = vrot.lane.b32.xlu0 %v380, 104
      %v587 = vpop.permute.xlu0 %586
      %v590 = vsel %vm352, %v585, 0
      %592 = vmatpush.bf16.msra.mxu0 0
      %593 = vmatpush.bf16.msra.mxu0 0
      %594 = vmatpush.bf16.msra.mxu0 0
      %595 = vmatpush.bf16.msra.mxu0 0
      %596 = vmatpush.bf16.msra.mxu0 0
      %597 = vmatpush.bf16.msra.mxu0 0
      %598 = vmatpush.bf16.msra.mxu0 0
      %599 = vmatpush.bf16.msra.mxu0 %v587
      %600 = vmatmul.bf16.gmra.mxu0 %v590
      %v601 = vpop.f32.mrf.mxu0
      %v602 = vadd.f32 0.0, %v601
      %v603 = vpop.f32.mrf.mxu0
      %v604 = vadd.f32 0.0, %v603
      %605 = vdwg.mxu0
      %608 = vrot.lane.b32.xlu0 %v464, 8
      %v609 = vpop.permute.xlu0 %608
      %610 = vrot.lane.b32.xlu0 %v466, 8
      %v611 = vpop.permute.xlu0 %610
      %616 = vrot.lane.b32.xlu0 %v533, 16
      %v617 = vpop.permute.xlu0 %616
      %618 = vrot.lane.b32.xlu0 %v535, 16
      %v619 = vpop.permute.xlu0 %618
      %624 = vrot.lane.b32.xlu0 %v602, 24
      %v625 = vpop.permute.xlu0 %624
      %626 = vrot.lane.b32.xlu0 %v604, 24
      %v627 = vpop.permute.xlu0 %626
      %v630 = vsel %vm329, %v395, %v609
      %v631 = vsel %vm329, %v397, %v611
      %v632 = vsel %vm352, %v630, %v617
      %v633 = vsel %vm352, %v631, %v619
      %vm634 = vcmask 195584
      %v635 = vsel %vm634, %v632, %v625
      %v636 = vsel %vm634, %v633, %v627
      %v637 = vpack.c.bf16 %v636, %v635
      %v638 = vld [vmem:[%s3] sm:$0xf]
      %v639 = vld [vmem:[%s3 + $0x4] sm:$0xf]
      %v640 = vld [vmem:[%s3 + $0x8] sm:$0xf]
      %v641 = vld [vmem:[%s3 + $0xc] sm:$0xf]
      %v642 = vld [vmem:[%s4] sm:$0x1]
      %v644 = vperm.slane %v642, 0
      %v650 = vunpack.c.l.b16 %v638
      %v651 = vunpack.c.l.b16 %v639
      %v652 = vunpack.c.l.b16 %v640
      %v653 = vunpack.c.l.b16 %v641
      %v654 = vpack.c.b16 %v651, %v650
      %v655 = vpack.c.b16 %v653, %v652
      %vm658 = vcmask 261120
      %v660 = vsel %vm658, %v637, 0
      %662 = vmatpush.bf16.msra.mxu0 0
      %663 = vmatpush.bf16.msra.mxu0 0
      %664 = vmatpush.bf16.msra.mxu0 0
      %665 = vmatpush.bf16.msra.mxu0 0
      %666 = vmatpush.bf16.msra.mxu0 0
      %667 = vmatpush.bf16.msra.mxu0 0
      %668 = vmatpush.bf16.msra.mxu0 %v655
      %669 = vmatpush.bf16.msra.mxu0 %v654
      %670 = vmatmul.bf16.gmra.mxu0 %v660
      %v671 = vpop.f32.mrf.mxu0
      %v672 = vadd.f32 %v644, %v671
      %v673 = vpop.f32.mrf.mxu0
      %v674 = vadd.f32 %v644, %v673
      %675 = vdwg.mxu0
      %v676 = vld [vmem:[%s306] sm:$0xf]
      %v677 = vld [vmem:[%s306 + $0x4] sm:$0xf]
      %v678 = vunpack.c.l.bf16 %v676
      %v679 = vunpack.c.l.bf16 %v677
      %v680 = vadd.f32 %v672, %v678
      %v681 = vadd.f32 %v674, %v679
      %v682 = vpack.c.bf16 %v680, %v680
      %v683 = vpack.c.bf16 %v681, %v681
      %vm684 = vcmask 257024
      %685 = vst.msk [vmem:[%s311] sm:$0xf] %vm684, %v682
      %686 = vst.msk [vmem:[%s311 + $0x4] sm:$0xf] %vm684, %v683
      %p687 = scmp.lt.s32.totalorder %s17, 1
      %s688 = scalar_select %p687, %s17, 1
      %s689 = smul.addr %s688, 2
      %s690 = smul.addr %s689, 4
      %s691 = scalar_lea.vmem %s6, %s690
      // Predicated region
      $region45: #{_lambda_.18} parent=43 // pred_check
        %p692 = pneg %p181
      $region46: #{_lambda_.18} parent=43 // pred_check_branch
        %694 = sbr.rel (%p692) target = $region48
      $region47: #{_lambda_.18} parent=43 // pred_region
        _
      $region48: #{_lambda_.18} parent=43 // pred_fallthru
        _
    $region44: #{_lambda_.18} parent=5 // pred_fallthru
      _
    %p695 = scmp.le.s32.totalorder 2, %s12
    // Predicated region
    $region49: #{_lambda_.18} parent=5 // pred_check
      %p696 = pneg %p695
    $region50: #{_lambda_.18} parent=5 // pred_check_branch
      %698 = sbr.rel (%p696) target = $region52
    $region51: #{_lambda_.18} parent=5 // pred_region
      %s699 = ssub.s32 %s12, 2
      // Predicated region
      $region53: #{_lambda_.18} parent=51 // pred_check
        %p700 = pneg %p187
      $region54: #{_lambda_.18} parent=51 // pred_check_branch
        %702 = sbr.rel (%p700) target = $region56
      $region55: #{_lambda_.18} parent=51 // pred_region
        %p703 = scmp.lt.s32.totalorder %s18, 1
        %s704 = scalar_select %p703, %s18, 1
        %s705 = smul.addr %s704, 2
        %s706 = smul.addr %s705, 4
        %s707 = scalar_lea.vmem %s6, %s706
      $region56: #{_lambda_.18} parent=51 // pred_fallthru
        _
    $region52: #{_lambda_.18} parent=5 // pred_fallthru
      _
  $region6: #{_lambda_.18} parent=0 // loop_footer
    %s16 = sadd.s32 1, %s12
  $region7: #{_lambda_.18} parent=0 // loop_footer_branch
    %11 = sbr.rel target = $region3
  $region8: #{_lambda_.18} parent=0 // loop_exit
    _

// kernel: _lambda_.19
$region0: #{_lambda_.19}
  #allocation0 [shape = 'u32[]', space=smem, size = 0x4, offset = 0x4, fixed_abs, tag = 'smem constant byte address 0x4 - core index']
  #allocation1 [shape = 'u32[72,128]{1,0:T(1,128)}', space=vmem, size = 0x9000, scoped, tag = 'internal scratch']
  %s0 = inlined_call_operand.vmem [shape: bf16[32,32], index: 0, kind: input, shape index: {}]
  %s1 = inlined_call_operand.vmem [shape: f32[1,32], index: 1, kind: input, shape index: {}]
  %s2 = inlined_call_operand.vmem [shape: f32[1,32], index: 2, kind: input, shape index: {}]
  %s3 = inlined_call_operand.vmem [shape: bf16[32,64], index: 3, kind: input, shape index: {}]
  %s4 = inlined_call_operand.vmem [shape: f32[1,64], index: 4, kind: input, shape index: {}]
  %s5 = inlined_call_operand.vmem [shape: bf16[64,32], index: 5, kind: input, shape index: {}]
  %s6 = inlined_call_operand.vmem [shape: f32[1,32], index: 6, kind: input, shape index: {}]
  %s7 = inlined_call_operand.vmem [shape: bf16[32,32], index: 7, kind: output, shape index: {}]
  %s8 = sld [smem:[#allocation0]]
  $region38: #{_lambda_.19} parent=0
    _
  %s10 = ssub.s32 1, %s8
  %s11 = scalar_select 0, %s10, %s8
  // Predicated region
  $region2: #{_lambda_.19} parent=0 // pred_check
    _
  $region3: #{_lambda_.19} parent=0 // pred_check_branch
    %13 = sbr.rel (0) target = $region5
  $region4: #{_lambda_.19} parent=0 // pred_region
    _
  $region5: #{_lambda_.19} parent=0 // pred_fallthru
    _
  // Predicated region
  $region6: #{_lambda_.19} parent=0 // pred_check
    _
  $region7: #{_lambda_.19} parent=0 // pred_check_branch
    %15 = sbr.rel (0) target = $region9
  $region8: #{_lambda_.19} parent=0 // pred_region
    _
  $region9: #{_lambda_.19} parent=0 // pred_fallthru
    _
  // Predicated region
  $region10: #{_lambda_.19} parent=0 // pred_check
    _
  $region11: #{_lambda_.19} parent=0 // pred_check_branch
    %17 = sbr.rel (0) target = $region13
  $region12: #{_lambda_.19} parent=0 // pred_region
    _
  $region13: #{_lambda_.19} parent=0 // pred_fallthru
    _
  // Predicated region
  $region14: #{_lambda_.19} parent=0 // pred_check
    _
  $region15: #{_lambda_.19} parent=0 // pred_check_branch
    %19 = sbr.rel (0) target = $region17
  $region16: #{_lambda_.19} parent=0 // pred_region
    _
  $region17: #{_lambda_.19} parent=0 // pred_fallthru
    _
  // Predicated region
  $region18: #{_lambda_.19} parent=0 // pred_check
    _
  $region19: #{_lambda_.19} parent=0 // pred_check_branch
    %21 = sbr.rel (0) target = $region21
  $region20: #{_lambda_.19} parent=0 // pred_region
    _
  $region21: #{_lambda_.19} parent=0 // pred_fallthru
    _
  // Predicated region
  $region22: #{_lambda_.19} parent=0 // pred_check
    _
  $region23: #{_lambda_.19} parent=0 // pred_check_branch
    %23 = sbr.rel (0) target = $region25
  $region24: #{_lambda_.19} parent=0 // pred_region
    _
  $region25: #{_lambda_.19} parent=0 // pred_fallthru
    _
  // Predicated region
  $region26: #{_lambda_.19} parent=0 // pred_check
    _
  $region27: #{_lambda_.19} parent=0 // pred_check_branch
    %25 = sbr.rel (0) target = $region29
  $region28: #{_lambda_.19} parent=0 // pred_region
    _
  $region29: #{_lambda_.19} parent=0 // pred_fallthru
    _
  %v27 = vld [vmem:[%s0] sm:$0xf]
  %v28 = vld [vmem:[%s0 + $0x4] sm:$0xf]
  %v29 = vld [vmem:[%s0 + $0x8] sm:$0xf]
  %v30 = vld [vmem:[%s0 + $0xc] sm:$0xf]
  %v31 = vunpack.c.l.bf16 %v27
  %v32 = vunpack.c.l.bf16 %v28
  %v33 = vunpack.c.l.bf16 %v29
  %v34 = vunpack.c.l.bf16 %v30
  %v35 = vld [vmem:[%s1] sm:$0x1]
  %v36 = vld [vmem:[%s2] sm:$0x1]
  %vm37 = vcmask 261120
  %v38 = vsel %vm37, %v31, 0.0
  %39 = vadd.xlane.f32.xlu0 %v38
  %v40 = vpop.xlane.xlu0 %39
  %v41 = vsel %vm37, %v32, 0.0
  %42 = vadd.xlane.f32.xlu0 %v41
  %v43 = vpop.xlane.xlu0 %42
  %v44 = vsel %vm37, %v33, 0.0
  %45 = vadd.xlane.f32.xlu0 %v44
  %v46 = vpop.xlane.xlu0 %45
  %v47 = vsel %vm37, %v34, 0.0
  %48 = vadd.xlane.f32.xlu0 %v47
  %v49 = vpop.xlane.xlu0 %48
  %v50 = vrcp.pop 32.0
  %v51 = vmul.f32 32.0, %v50
  %v52 = vsub.f32 1.0, %v51
  %v53 = vmul.f32 %v50, %v52
  %v54 = vadd.f32 %v50, %v53
  %vm55 = vweird.f32 %v50
  %v56 = vsel %vm55, %v50, %v54
  %v57 = vmul.f32 %v40, %v56
  %v58 = vmul.f32 %v43, %v56
  %v59 = vmul.f32 %v46, %v56
  %v60 = vmul.f32 %v49, %v56
  %v61 = vsub.f32 %v31, %v57
  %v62 = vsub.f32 %v32, %v58
  %v63 = vsub.f32 %v33, %v59
  %v64 = vsub.f32 %v34, %v60
  %v65 = vmul.f32 %v61, %v61
  %v66 = vmul.f32 %v62, %v62
  %v67 = vmul.f32 %v63, %v63
  %v68 = vmul.f32 %v64, %v64
  %v69 = vsel %vm37, %v65, 0.0
  %70 = vadd.xlane.f32.xlu0 %v69
  %v71 = vpop.xlane.xlu0 %70
  %v72 = vsel %vm37, %v66, 0.0
  %73 = vadd.xlane.f32.xlu0 %v72
  %v74 = vpop.xlane.xlu0 %73
  %v75 = vsel %vm37, %v67, 0.0
  %76 = vadd.xlane.f32.xlu0 %v75
  %v77 = vpop.xlane.xlu0 %76
  %v78 = vsel %vm37, %v68, 0.0
  %79 = vadd.xlane.f32.xlu0 %v78
  %v80 = vpop.xlane.xlu0 %79
  %v81 = vmul.f32 %v71, %v56
  %v82 = vmul.f32 %v74, %v56
  %v83 = vmul.f32 %v77, %v56
  %v84 = vmul.f32 %v80, %v56
  %v85 = vadd.f32 %v81, 1e-06
  %v86 = vadd.f32 %v82, 1e-06
  %v87 = vadd.f32 %v83, 1e-06
  %v88 = vadd.f32 %v84, 1e-06
  %v89 = vrsqrt.pop %v85
  %v90 = vmul.f32 %v89, %v85
  %v91 = vmul.f32 %v90, %v89
  %v92 = vmul.f32 0.5, %v91
  %v93 = vsub.f32 1.5, %v92
  %v94 = vmul.f32 %v89, %v93
  %vm95 = vweird.f32 %v85
  %vm96 = vweird.f32 %v89
  %vm97 = vmor %vm95, %vm96
  %v98 = vsel %vm97, %v89, %v94
  %v99 = vrsqrt.pop %v86
  %v100 = vmul.f32 %v99, %v86
  %v101 = vmul.f32 %v100, %v99
  %v102 = vmul.f32 0.5, %v101
  %v103 = vsub.f32 1.5, %v102
  %v104 = vmul.f32 %v99, %v103
  %vm105 = vweird.f32 %v86
  %vm106 = vweird.f32 %v99
  %vm107 = vmor %vm105, %vm106
  %v108 = vsel %vm107, %v99, %v104
  %v109 = vrsqrt.pop %v87
  %v110 = vmul.f32 %v109, %v87
  %v111 = vmul.f32 %v110, %v109
  %v112 = vmul.f32 0.5, %v111
  %v113 = vsub.f32 1.5, %v112
  %v114 = vmul.f32 %v109, %v113
  %vm115 = vweird.f32 %v87
  %vm116 = vweird.f32 %v109
  %vm117 = vmor %vm115, %vm116
  %v118 = vsel %vm117, %v109, %v114
  %v119 = vrsqrt.pop %v88
  %v120 = vmul.f32 %v119, %v88
  %v121 = vmul.f32 %v120, %v119
  %v122 = vmul.f32 0.5, %v121
  %v123 = vsub.f32 1.5, %v122
  %v124 = vmul.f32 %v119, %v123
  %vm125 = vweird.f32 %v88
  %vm126 = vweird.f32 %v119
  %vm127 = vmor %vm125, %vm126
  %v128 = vsel %vm127, %v119, %v124
  %v129 = vmul.f32 %v61, %v98
  %v130 = vmul.f32 %v62, %v108
  %v131 = vmul.f32 %v63, %v118
  %v132 = vmul.f32 %v64, %v128
  %v134 = vperm.slane %v35, 0
  %v136 = vmul.f32 %v129, %v134
  %v137 = vmul.f32 %v130, %v134
  %v138 = vmul.f32 %v131, %v134
  %v139 = vmul.f32 %v132, %v134
  %v141 = vperm.slane %v36, 0
  %v143 = vadd.f32 %v136, %v141
  %v144 = vadd.f32 %v137, %v141
  %v145 = vadd.f32 %v138, %v141
  %v146 = vadd.f32 %v139, %v141
  %v147 = vpack.c.bf16 %v144, %v143
  %v148 = vpack.c.bf16 %v146, %v145
  %v149 = vld [vmem:[%s3] sm:$0xf]
  %v150 = vld [vmem:[%s3 + $0x4] sm:$0xf]
  %v151 = vld [vmem:[%s3 + $0x8] sm:$0xf]
  %v152 = vld [vmem:[%s3 + $0xc] sm:$0xf]
  %v153 = vld [vmem:[%s4] sm:$0x1]
  %v155 = vperm.slane %v153, 0
  %v161 = vunpack.c.l.b16 %v149
  %v162 = vunpack.c.l.b16 %v150
  %v163 = vunpack.c.l.b16 %v151
  %v164 = vunpack.c.l.b16 %v152
  %v165 = vpack.c.b16 %v162, %v161
  %v166 = vpack.c.b16 %v164, %v163
  %v170 = vsel %vm37, %v147, 0
  %v173 = vsel %vm37, %v148, 0
  %175 = vmatpush.bf16.msra.mxu0 0
  %176 = vmatpush.bf16.msra.mxu0 0
  %177 = vmatpush.bf16.msra.mxu0 0
  %178 = vmatpush.bf16.msra.mxu0 0
  %179 = vmatpush.bf16.msra.mxu0 0
  %180 = vmatpush.bf16.msra.mxu0 0
  %181 = vmatpush.bf16.msra.mxu0 %v166
  %182 = vmatpush.bf16.msra.mxu0 %v165
  %183 = vmatmul.bf16.gmra.mxu0 %v170
  %v184 = vpop.f32.mrf.mxu0
  %v185 = vadd.f32 %v155, %v184
  %v186 = vpop.f32.mrf.mxu0
  %v187 = vadd.f32 %v155, %v186
  %188 = vmatmul.bf16.gmra.mxu0 %v173
  %v189 = vpop.f32.mrf.mxu0
  %v190 = vadd.f32 %v155, %v189
  %v191 = vpop.f32.mrf.mxu0
  %v192 = vadd.f32 %v155, %v191
  %193 = vdwg.mxu0
  %v194 = vmul.f32 %v185, 0.5
  %v195 = vmul.f32 %v187, 0.5
  %v196 = vmul.f32 %v190, 0.5
  %v197 = vmul.f32 %v192, 0.5
  %v198 = vmul.f32 %v185, 0.044715
  %v199 = vmul.f32 %v187, 0.044715
  %v200 = vmul.f32 %v190, 0.044715
  %v201 = vmul.f32 %v192, 0.044715
  %v202 = vmul.f32 %v198, %v185
  %v203 = vmul.f32 %v199, %v187
  %v204 = vmul.f32 %v200, %v190
  %v205 = vmul.f32 %v201, %v192
  %v206 = vmul.f32 %v202, %v185
  %v207 = vmul.f32 %v203, %v187
  %v208 = vmul.f32 %v204, %v190
  %v209 = vmul.f32 %v205, %v192
  %v210 = vadd.f32 %v185, %v206
  %v211 = vadd.f32 %v187, %v207
  %v212 = vadd.f32 %v190, %v208
  %v213 = vadd.f32 %v192, %v209
  %v214 = vmul.f32 %v210, 0.7978846
  %v215 = vmul.f32 %v211, 0.7978846
  %v216 = vmul.f32 %v212, 0.7978846
  %v217 = vmul.f32 %v213, 0.7978846
  %v218 = vtanh.pop %v214
  %v219 = vtanh.pop %v215
  %v220 = vtanh.pop %v216
  %v221 = vtanh.pop %v217
  %v222 = vadd.f32 %v218, 1.0
  %v223 = vadd.f32 %v219, 1.0
  %v224 = vadd.f32 %v220, 1.0
  %v225 = vadd.f32 %v221, 1.0
  %v226 = vmul.f32 %v194, %v222
  %v227 = vmul.f32 %v195, %v223
  %v228 = vmul.f32 %v196, %v224
  %v229 = vmul.f32 %v197, %v225
  %v230 = vpack.c.bf16 %v227, %v226
  %v231 = vpack.c.bf16 %v229, %v228
  %v232 = vld [vmem:[%s5] sm:$0xf]
  %v233 = vld [vmem:[%s5 + $0x4] sm:$0xf]
  %v234 = vld [vmem:[%s5 + $0x8] sm:$0xf]
  %v235 = vld [vmem:[%s5 + $0xc] sm:$0xf]
  %v236 = vld [vmem:[%s5 + $0x10] sm:$0xf]
  %v237 = vld [vmem:[%s5 + $0x14] sm:$0xf]
  %v238 = vld [vmem:[%s5 + $0x18] sm:$0xf]
  %v239 = vld [vmem:[%s5 + $0x1c] sm:$0xf]
  %v248 = vunpack.c.l.b16 %v232
  %v249 = vunpack.c.l.b16 %v233
  %v250 = vunpack.c.l.b16 %v234
  %v251 = vunpack.c.l.b16 %v235
  %v252 = vunpack.c.l.b16 %v236
  %v253 = vunpack.c.l.b16 %v237
  %v254 = vunpack.c.l.b16 %v238
  %v255 = vunpack.c.l.b16 %v239
  %v256 = vpack.c.b16 %v249, %v248
  %v257 = vpack.c.b16 %v251, %v250
  %v258 = vpack.c.b16 %v253, %v252
  %v259 = vpack.c.b16 %v255, %v254
  %vm264 = vcmask 523264
  %v266 = vsel %vm264, %v230, 0
  %v269 = vsel %vm264, %v231, 0
  %271 = vmatpush.bf16.msra.mxu0 0
  %272 = vmatpush.bf16.msra.mxu0 0
  %273 = vmatpush.bf16.msra.mxu0 0
  %274 = vmatpush.bf16.msra.mxu0 0
  %275 = vmatpush.bf16.msra.mxu0 %v259
  %276 = vmatpush.bf16.msra.mxu0 %v258
  %277 = vmatpush.bf16.msra.mxu0 %v257
  %278 = vmatpush.bf16.msra.mxu0 %v256
  %279 = vmatmul.bf16.gmra.mxu0 %v266
  %v280 = vpop.f32.mrf.mxu0
  %v281 = vadd.f32 0.0, %v280
  %v282 = vpop.f32.mrf.mxu0
  %v283 = vadd.f32 0.0, %v282
  %284 = vmatmul.bf16.gmra.mxu0 %v269
  %v285 = vpop.f32.mrf.mxu0
  %v286 = vadd.f32 0.0, %v285
  %v287 = vpop.f32.mrf.mxu0
  %v288 = vadd.f32 0.0, %v287
  %289 = vdwg.mxu0
  %v290 = vadd.f32 %v31, %v281
  %v291 = vadd.f32 %v32, %v283
  %v292 = vadd.f32 %v33, %v286
  %v293 = vadd.f32 %v34, %v288
  %v294 = vld [vmem:[%s6] sm:$0x1]
  %v296 = vperm.slane %v294, 0
  %v298 = vadd.f32 %v290, %v296
  %v299 = vadd.f32 %v291, %v296
  %v300 = vadd.f32 %v292, %v296
  %v301 = vadd.f32 %v293, %v296
  %v302 = vpack.c.bf16 %v298, %v298
  %v303 = vpack.c.bf16 %v299, %v299
  %v304 = vpack.c.bf16 %v300, %v300
  %v305 = vpack.c.bf16 %v301, %v301
  %vm306 = vcmask 257024
  %307 = vst.msk [vmem:[%s7] sm:$0xf] %vm306, %v302
  %308 = vst.msk [vmem:[%s7 + $0x4] sm:$0xf] %vm306, %v303
  %309 = vst.msk [vmem:[%s7 + $0x8] sm:$0xf] %vm306, %v304
  %310 = vst.msk [vmem:[%s7 + $0xc] sm:$0xf] %vm306, %v305
  // Predicated region
  $region30: #{_lambda_.19} parent=0 // pred_check
    _
  $region31: #{_lambda_.19} parent=0 // pred_check_branch
    %312 = sbr.rel (0) target = $region33
  $region32: #{_lambda_.19} parent=0 // pred_region
    _
  $region33: #{_lambda_.19} parent=0 // pred_fallthru
    _
  // Predicated region
  $region34: #{_lambda_.19} parent=0 // pred_check
    _
  $region35: #{_lambda_.19} parent=0 // pred_check_branch
    %314 = sbr.rel (0) target = $region37
  $region36: #{_lambda_.19} parent=0 // pred_region
    _
  $region37: #{_lambda_.19} parent=0 // pred_fallthru
    _

// kernel: _lambda_.23
$region0: #{_lambda_.23}
  #allocation0 [shape = 'u32[]', space=smem, size = 0x4, offset = 0x4, fixed_abs, tag = 'smem constant byte address 0x4 - core index']
  #allocation1 [shape = 'u32[72,128]{1,0:T(1,128)}', space=vmem, size = 0x9000, scoped, tag = 'internal scratch']
  %s0 = inlined_call_operand.vmem [shape: bf16[32,32], index: 0, kind: input, shape index: {}]
  %s1 = inlined_call_operand.vmem [shape: f32[1,32], index: 1, kind: input, shape index: {}]
  %s2 = inlined_call_operand.vmem [shape: f32[1,32], index: 2, kind: input, shape index: {}]
  %s3 = inlined_call_operand.vmem [shape: bf16[32,32], index: 3, kind: output, shape index: {}]
  %s4 = sld [smem:[#allocation0]]
  $region22: #{_lambda_.23} parent=0
    _
  %s6 = ssub.s32 1, %s4
  %s7 = scalar_select 0, %s6, %s4
  // Predicated region
  $region2: #{_lambda_.23} parent=0 // pred_check
    _
  $region3: #{_lambda_.23} parent=0 // pred_check_branch
    %9 = sbr.rel (0) target = $region5
  $region4: #{_lambda_.23} parent=0 // pred_region
    _
  $region5: #{_lambda_.23} parent=0 // pred_fallthru
    _
  // Predicated region
  $region6: #{_lambda_.23} parent=0 // pred_check
    _
  $region7: #{_lambda_.23} parent=0 // pred_check_branch
    %11 = sbr.rel (0) target = $region9
  $region8: #{_lambda_.23} parent=0 // pred_region
    _
  $region9: #{_lambda_.23} parent=0 // pred_fallthru
    _
  // Predicated region
  $region10: #{_lambda_.23} parent=0 // pred_check
    _
  $region11: #{_lambda_.23} parent=0 // pred_check_branch
    %13 = sbr.rel (0) target = $region13
  $region12: #{_lambda_.23} parent=0 // pred_region
    _
  $region13: #{_lambda_.23} parent=0 // pred_fallthru
    _
  %v14 = vld [vmem:[%s0] sm:$0xf]
  %v15 = vld [vmem:[%s0 + $0x4] sm:$0xf]
  %v16 = vld [vmem:[%s0 + $0x8] sm:$0xf]
  %v17 = vld [vmem:[%s0 + $0xc] sm:$0xf]
  %v18 = vunpack.c.l.bf16 %v14
  %v19 = vunpack.c.l.bf16 %v15
  %v20 = vunpack.c.l.bf16 %v16
  %v21 = vunpack.c.l.bf16 %v17
  %v22 = vld [vmem:[%s1] sm:$0x1]
  %v23 = vld [vmem:[%s2] sm:$0x1]
  %vm24 = vcmask 261120
  %v25 = vsel %vm24, %v18, 0.0
  %26 = vadd.xlane.f32.xlu0 %v25
  %v27 = vpop.xlane.xlu0 %26
  %v28 = vsel %vm24, %v19, 0.0
  %29 = vadd.xlane.f32.xlu0 %v28
  %v30 = vpop.xlane.xlu0 %29
  %v31 = vsel %vm24, %v20, 0.0
  %32 = vadd.xlane.f32.xlu0 %v31
  %v33 = vpop.xlane.xlu0 %32
  %v34 = vsel %vm24, %v21, 0.0
  %35 = vadd.xlane.f32.xlu0 %v34
  %v36 = vpop.xlane.xlu0 %35
  %v37 = vrcp.pop 32.0
  %v38 = vmul.f32 32.0, %v37
  %v39 = vsub.f32 1.0, %v38
  %v40 = vmul.f32 %v37, %v39
  %v41 = vadd.f32 %v37, %v40
  %vm42 = vweird.f32 %v37
  %v43 = vsel %vm42, %v37, %v41
  %v44 = vmul.f32 %v27, %v43
  %v45 = vmul.f32 %v30, %v43
  %v46 = vmul.f32 %v33, %v43
  %v47 = vmul.f32 %v36, %v43
  %v48 = vsub.f32 %v18, %v44
  %v49 = vsub.f32 %v19, %v45
  %v50 = vsub.f32 %v20, %v46
  %v51 = vsub.f32 %v21, %v47
  %v52 = vmul.f32 %v48, %v48
  %v53 = vmul.f32 %v49, %v49
  %v54 = vmul.f32 %v50, %v50
  %v55 = vmul.f32 %v51, %v51
  %v56 = vsel %vm24, %v52, 0.0
  %57 = vadd.xlane.f32.xlu0 %v56
  %v58 = vpop.xlane.xlu0 %57
  %v59 = vsel %vm24, %v53, 0.0
  %60 = vadd.xlane.f32.xlu0 %v59
  %v61 = vpop.xlane.xlu0 %60
  %v62 = vsel %vm24, %v54, 0.0
  %63 = vadd.xlane.f32.xlu0 %v62
  %v64 = vpop.xlane.xlu0 %63
  %v65 = vsel %vm24, %v55, 0.0
  %66 = vadd.xlane.f32.xlu0 %v65
  %v67 = vpop.xlane.xlu0 %66
  %v68 = vmul.f32 %v58, %v43
  %v69 = vmul.f32 %v61, %v43
  %v70 = vmul.f32 %v64, %v43
  %v71 = vmul.f32 %v67, %v43
  %v72 = vadd.f32 %v68, 1e-06
  %v73 = vadd.f32 %v69, 1e-06
  %v74 = vadd.f32 %v70, 1e-06
  %v75 = vadd.f32 %v71, 1e-06
  %v76 = vrsqrt.pop %v72
  %v77 = vmul.f32 %v76, %v72
  %v78 = vmul.f32 %v77, %v76
  %v79 = vmul.f32 0.5, %v78
  %v80 = vsub.f32 1.5, %v79
  %v81 = vmul.f32 %v76, %v80
  %vm82 = vweird.f32 %v72
  %vm83 = vweird.f32 %v76
  %vm84 = vmor %vm82, %vm83
  %v85 = vsel %vm84, %v76, %v81
  %v86 = vrsqrt.pop %v73
  %v87 = vmul.f32 %v86, %v73
  %v88 = vmul.f32 %v87, %v86
  %v89 = vmul.f32 0.5, %v88
  %v90 = vsub.f32 1.5, %v89
  %v91 = vmul.f32 %v86, %v90
  %vm92 = vweird.f32 %v73
  %vm93 = vweird.f32 %v86
  %vm94 = vmor %vm92, %vm93
  %v95 = vsel %vm94, %v86, %v91
  %v96 = vrsqrt.pop %v74
  %v97 = vmul.f32 %v96, %v74
  %v98 = vmul.f32 %v97, %v96
  %v99 = vmul.f32 0.5, %v98
  %v100 = vsub.f32 1.5, %v99
  %v101 = vmul.f32 %v96, %v100
  %vm102 = vweird.f32 %v74
  %vm103 = vweird.f32 %v96
  %vm104 = vmor %vm102, %vm103
  %v105 = vsel %vm104, %v96, %v101
  %v106 = vrsqrt.pop %v75
  %v107 = vmul.f32 %v106, %v75
  %v108 = vmul.f32 %v107, %v106
  %v109 = vmul.f32 0.5, %v108
  %v110 = vsub.f32 1.5, %v109
  %v111 = vmul.f32 %v106, %v110
  %vm112 = vweird.f32 %v75
  %vm113 = vweird.f32 %v106
  %vm114 = vmor %vm112, %vm113
  %v115 = vsel %vm114, %v106, %v111
  %v116 = vmul.f32 %v48, %v85
  %v117 = vmul.f32 %v49, %v95
  %v118 = vmul.f32 %v50, %v105
  %v119 = vmul.f32 %v51, %v115
  %v121 = vperm.slane %v22, 0
  %v123 = vmul.f32 %v116, %v121
  %v124 = vmul.f32 %v117, %v121
  %v125 = vmul.f32 %v118, %v121
  %v126 = vmul.f32 %v119, %v121
  %v128 = vperm.slane %v23, 0
  %v130 = vadd.f32 %v123, %v128
  %v131 = vadd.f32 %v124, %v128
  %v132 = vadd.f32 %v125, %v128
  %v133 = vadd.f32 %v126, %v128
  %v134 = vpack.c.bf16 %v130, %v130
  %v135 = vpack.c.bf16 %v131, %v131
  %v136 = vpack.c.bf16 %v132, %v132
  %v137 = vpack.c.bf16 %v133, %v133
  %vm138 = vcmask 257024
  %139 = vst.msk [vmem:[%s3] sm:$0xf] %vm138, %v134
  %140 = vst.msk [vmem:[%s3 + $0x4] sm:$0xf] %vm138, %v135
  %141 = vst.msk [vmem:[%s3 + $0x8] sm:$0xf] %vm138, %v136
  %142 = vst.msk [vmem:[%s3 + $0xc] sm:$0xf] %vm138, %v137
  // Predicated region
  $region14: #{_lambda_.23} parent=0 // pred_check
    _
  $region15: #{_lambda_.23} parent=0 // pred_check_branch
    %144 = sbr.rel (0) target = $region17
  $region16: #{_lambda_.23} parent=0 // pred_region
    _
  $region17: #{_lambda_.23} parent=0 // pred_fallthru
    _
  // Predicated region
  $region18: #{_lambda_.23} parent=0 // pred_check
    _
  $region19: #{_lambda_.23} parent=0 // pred_check_branch
    %146 = sbr.rel (0) target = $region21
  $region20: #{_lambda_.23} parent=0 // pred_region
    _
  $region21: #{_lambda_.23} parent=0 // pred_fallthru
    _

// kernel: _lambda_.17
$region0: #{_lambda_.17}
  #allocation0 [shape = 'u32[]', space=smem, size = 0x4, offset = 0x4, fixed_abs, tag = 'smem constant byte address 0x4 - core index']
  #allocation1 [shape = 'u32[72,128]{1,0:T(1,128)}', space=vmem, size = 0x9000, scoped, tag = 'internal scratch']
  %s0 = inlined_call_operand.vmem [shape: bf16[32,32], index: 0, kind: input, shape index: {}]
  %s1 = inlined_call_operand.vmem [shape: f32[1,32], index: 1, kind: input, shape index: {}]
  %s2 = inlined_call_operand.vmem [shape: f32[1,32], index: 2, kind: input, shape index: {}]
  %s3 = inlined_call_operand.vmem [shape: bf16[32,32], index: 3, kind: input, shape index: {}]
  %s4 = inlined_call_operand.vmem [shape: f32[1,32], index: 4, kind: input, shape index: {}]
  %s5 = inlined_call_operand.vmem [shape: bf16[32,32], index: 5, kind: input, shape index: {}]
  %s6 = inlined_call_operand.vmem [shape: f32[1,32], index: 6, kind: input, shape index: {}]
  %s7 = inlined_call_operand.vmem [shape: bf16[32,32], index: 7, kind: input, shape index: {}]
  %s8 = inlined_call_operand.vmem [shape: f32[1,32], index: 8, kind: input, shape index: {}]
  %s9 = inlined_call_operand.vmem [shape: bf16[32,32], index: 9, kind: output, shape index: {0}]
  %s10 = inlined_call_operand.vmem [shape: bf16[32,32], index: 10, kind: output, shape index: {1}]
  %s11 = inlined_call_operand.vmem [shape: bf16[32,32], index: 11, kind: output, shape index: {2}]
  %12 = xla_tuple %s9, %s10, %s11
  %s13 = sld [smem:[#allocation0]]
  $region62: #{_lambda_.17} parent=0
    _
  %s15 = ssub.s32 1, %s13
  %s16 = scalar_select 0, %s15, %s13
  // Predicated region
  $region2: #{_lambda_.17} parent=0 // pred_check
    _
  $region3: #{_lambda_.17} parent=0 // pred_check_branch
    %18 = sbr.rel (0) target = $region5
  $region4: #{_lambda_.17} parent=0 // pred_region
    _
  $region5: #{_lambda_.17} parent=0 // pred_fallthru
    _
  // Predicated region
  $region6: #{_lambda_.17} parent=0 // pred_check
    _
  $region7: #{_lambda_.17} parent=0 // pred_check_branch
    %20 = sbr.rel (0) target = $region9
  $region8: #{_lambda_.17} parent=0 // pred_region
    _
  $region9: #{_lambda_.17} parent=0 // pred_fallthru
    _
  // Predicated region
  $region10: #{_lambda_.17} parent=0 // pred_check
    _
  $region11: #{_lambda_.17} parent=0 // pred_check_branch
    %22 = sbr.rel (0) target = $region13
  $region12: #{_lambda_.17} parent=0 // pred_region
    _
  $region13: #{_lambda_.17} parent=0 // pred_fallthru
    _
  // Predicated region
  $region14: #{_lambda_.17} parent=0 // pred_check
    _
  $region15: #{_lambda_.17} parent=0 // pred_check_branch
    %24 = sbr.rel (0) target = $region17
  $region16: #{_lambda_.17} parent=0 // pred_region
    _
  $region17: #{_lambda_.17} parent=0 // pred_fallthru
    _
  // Predicated region
  $region18: #{_lambda_.17} parent=0 // pred_check
    _
  $region19: #{_lambda_.17} parent=0 // pred_check_branch
    %26 = sbr.rel (0) target = $region21
  $region20: #{_lambda_.17} parent=0 // pred_region
    _
  $region21: #{_lambda_.17} parent=0 // pred_fallthru
    _
  // Predicated region
  $region22: #{_lambda_.17} parent=0 // pred_check
    _
  $region23: #{_lambda_.17} parent=0 // pred_check_branch
    %28 = sbr.rel (0) target = $region25
  $region24: #{_lambda_.17} parent=0 // pred_region
    _
  $region25: #{_lambda_.17} parent=0 // pred_fallthru
    _
  // Predicated region
  $region26: #{_lambda_.17} parent=0 // pred_check
    _
  $region27: #{_lambda_.17} parent=0 // pred_check_branch
    %30 = sbr.rel (0) target = $region29
  $region28: #{_lambda_.17} parent=0 // pred_region
    _
  $region29: #{_lambda_.17} parent=0 // pred_fallthru
    _
  // Predicated region
  $region30: #{_lambda_.17} parent=0 // pred_check
    _
  $region31: #{_lambda_.17} parent=0 // pred_check_branch
    %32 = sbr.rel (0) target = $region33
  $region32: #{_lambda_.17} parent=0 // pred_region
    _
  $region33: #{_lambda_.17} parent=0 // pred_fallthru
    _
  // Predicated region
  $region34: #{_lambda_.17} parent=0 // pred_check
    _
  $region35: #{_lambda_.17} parent=0 // pred_check_branch
    %34 = sbr.rel (0) target = $region37
  $region36: #{_lambda_.17} parent=0 // pred_region
    _
  $region37: #{_lambda_.17} parent=0 // pred_fallthru
    _
  %v36 = vld [vmem:[%s0] sm:$0xf]
  %v37 = vld [vmem:[%s0 + $0x4] sm:$0xf]
  %v38 = vld [vmem:[%s0 + $0x8] sm:$0xf]
  %v39 = vld [vmem:[%s0 + $0xc] sm:$0xf]
  %v40 = vunpack.c.l.bf16 %v36
  %v41 = vunpack.c.l.bf16 %v37
  %v42 = vunpack.c.l.bf16 %v38
  %v43 = vunpack.c.l.bf16 %v39
  %v44 = vld [vmem:[%s1] sm:$0x1]
  %v45 = vld [vmem:[%s2] sm:$0x1]
  %vm46 = vcmask 261120
  %v47 = vsel %vm46, %v40, 0.0
  %48 = vadd.xlane.f32.xlu0 %v47
  %v49 = vpop.xlane.xlu0 %48
  %v50 = vsel %vm46, %v41, 0.0
  %51 = vadd.xlane.f32.xlu0 %v50
  %v52 = vpop.xlane.xlu0 %51
  %v53 = vsel %vm46, %v42, 0.0
  %54 = vadd.xlane.f32.xlu0 %v53
  %v55 = vpop.xlane.xlu0 %54
  %v56 = vsel %vm46, %v43, 0.0
  %57 = vadd.xlane.f32.xlu0 %v56
  %v58 = vpop.xlane.xlu0 %57
  %v59 = vrcp.pop 32.0
  %v60 = vmul.f32 32.0, %v59
  %v61 = vsub.f32 1.0, %v60
  %v62 = vmul.f32 %v59, %v61
  %v63 = vadd.f32 %v59, %v62
  %vm64 = vweird.f32 %v59
  %v65 = vsel %vm64, %v59, %v63
  %v66 = vmul.f32 %v49, %v65
  %v67 = vmul.f32 %v52, %v65
  %v68 = vmul.f32 %v55, %v65
  %v69 = vmul.f32 %v58, %v65
  %v70 = vsub.f32 %v40, %v66
  %v71 = vsub.f32 %v41, %v67
  %v72 = vsub.f32 %v42, %v68
  %v73 = vsub.f32 %v43, %v69
  %v74 = vmul.f32 %v70, %v70
  %v75 = vmul.f32 %v71, %v71
  %v76 = vmul.f32 %v72, %v72
  %v77 = vmul.f32 %v73, %v73
  %v78 = vsel %vm46, %v74, 0.0
  %79 = vadd.xlane.f32.xlu0 %v78
  %v80 = vpop.xlane.xlu0 %79
  %v81 = vsel %vm46, %v75, 0.0
  %82 = vadd.xlane.f32.xlu0 %v81
  %v83 = vpop.xlane.xlu0 %82
  %v84 = vsel %vm46, %v76, 0.0
  %85 = vadd.xlane.f32.xlu0 %v84
  %v86 = vpop.xlane.xlu0 %85
  %v87 = vsel %vm46, %v77, 0.0
  %88 = vadd.xlane.f32.xlu0 %v87
  %v89 = vpop.xlane.xlu0 %88
  %v90 = vmul.f32 %v80, %v65
  %v91 = vmul.f32 %v83, %v65
  %v92 = vmul.f32 %v86, %v65
  %v93 = vmul.f32 %v89, %v65
  %v94 = vadd.f32 %v90, 1e-06
  %v95 = vadd.f32 %v91, 1e-06
  %v96 = vadd.f32 %v92, 1e-06
  %v97 = vadd.f32 %v93, 1e-06
  %v98 = vrsqrt.pop %v94
  %v99 = vmul.f32 %v98, %v94
  %v100 = vmul.f32 %v99, %v98
  %v101 = vmul.f32 0.5, %v100
  %v102 = vsub.f32 1.5, %v101
  %v103 = vmul.f32 %v98, %v102
  %vm104 = vweird.f32 %v94
  %vm105 = vweird.f32 %v98
  %vm106 = vmor %vm104, %vm105
  %v107 = vsel %vm106, %v98, %v103
  %v108 = vrsqrt.pop %v95
  %v109 = vmul.f32 %v108, %v95
  %v110 = vmul.f32 %v109, %v108
  %v111 = vmul.f32 0.5, %v110
  %v112 = vsub.f32 1.5, %v111
  %v113 = vmul.f32 %v108, %v112
  %vm114 = vweird.f32 %v95
  %vm115 = vweird.f32 %v108
  %vm116 = vmor %vm114, %vm115
  %v117 = vsel %vm116, %v108, %v113
  %v118 = vrsqrt.pop %v96
  %v119 = vmul.f32 %v118, %v96
  %v120 = vmul.f32 %v119, %v118
  %v121 = vmul.f32 0.5, %v120
  %v122 = vsub.f32 1.5, %v121
  %v123 = vmul.f32 %v118, %v122
  %vm124 = vweird.f32 %v96
  %vm125 = vweird.f32 %v118
  %vm126 = vmor %vm124, %vm125
  %v127 = vsel %vm126, %v118, %v123
  %v128 = vrsqrt.pop %v97
  %v129 = vmul.f32 %v128, %v97
  %v130 = vmul.f32 %v129, %v128
  %v131 = vmul.f32 0.5, %v130
  %v132 = vsub.f32 1.5, %v131
  %v133 = vmul.f32 %v128, %v132
  %vm134 = vweird.f32 %v97
  %vm135 = vweird.f32 %v128
  %vm136 = vmor %vm134, %vm135
  %v137 = vsel %vm136, %v128, %v133
  %v138 = vmul.f32 %v70, %v107
  %v139 = vmul.f32 %v71, %v117
  %v140 = vmul.f32 %v72, %v127
  %v141 = vmul.f32 %v73, %v137
  %v143 = vperm.slane %v44, 0
  %v145 = vmul.f32 %v138, %v143
  %v146 = vmul.f32 %v139, %v143
  %v147 = vmul.f32 %v140, %v143
  %v148 = vmul.f32 %v141, %v143
  %v150 = vperm.slane %v45, 0
  %v152 = vadd.f32 %v145, %v150
  %v153 = vadd.f32 %v146, %v150
  %v154 = vadd.f32 %v147, %v150
  %v155 = vadd.f32 %v148, %v150
  %v156 = vpack.c.bf16 %v153, %v152
  %v157 = vpack.c.bf16 %v155, %v154
  %v158 = vld [vmem:[%s3] sm:$0xf]
  %v159 = vld [vmem:[%s3 + $0x4] sm:$0xf]
  %v160 = vld [vmem:[%s3 + $0x8] sm:$0xf]
  %v161 = vld [vmem:[%s3 + $0xc] sm:$0xf]
  %v162 = vld [vmem:[%s4] sm:$0x1]
  %v164 = vperm.slane %v162, 0
  %v170 = vunpack.c.l.b16 %v158
  %v171 = vunpack.c.l.b16 %v159
  %v172 = vunpack.c.l.b16 %v160
  %v173 = vunpack.c.l.b16 %v161
  %v174 = vpack.c.b16 %v171, %v170
  %v175 = vpack.c.b16 %v173, %v172
  %v179 = vsel %vm46, %v156, 0
  %v182 = vsel %vm46, %v157, 0
  %184 = vmatpush.bf16.msra.mxu0 0
  %185 = vmatpush.bf16.msra.mxu0 0
  %186 = vmatpush.bf16.msra.mxu0 0
  %187 = vmatpush.bf16.msra.mxu0 0
  %188 = vmatpush.bf16.msra.mxu0 0
  %189 = vmatpush.bf16.msra.mxu0 0
  %190 = vmatpush.bf16.msra.mxu0 %v175
  %191 = vmatpush.bf16.msra.mxu0 %v174
  %192 = vmatmul.bf16.gmra.mxu0 %v179
  %v193 = vpop.f32.mrf.mxu0
  %v194 = vadd.f32 %v164, %v193
  %v195 = vpop.f32.mrf.mxu0
  %v196 = vadd.f32 %v164, %v195
  %197 = vmatmul.bf16.gmra.mxu0 %v182
  %v198 = vpop.f32.mrf.mxu0
  %v199 = vadd.f32 %v164, %v198
  %v200 = vpop.f32.mrf.mxu0
  %v201 = vadd.f32 %v164, %v200
  %202 = vdwg.mxu0
  %v203 = vpack.c.bf16 %v194, %v194
  %v204 = vpack.c.bf16 %v196, %v196
  %v205 = vpack.c.bf16 %v199, %v199
  %v206 = vpack.c.bf16 %v201, %v201
  %vm207 = vcmask 257024
  %208 = vst.msk [vmem:[%s9] sm:$0xf] %vm207, %v203
  %209 = vst.msk [vmem:[%s9 + $0x4] sm:$0xf] %vm207, %v204
  %210 = vst.msk [vmem:[%s9 + $0x8] sm:$0xf] %vm207, %v205
  %211 = vst.msk [vmem:[%s9 + $0xc] sm:$0xf] %vm207, %v206
  %v212 = vld [vmem:[%s5] sm:$0xf]
  %v213 = vld [vmem:[%s5 + $0x4] sm:$0xf]
  %v214 = vld [vmem:[%s5 + $0x8] sm:$0xf]
  %v215 = vld [vmem:[%s5 + $0xc] sm:$0xf]
  %v216 = vld [vmem:[%s6] sm:$0x1]
  %v218 = vperm.slane %v216, 0
  %v224 = vunpack.c.l.b16 %v212
  %v225 = vunpack.c.l.b16 %v213
  %v226 = vunpack.c.l.b16 %v214
  %v227 = vunpack.c.l.b16 %v215
  %v228 = vpack.c.b16 %v225, %v224
  %v229 = vpack.c.b16 %v227, %v226
  %232 = vmatpush.bf16.msra.mxu0 0
  %233 = vmatpush.bf16.msra.mxu0 0
  %234 = vmatpush.bf16.msra.mxu0 0
  %235 = vmatpush.bf16.msra.mxu0 0
  %236 = vmatpush.bf16.msra.mxu0 0
  %237 = vmatpush.bf16.msra.mxu0 0
  %238 = vmatpush.bf16.msra.mxu0 %v229
  %239 = vmatpush.bf16.msra.mxu0 %v228
  %240 = vmatmul.bf16.gmra.mxu0 %v179
  %v241 = vpop.f32.mrf.mxu0
  %v242 = vadd.f32 %v218, %v241
  %v243 = vpop.f32.mrf.mxu0
  %v244 = vadd.f32 %v218, %v243
  %245 = vmatmul.bf16.gmra.mxu0 %v182
  %v246 = vpop.f32.mrf.mxu0
  %v247 = vadd.f32 %v218, %v246
  %v248 = vpop.f32.mrf.mxu0
  %v249 = vadd.f32 %v218, %v248
  %250 = vdwg.mxu0
  %v251 = vpack.c.bf16 %v242, %v242
  %v252 = vpack.c.bf16 %v244, %v244
  %v253 = vpack.c.bf16 %v247, %v247
  %v254 = vpack.c.bf16 %v249, %v249
  %255 = vst.msk [vmem:[%s10] sm:$0xf] %vm207, %v251
  %256 = vst.msk [vmem:[%s10 + $0x4] sm:$0xf] %vm207, %v252
  %257 = vst.msk [vmem:[%s10 + $0x8] sm:$0xf] %vm207, %v253
  %258 = vst.msk [vmem:[%s10 + $0xc] sm:$0xf] %vm207, %v254
  %v259 = vld [vmem:[%s7] sm:$0xf]
  %v260 = vld [vmem:[%s7 + $0x4] sm:$0xf]
  %v261 = vld [vmem:[%s7 + $0x8] sm:$0xf]
  %v262 = vld [vmem:[%s7 + $0xc] sm:$0xf]
  %v263 = vld [vmem:[%s8] sm:$0x1]
  %v265 = vperm.slane %v263, 0
  %v271 = vunpack.c.l.b16 %v259
  %v272 = vunpack.c.l.b16 %v260
  %v273 = vunpack.c.l.b16 %v261
  %v274 = vunpack.c.l.b16 %v262
  %v275 = vpack.c.b16 %v272, %v271
  %v276 = vpack.c.b16 %v274, %v273
  %279 = vmatpush.bf16.msra.mxu0 0
  %280 = vmatpush.bf16.msra.mxu0 0
  %281 = vmatpush.bf16.msra.mxu0 0
  %282 = vmatpush.bf16.msra.mxu0 0
  %283 = vmatpush.bf16.msra.mxu0 0
  %284 = vmatpush.bf16.msra.mxu0 0
  %285 = vmatpush.bf16.msra.mxu0 %v276
  %286 = vmatpush.bf16.msra.mxu0 %v275
  %287 = vmatmul.bf16.gmra.mxu0 %v179
  %v288 = vpop.f32.mrf.mxu0
  %v289 = vadd.f32 %v265, %v288
  %v290 = vpop.f32.mrf.mxu0
  %v291 = vadd.f32 %v265, %v290
  %292 = vmatmul.bf16.gmra.mxu0 %v182
  %v293 = vpop.f32.mrf.mxu0
  %v294 = vadd.f32 %v265, %v293
  %v295 = vpop.f32.mrf.mxu0
  %v296 = vadd.f32 %v265, %v295
  %297 = vdwg.mxu0
  %v298 = vpack.c.bf16 %v289, %v289
  %v299 = vpack.c.bf16 %v291, %v291
  %v300 = vpack.c.bf16 %v294, %v294
  %v301 = vpack.c.bf16 %v296, %v296
  %302 = vst.msk [vmem:[%s11] sm:$0xf] %vm207, %v298
  %303 = vst.msk [vmem:[%s11 + $0x4] sm:$0xf] %vm207, %v299
  %304 = vst.msk [vmem:[%s11 + $0x8] sm:$0xf] %vm207, %v300
  %305 = vst.msk [vmem:[%s11 + $0xc] sm:$0xf] %vm207, %v301
  // Predicated region
  $region38: #{_lambda_.17} parent=0 // pred_check
    _
  $region39: #{_lambda_.17} parent=0 // pred_check_branch
    %307 = sbr.rel (0) target = $region41
  $region40: #{_lambda_.17} parent=0 // pred_region
    _
  $region41: #{_lambda_.17} parent=0 // pred_fallthru
    _
  // Predicated region
  $region42: #{_lambda_.17} parent=0 // pred_check
    _
  $region43: #{_lambda_.17} parent=0 // pred_check_branch
    %309 = sbr.rel (0) target = $region45
  $region44: #{_lambda_.17} parent=0 // pred_region
    _
  $region45: #{_lambda_.17} parent=0 // pred_fallthru
    _
  // Predicated region
  $region46: #{_lambda_.17} parent=0 // pred_check
    _
  $region47: #{_lambda_.17} parent=0 // pred_check_branch
    %311 = sbr.rel (0) target = $region49
  $region48: #{_lambda_.17} parent=0 // pred_region
    _
  $region49: #{_lambda_.17} parent=0 // pred_fallthru
    _
  // Predicated region
  $region50: #{_lambda_.17} parent=0 // pred_check
    _
  $region51: #{_lambda_.17} parent=0 // pred_check_branch
    %313 = sbr.rel (0) target = $region53
  $region52: #{_lambda_.17} parent=0 // pred_region
    _
  $region53: #{_lambda_.17} parent=0 // pred_fallthru
    _
  // Predicated region
  $region54: #{_lambda_.17} parent=0 // pred_check
    _
  $region55: #{_lambda_.17} parent=0 // pred_check_branch
    %315 = sbr.rel (0) target = $region57
  $region56: #{_lambda_.17} parent=0 // pred_region
    _
  $region57: #{_lambda_.17} parent=0 // pred_fallthru
    _
  // Predicated region
  $region58: #{_lambda_.17} parent=0 // pred_check
    _
  $region59: #{_lambda_.17} parent=0 // pred_check_branch
    %317 = sbr.rel (0) target = $region61
  $region60: #{_lambda_.17} parent=0 // pred_region
    _
  $region61: #{_lambda_.17} parent=0 // pred_fallthru
    _

// kernel: tile.44
$region0: #{tile.44}
  %s0 = inlined_call_operand.vmem [shape: f32[16,4,16], index: 0, kind: input, shape index: {}]
  %s1 = inlined_call_operand.vmem [shape: f32[16,64], index: 1, kind: output, shape index: {}]
  $region1: #{tile.44} parent=0
    #allocation0 [shape = 'u8[65536]{0}', space=vmem, size = 0x10000, scoped, tag = 'scoped mem for input reshape']
    %s3 = ssub.s32 16, 1
    %s4 = scalar_lea.vmem %s0, 60
    %v5 = vld [vmem:[%s4] sm:%s3]
    %s6 = scalar_lea.vmem [#allocation0], 120
    %7 = vst [vmem:[%s6] sm:%s3] %v5
    %s8 = scalar_lea.vmem %s0, 56
    %v9 = vld [vmem:[%s8] sm:%s3]
    %s10 = scalar_lea.vmem [#allocation0], 112
    %11 = vst [vmem:[%s10] sm:%s3] %v9
    %s12 = scalar_lea.vmem %s0, 52
    %v13 = vld [vmem:[%s12] sm:%s3]
    %s14 = scalar_lea.vmem [#allocation0], 104
    %15 = vst [vmem:[%s14] sm:%s3] %v13
    %s16 = scalar_lea.vmem %s0, 48
    %v17 = vld [vmem:[%s16] sm:%s3]
    %s18 = scalar_lea.vmem [#allocation0], 96
    %19 = vst [vmem:[%s18] sm:%s3] %v17
    %s20 = scalar_lea.vmem %s0, 44
    %v21 = vld [vmem:[%s20] sm:%s3]
    %s22 = scalar_lea.vmem [#allocation0], 88
    %23 = vst [vmem:[%s22] sm:%s3] %v21
    %s24 = scalar_lea.vmem %s0, 40
    %v25 = vld [vmem:[%s24] sm:%s3]
    %s26 = scalar_lea.vmem [#allocation0], 80
    %27 = vst [vmem:[%s26] sm:%s3] %v25
    %s28 = scalar_lea.vmem %s0, 36
    %v29 = vld [vmem:[%s28] sm:%s3]
    %s30 = scalar_lea.vmem [#allocation0], 72
    %31 = vst [vmem:[%s30] sm:%s3] %v29
    %s32 = scalar_lea.vmem %s0, 32
    %v33 = vld [vmem:[%s32] sm:%s3]
    %s34 = scalar_lea.vmem [#allocation0], 64
    %35 = vst [vmem:[%s34] sm:%s3] %v33
    %s36 = scalar_lea.vmem %s0, 28
    %v37 = vld [vmem:[%s36] sm:%s3]
    %s38 = scalar_lea.vmem [#allocation0], 56
    %39 = vst [vmem:[%s38] sm:%s3] %v37
    %s40 = scalar_lea.vmem %s0, 24
    %v41 = vld [vmem:[%s40] sm:%s3]
    %s42 = scalar_lea.vmem [#allocation0], 48
    %43 = vst [vmem:[%s42] sm:%s3] %v41
    %s44 = scalar_lea.vmem %s0, 20
    %v45 = vld [vmem:[%s44] sm:%s3]
    %s46 = scalar_lea.vmem [#allocation0], 40
    %47 = vst [vmem:[%s46] sm:%s3] %v45
    %s48 = scalar_lea.vmem %s0, 16
    %v49 = vld [vmem:[%s48] sm:%s3]
    %s50 = scalar_lea.vmem [#allocation0], 32
    %51 = vst [vmem:[%s50] sm:%s3] %v49
    %s52 = scalar_lea.vmem %s0, 12
    %v53 = vld [vmem:[%s52] sm:%s3]
    %s54 = scalar_lea.vmem [#allocation0], 24
    %55 = vst [vmem:[%s54] sm:%s3] %v53
    %s56 = scalar_lea.vmem %s0, 8
    %v57 = vld [vmem:[%s56] sm:%s3]
    %s58 = scalar_lea.vmem [#allocation0], 16
    %59 = vst [vmem:[%s58] sm:%s3] %v57
    %s60 = scalar_lea.vmem %s0, 4
    %v61 = vld [vmem:[%s60] sm:%s3]
    %s62 = scalar_lea.vmem [#allocation0], 8
    %63 = vst [vmem:[%s62] sm:%s3] %v61
    %v64 = vld [vmem:[%s0] sm:%s3]
    %65 = vst [vmem:[#allocation0] sm:%s3] %v64
    %v66 = vld [vmem:[#allocation0] ss:$8 sm:$0xf]
    %v67 = vld [vmem:[#allocation0] ss:$8 sm:$0xf0]
    %vm68 = vcmask 1047556
    %v69 = vsel %vm68, %v67, %v66
    %vm70 = vcmask 130048
    %71 = vst.msk [vmem:[%s1] sm:$0xff] %vm70, %v69
    %s72 = scalar_lea.vmem [#allocation0], 64
    %v73 = vld [vmem:[%s72] ss:$8 sm:$0xf]
    %s74 = scalar_lea.vmem [#allocation0], 64
    %v75 = vld [vmem:[%s74] ss:$8 sm:$0xf0]
    %vm76 = vcmask 1047556
    %v77 = vsel %vm76, %v75, %v73
    %vm78 = vcmask 130048
    %s79 = scalar_lea.vmem %s1, 8
    %80 = vst.msk [vmem:[%s79] sm:$0xff] %vm78, %v77
    %s81 = scalar_lea.vmem [#allocation0], 3
    %v82 = vld [vmem:[%s81] ss:$8 sm:$0xf]
    %s83 = scalar_lea.vmem [#allocation0], 3
    %v84 = vld [vmem:[%s83] ss:$8 sm:$0xf0]
    %vm85 = vcmask 1047556
    %v86 = vsel %vm85, %v84, %v82
    %87 = vrot.lane.b32.xlu0 %v86, 48
    %v88 = vpop.permute.xlu0 %87
    %vm89 = vcmask 523648
    %90 = vst.msk [vmem:[%s1] sm:$0xff] %vm89, %v88
    %s91 = scalar_lea.vmem [#allocation0], 67
    %v92 = vld [vmem:[%s91] ss:$8 sm:$0xf]
    %s93 = scalar_lea.vmem [#allocation0], 67
    %v94 = vld [vmem:[%s93] ss:$8 sm:$0xf0]
    %vm95 = vcmask 1047556
    %v96 = vsel %vm95, %v94, %v92
    %97 = vrot.lane.b32.xlu0 %v96, 48
    %v98 = vpop.permute.xlu0 %97
    %vm99 = vcmask 523648
    %s100 = scalar_lea.vmem %s1, 8
    %101 = vst.msk [vmem:[%s100] sm:$0xff] %vm99, %v98
    %s102 = scalar_lea.vmem [#allocation0], 2
    %v103 = vld [vmem:[%s102] ss:$8 sm:$0xf]
    %s104 = scalar_lea.vmem [#allocation0], 2
    %v105 = vld [vmem:[%s104] ss:$8 sm:$0xf0]
    %vm106 = vcmask 1047556
    %v107 = vsel %vm106, %v105, %v103
    %108 = vrot.lane.b32.xlu0 %v107, 32
    %v109 = vpop.permute.xlu0 %108
    %vm110 = vcmask 392448
    %111 = vst.msk [vmem:[%s1] sm:$0xff] %vm110, %v109
    %s112 = scalar_lea.vmem [#allocation0], 66
    %v113 = vld [vmem:[%s112] ss:$8 sm:$0xf]
    %s114 = scalar_lea.vmem [#allocation0], 66
    %v115 = vld [vmem:[%s114] ss:$8 sm:$0xf0]
    %vm116 = vcmask 1047556
    %v117 = vsel %vm116, %v115, %v113
    %118 = vrot.lane.b32.xlu0 %v117, 32
    %v119 = vpop.permute.xlu0 %118
    %vm120 = vcmask 392448
    %s121 = scalar_lea.vmem %s1, 8
    %122 = vst.msk [vmem:[%s121] sm:$0xff] %vm120, %v119
    %s123 = scalar_lea.vmem [#allocation0], 1
    %v124 = vld [vmem:[%s123] ss:$8 sm:$0xf]
    %s125 = scalar_lea.vmem [#allocation0], 1
    %v126 = vld [vmem:[%s125] ss:$8 sm:$0xf0]
    %vm127 = vcmask 1047556
    %v128 = vsel %vm127, %v126, %v124
    %129 = vrot.lane.b32.xlu0 %v128, 16
    %v130 = vpop.permute.xlu0 %129
    %vm131 = vcmask 261248
    %132 = vst.msk [vmem:[%s1] sm:$0xff] %vm131, %v130
    %s133 = scalar_lea.vmem [#allocation0], 65
    %v134 = vld [vmem:[%s133] ss:$8 sm:$0xf]
    %s135 = scalar_lea.vmem [#allocation0], 65
    %v136 = vld [vmem:[%s135] ss:$8 sm:$0xf0]
    %vm137 = vcmask 1047556
    %v138 = vsel %vm137, %v136, %v134
    %139 = vrot.lane.b32.xlu0 %v138, 16
    %v140 = vpop.permute.xlu0 %139
    %vm141 = vcmask 261248
    %s142 = scalar_lea.vmem %s1, 8
    %143 = vst.msk [vmem:[%s142] sm:$0xff] %vm141, %v140

// kernel: tile.54
$region0: #{tile.54}
  %s0 = inlined_call_operand.vmem [shape: f32[16,2,16], index: 0, kind: input, shape index: {}]
  %s1 = inlined_call_operand.vmem [shape: f32[16,32], index: 1, kind: output, shape index: {}]
  $region1: #{tile.54} parent=0
    #allocation0 [shape = 'u8[65536]{0}', space=vmem, size = 0x10000, scoped, tag = 'scoped mem for input reshape']
    %s3 = ssub.s32 4, 1
    %s4 = scalar_lea.vmem %s0, 30
    %v5 = vld [vmem:[%s4] sm:%s3]
    %s6 = scalar_lea.vmem [#allocation0], 120
    %7 = vst [vmem:[%s6] sm:%s3] %v5
    %s8 = scalar_lea.vmem %s0, 28
    %v9 = vld [vmem:[%s8] sm:%s3]
    %s10 = scalar_lea.vmem [#allocation0], 112
    %11 = vst [vmem:[%s10] sm:%s3] %v9
    %s12 = scalar_lea.vmem %s0, 26
    %v13 = vld [vmem:[%s12] sm:%s3]
    %s14 = scalar_lea.vmem [#allocation0], 104
    %15 = vst [vmem:[%s14] sm:%s3] %v13
    %s16 = scalar_lea.vmem %s0, 24
    %v17 = vld [vmem:[%s16] sm:%s3]
    %s18 = scalar_lea.vmem [#allocation0], 96
    %19 = vst [vmem:[%s18] sm:%s3] %v17
    %s20 = scalar_lea.vmem %s0, 22
    %v21 = vld [vmem:[%s20] sm:%s3]
    %s22 = scalar_lea.vmem [#allocation0], 88
    %23 = vst [vmem:[%s22] sm:%s3] %v21
    %s24 = scalar_lea.vmem %s0, 20
    %v25 = vld [vmem:[%s24] sm:%s3]
    %s26 = scalar_lea.vmem [#allocation0], 80
    %27 = vst [vmem:[%s26] sm:%s3] %v25
    %s28 = scalar_lea.vmem %s0, 18
    %v29 = vld [vmem:[%s28] sm:%s3]
    %s30 = scalar_lea.vmem [#allocation0], 72
    %31 = vst [vmem:[%s30] sm:%s3] %v29
    %s32 = scalar_lea.vmem %s0, 16
    %v33 = vld [vmem:[%s32] sm:%s3]
    %s34 = scalar_lea.vmem [#allocation0], 64
    %35 = vst [vmem:[%s34] sm:%s3] %v33
    %s36 = scalar_lea.vmem %s0, 14
    %v37 = vld [vmem:[%s36] sm:%s3]
    %s38 = scalar_lea.vmem [#allocation0], 56
    %39 = vst [vmem:[%s38] sm:%s3] %v37
    %s40 = scalar_lea.vmem %s0, 12
    %v41 = vld [vmem:[%s40] sm:%s3]
    %s42 = scalar_lea.vmem [#allocation0], 48
    %43 = vst [vmem:[%s42] sm:%s3] %v41
    %s44 = scalar_lea.vmem %s0, 10
    %v45 = vld [vmem:[%s44] sm:%s3]
    %s46 = scalar_lea.vmem [#allocation0], 40
    %47 = vst [vmem:[%s46] sm:%s3] %v45
    %s48 = scalar_lea.vmem %s0, 8
    %v49 = vld [vmem:[%s48] sm:%s3]
    %s50 = scalar_lea.vmem [#allocation0], 32
    %51 = vst [vmem:[%s50] sm:%s3] %v49
    %s52 = scalar_lea.vmem %s0, 6
    %v53 = vld [vmem:[%s52] sm:%s3]
    %s54 = scalar_lea.vmem [#allocation0], 24
    %55 = vst [vmem:[%s54] sm:%s3] %v53
    %s56 = scalar_lea.vmem %s0, 4
    %v57 = vld [vmem:[%s56] sm:%s3]
    %s58 = scalar_lea.vmem [#allocation0], 16
    %59 = vst [vmem:[%s58] sm:%s3] %v57
    %s60 = scalar_lea.vmem %s0, 2
    %v61 = vld [vmem:[%s60] sm:%s3]
    %s62 = scalar_lea.vmem [#allocation0], 8
    %63 = vst [vmem:[%s62] sm:%s3] %v61
    %v64 = vld [vmem:[%s0] sm:%s3]
    %65 = vst [vmem:[#allocation0] sm:%s3] %v64
    %v66 = vld [vmem:[#allocation0] ss:$8 sm:$0xf]
    %v67 = vld [vmem:[#allocation0] ss:$8 sm:$0xf0]
    %vm68 = vcmask 1047556
    %v69 = vsel %vm68, %v67, %v66
    %vm70 = vcmask 130048
    %71 = vst.msk [vmem:[%s1] sm:$0xff] %vm70, %v69
    %s72 = scalar_lea.vmem [#allocation0], 64
    %v73 = vld [vmem:[%s72] ss:$8 sm:$0xf]
    %s74 = scalar_lea.vmem [#allocation0], 64
    %v75 = vld [vmem:[%s74] ss:$8 sm:$0xf0]
    %vm76 = vcmask 1047556
    %v77 = vsel %vm76, %v75, %v73
    %vm78 = vcmask 130048
    %s79 = scalar_lea.vmem %s1, 8
    %80 = vst.msk [vmem:[%s79] sm:$0xff] %vm78, %v77
    %s81 = scalar_lea.vmem [#allocation0], 1
    %v82 = vld [vmem:[%s81] ss:$8 sm:$0xf]
    %s83 = scalar_lea.vmem [#allocation0], 1
    %v84 = vld [vmem:[%s83] ss:$8 sm:$0xf0]
    %vm85 = vcmask 1047556
    %v86 = vsel %vm85, %v84, %v82
    %87 = vrot.lane.b32.xlu0 %v86, 16
    %v88 = vpop.permute.xlu0 %87
    %vm89 = vcmask 261248
    %90 = vst.msk [vmem:[%s1] sm:$0xff] %vm89, %v88
    %s91 = scalar_lea.vmem [#allocation0], 65
    %v92 = vld [vmem:[%s91] ss:$8 sm:$0xf]
    %s93 = scalar_lea.vmem [#allocation0], 65
    %v94 = vld [vmem:[%s93] ss:$8 sm:$0xf0]
    %vm95 = vcmask 1047556
    %v96 = vsel %vm95, %v94, %v92
    %97 = vrot.lane.b32.xlu0 %v96, 16
    %v98 = vpop.permute.xlu0 %97
    %vm99 = vcmask 261248
    %s100 = scalar_lea.vmem %s1, 8
    %101 = vst.msk [vmem:[%s100] sm:$0xff] %vm99, %v98

// kernel: _lambda_.24
$region0: #{_lambda_.24}
  #allocation0 [shape = 'u32[]', space=smem, size = 0x4, offset = 0x4, fixed_abs, tag = 'smem constant byte address 0x4 - core index']
  #allocation1 [shape = 'u32[72,128]{1,0:T(1,128)}', space=vmem, size = 0x9000, scoped, tag = 'internal scratch']
  %s0 = inlined_call_operand.vmem [shape: bf16[8,128], index: 0, kind: input, shape index: {}]
  %s1 = inlined_call_operand.vmem [shape: bf16[128,64], index: 1, kind: input, shape index: {}]
  %s2 = inlined_call_operand.vmem [shape: bf16[8,64], index: 2, kind: output, shape index: {}]
  %s3 = sld [smem:[#allocation0]]
  $region18: #{_lambda_.24} parent=0
    _
  %s5 = ssub.s32 1, %s3
  %s6 = scalar_select 0, %s5, %s3
  // Predicated region
  $region2: #{_lambda_.24} parent=0 // pred_check
    _
  $region3: #{_lambda_.24} parent=0 // pred_check_branch
    %8 = sbr.rel (0) target = $region5
  $region4: #{_lambda_.24} parent=0 // pred_region
    _
  $region5: #{_lambda_.24} parent=0 // pred_fallthru
    _
  // Predicated region
  $region6: #{_lambda_.24} parent=0 // pred_check
    _
  $region7: #{_lambda_.24} parent=0 // pred_check_branch
    %10 = sbr.rel (0) target = $region9
  $region8: #{_lambda_.24} parent=0 // pred_region
    _
  $region9: #{_lambda_.24} parent=0 // pred_fallthru
    _
  %v11 = vld [vmem:[%s0] sm:$0xf]
  %v12 = vld [vmem:[%s1] sm:$0xf]
  %v13 = vld [vmem:[%s1 + $0x4] sm:$0xf]
  %v14 = vld [vmem:[%s1 + $0x8] sm:$0xf]
  %v15 = vld [vmem:[%s1 + $0xc] sm:$0xf]
  %v16 = vld [vmem:[%s1 + $0x10] sm:$0xf]
  %v17 = vld [vmem:[%s1 + $0x14] sm:$0xf]
  %v18 = vld [vmem:[%s1 + $0x18] sm:$0xf]
  %v19 = vld [vmem:[%s1 + $0x1c] sm:$0xf]
  %v20 = vld [vmem:[%s1 + $0x20] sm:$0xf]
  %v21 = vld [vmem:[%s1 + $0x24] sm:$0xf]
  %v22 = vld [vmem:[%s1 + $0x28] sm:$0xf]
  %v23 = vld [vmem:[%s1 + $0x2c] sm:$0xf]
  %v24 = vld [vmem:[%s1 + $0x30] sm:$0xf]
  %v25 = vld [vmem:[%s1 + $0x34] sm:$0xf]
  %v26 = vld [vmem:[%s1 + $0x38] sm:$0xf]
  %v27 = vld [vmem:[%s1 + $0x3c] sm:$0xf]
  %v44 = vunpack.c.l.b16 %v12
  %v45 = vunpack.c.l.b16 %v13
  %v46 = vunpack.c.l.b16 %v14
  %v47 = vunpack.c.l.b16 %v15
  %v48 = vunpack.c.l.b16 %v16
  %v49 = vunpack.c.l.b16 %v17
  %v50 = vunpack.c.l.b16 %v18
  %v51 = vunpack.c.l.b16 %v19
  %v52 = vunpack.c.l.b16 %v20
  %v53 = vunpack.c.l.b16 %v21
  %v54 = vunpack.c.l.b16 %v22
  %v55 = vunpack.c.l.b16 %v23
  %v56 = vunpack.c.l.b16 %v24
  %v57 = vunpack.c.l.b16 %v25
  %v58 = vunpack.c.l.b16 %v26
  %v59 = vunpack.c.l.b16 %v27
  %v60 = vpack.c.b16 %v45, %v44
  %v61 = vpack.c.b16 %v47, %v46
  %v62 = vpack.c.b16 %v49, %v48
  %v63 = vpack.c.b16 %v51, %v50
  %v64 = vpack.c.b16 %v53, %v52
  %v65 = vpack.c.b16 %v55, %v54
  %v66 = vpack.c.b16 %v57, %v56
  %v67 = vpack.c.b16 %v59, %v58
  %76 = vmatpush.bf16.msra.mxu0 %v67
  %77 = vmatpush.bf16.msra.mxu0 %v66
  %78 = vmatpush.bf16.msra.mxu0 %v65
  %79 = vmatpush.bf16.msra.mxu0 %v64
  %80 = vmatpush.bf16.msra.mxu0 %v63
  %81 = vmatpush.bf16.msra.mxu0 %v62
  %82 = vmatpush.bf16.msra.mxu0 %v61
  %83 = vmatpush.bf16.msra.mxu0 %v60
  %84 = vmatmul.bf16.gmra.mxu0 %v11
  %v85 = vpop.f32.mrf.mxu0
  %v86 = vadd.f32 0.0, %v85
  %v87 = vpop.f32.mrf.mxu0
  %88 = vdwg.mxu0
  %v89 = vpack.c.bf16 %v86, %v86
  %vm90 = vcmask 519168
  %91 = vst.msk [vmem:[%s2] sm:$0xf] %vm90, %v89
  // Predicated region
  $region10: #{_lambda_.24} parent=0 // pred_check
    _
  $region11: #{_lambda_.24} parent=0 // pred_check_branch
    %93 = sbr.rel (0) target = $region13
  $region12: #{_lambda_.24} parent=0 // pred_region
    _
  $region13: #{_lambda_.24} parent=0 // pred_fallthru
    _
  // Predicated region
  $region14: #{_lambda_.24} parent=0 // pred_check
    _
  $region15: #{_lambda_.24} parent=0 // pred_check_branch
    %95 = sbr.rel (0) target = $region17
  $region16: #{_lambda_.24} parent=0 // pred_region
    _
  $region17: #{_lambda_.24} parent=0 // pred_fallthru
    _

// kernel: _lambda_.25
$region0: #{_lambda_.25}
  #allocation0 [shape = 'u32[]', space=smem, size = 0x4, offset = 0x4, fixed_abs, tag = 'smem constant byte address 0x4 - core index']
  #allocation1 [shape = 'u32[72,128]{1,0:T(1,128)}', space=vmem, size = 0x9000, scoped, tag = 'internal scratch']
  %s0 = inlined_call_operand.vmem [shape: bf16[32,64], index: 0, kind: input, shape index: {}]
  %s1 = inlined_call_operand.vmem [shape: f32[1,64], index: 1, kind: input, shape index: {}]
  %s2 = inlined_call_operand.vmem [shape: bf16[64,64], index: 2, kind: input, shape index: {}]
  %s3 = inlined_call_operand.vmem [shape: bf16[64,32], index: 3, kind: input, shape index: {}]
  %s4 = inlined_call_operand.vmem [shape: bf16[64,32], index: 4, kind: input, shape index: {}]
  %s5 = inlined_call_operand.vmem [shape: bf16[32,64], index: 5, kind: output, shape index: {0}]
  %s6 = inlined_call_operand.vmem [shape: bf16[32,32], index: 6, kind: output, shape index: {1}]
  %s7 = inlined_call_operand.vmem [shape: bf16[32,32], index: 7, kind: output, shape index: {2}]
  %8 = xla_tuple %s5, %s6, %s7
  %s9 = sld [smem:[#allocation0]]
  $region46: #{_lambda_.25} parent=0
    _
  %s11 = ssub.s32 1, %s9
  %s12 = scalar_select 0, %s11, %s9
  // Predicated region
  $region2: #{_lambda_.25} parent=0 // pred_check
    _
  $region3: #{_lambda_.25} parent=0 // pred_check_branch
    %14 = sbr.rel (0) target = $region5
  $region4: #{_lambda_.25} parent=0 // pred_region
    _
  $region5: #{_lambda_.25} parent=0 // pred_fallthru
    _
  // Predicated region
  $region6: #{_lambda_.25} parent=0 // pred_check
    _
  $region7: #{_lambda_.25} parent=0 // pred_check_branch
    %16 = sbr.rel (0) target = $region9
  $region8: #{_lambda_.25} parent=0 // pred_region
    _
  $region9: #{_lambda_.25} parent=0 // pred_fallthru
    _
  // Predicated region
  $region10: #{_lambda_.25} parent=0 // pred_check
    _
  $region11: #{_lambda_.25} parent=0 // pred_check_branch
    %18 = sbr.rel (0) target = $region13
  $region12: #{_lambda_.25} parent=0 // pred_region
    _
  $region13: #{_lambda_.25} parent=0 // pred_fallthru
    _
  // Predicated region
  $region14: #{_lambda_.25} parent=0 // pred_check
    _
  $region15: #{_lambda_.25} parent=0 // pred_check_branch
    %20 = sbr.rel (0) target = $region17
  $region16: #{_lambda_.25} parent=0 // pred_region
    _
  $region17: #{_lambda_.25} parent=0 // pred_fallthru
    _
  // Predicated region
  $region18: #{_lambda_.25} parent=0 // pred_check
    _
  $region19: #{_lambda_.25} parent=0 // pred_check_branch
    %22 = sbr.rel (0) target = $region21
  $region20: #{_lambda_.25} parent=0 // pred_region
    _
  $region21: #{_lambda_.25} parent=0 // pred_fallthru
    _
  %v24 = vld [vmem:[%s0] sm:$0xf]
  %v25 = vld [vmem:[%s0 + $0x4] sm:$0xf]
  %v26 = vld [vmem:[%s0 + $0x8] sm:$0xf]
  %v27 = vld [vmem:[%s0 + $0xc] sm:$0xf]
  %v28 = vunpack.c.l.bf16 %v24
  %v29 = vunpack.c.l.bf16 %v25
  %v30 = vunpack.c.l.bf16 %v26
  %v31 = vunpack.c.l.bf16 %v27
  %v32 = vld [vmem:[%s1] sm:$0x1]
  %v33 = vmul.f32 %v28, %v28
  %v34 = vmul.f32 %v29, %v29
  %v35 = vmul.f32 %v30, %v30
  %v36 = vmul.f32 %v31, %v31
  %vm37 = vcmask 523264
  %v38 = vsel %vm37, %v33, 0.0
  %39 = vadd.xlane.f32.xlu0 %v38
  %v40 = vpop.xlane.xlu0 %39
  %v41 = vsel %vm37, %v34, 0.0
  %42 = vadd.xlane.f32.xlu0 %v41
  %v43 = vpop.xlane.xlu0 %42
  %v44 = vsel %vm37, %v35, 0.0
  %45 = vadd.xlane.f32.xlu0 %v44
  %v46 = vpop.xlane.xlu0 %45
  %v47 = vsel %vm37, %v36, 0.0
  %48 = vadd.xlane.f32.xlu0 %v47
  %v49 = vpop.xlane.xlu0 %48
  %v50 = vrcp.pop 64.0
  %v51 = vmul.f32 64.0, %v50
  %v52 = vsub.f32 1.0, %v51
  %v53 = vmul.f32 %v50, %v52
  %v54 = vadd.f32 %v50, %v53
  %vm55 = vweird.f32 %v50
  %v56 = vsel %vm55, %v50, %v54
  %v57 = vmul.f32 %v40, %v56
  %v58 = vmul.f32 %v43, %v56
  %v59 = vmul.f32 %v46, %v56
  %v60 = vmul.f32 %v49, %v56
  %v61 = vadd.f32 %v57, 1e-05
  %v62 = vadd.f32 %v58, 1e-05
  %v63 = vadd.f32 %v59, 1e-05
  %v64 = vadd.f32 %v60, 1e-05
  %v65 = vrsqrt.pop %v61
  %v66 = vmul.f32 %v65, %v61
  %v67 = vmul.f32 %v66, %v65
  %v68 = vmul.f32 0.5, %v67
  %v69 = vsub.f32 1.5, %v68
  %v70 = vmul.f32 %v65, %v69
  %vm71 = vweird.f32 %v61
  %vm72 = vweird.f32 %v65
  %vm73 = vmor %vm71, %vm72
  %v74 = vsel %vm73, %v65, %v70
  %v75 = vrsqrt.pop %v62
  %v76 = vmul.f32 %v75, %v62
  %v77 = vmul.f32 %v76, %v75
  %v78 = vmul.f32 0.5, %v77
  %v79 = vsub.f32 1.5, %v78
  %v80 = vmul.f32 %v75, %v79
  %vm81 = vweird.f32 %v62
  %vm82 = vweird.f32 %v75
  %vm83 = vmor %vm81, %vm82
  %v84 = vsel %vm83, %v75, %v80
  %v85 = vrsqrt.pop %v63
  %v86 = vmul.f32 %v85, %v63
  %v87 = vmul.f32 %v86, %v85
  %v88 = vmul.f32 0.5, %v87
  %v89 = vsub.f32 1.5, %v88
  %v90 = vmul.f32 %v85, %v89
  %vm91 = vweird.f32 %v63
  %vm92 = vweird.f32 %v85
  %vm93 = vmor %vm91, %vm92
  %v94 = vsel %vm93, %v85, %v90
  %v95 = vrsqrt.pop %v64
  %v96 = vmul.f32 %v95, %v64
  %v97 = vmul.f32 %v96, %v95
  %v98 = vmul.f32 0.5, %v97
  %v99 = vsub.f32 1.5, %v98
  %v100 = vmul.f32 %v95, %v99
  %vm101 = vweird.f32 %v64
  %vm102 = vweird.f32 %v95
  %vm103 = vmor %vm101, %vm102
  %v104 = vsel %vm103, %v95, %v100
  %v105 = vmul.f32 %v28, %v74
  %v106 = vmul.f32 %v29, %v84
  %v107 = vmul.f32 %v30, %v94
  %v108 = vmul.f32 %v31, %v104
  %v110 = vperm.slane %v32, 0
  %v112 = vmul.f32 %v105, %v110
  %v113 = vmul.f32 %v106, %v110
  %v114 = vmul.f32 %v107, %v110
  %v115 = vmul.f32 %v108, %v110
  %v116 = vpack.c.bf16 %v113, %v112
  %v117 = vpack.c.bf16 %v115, %v114
  %v118 = vld [vmem:[%s2] sm:$0xf]
  %v119 = vld [vmem:[%s2 + $0x4] sm:$0xf]
  %v120 = vld [vmem:[%s2 + $0x8] sm:$0xf]
  %v121 = vld [vmem:[%s2 + $0xc] sm:$0xf]
  %v122 = vld [vmem:[%s2 + $0x10] sm:$0xf]
  %v123 = vld [vmem:[%s2 + $0x14] sm:$0xf]
  %v124 = vld [vmem:[%s2 + $0x18] sm:$0xf]
  %v125 = vld [vmem:[%s2 + $0x1c] sm:$0xf]
  %v134 = vunpack.c.l.b16 %v118
  %v135 = vunpack.c.l.b16 %v119
  %v136 = vunpack.c.l.b16 %v120
  %v137 = vunpack.c.l.b16 %v121
  %v138 = vunpack.c.l.b16 %v122
  %v139 = vunpack.c.l.b16 %v123
  %v140 = vunpack.c.l.b16 %v124
  %v141 = vunpack.c.l.b16 %v125
  %v142 = vpack.c.b16 %v135, %v134
  %v143 = vpack.c.b16 %v137, %v136
  %v144 = vpack.c.b16 %v139, %v138
  %v145 = vpack.c.b16 %v141, %v140
  %v151 = vsel %vm37, %v116, 0
  %v154 = vsel %vm37, %v117, 0
  %156 = vmatpush.bf16.msra.mxu0 0
  %157 = vmatpush.bf16.msra.mxu0 0
  %158 = vmatpush.bf16.msra.mxu0 0
  %159 = vmatpush.bf16.msra.mxu0 0
  %160 = vmatpush.bf16.msra.mxu0 %v145
  %161 = vmatpush.bf16.msra.mxu0 %v144
  %162 = vmatpush.bf16.msra.mxu0 %v143
  %163 = vmatpush.bf16.msra.mxu0 %v142
  %164 = vmatmul.bf16.gmra.mxu0 %v151
  %v165 = vpop.f32.mrf.mxu0
  %v166 = vadd.f32 0.0, %v165
  %v167 = vpop.f32.mrf.mxu0
  %v168 = vadd.f32 0.0, %v167
  %169 = vmatmul.bf16.gmra.mxu0 %v154
  %v170 = vpop.f32.mrf.mxu0
  %v171 = vadd.f32 0.0, %v170
  %v172 = vpop.f32.mrf.mxu0
  %v173 = vadd.f32 0.0, %v172
  %174 = vdwg.mxu0
  %v175 = vpack.c.bf16 %v166, %v166
  %v176 = vpack.c.bf16 %v168, %v168
  %v177 = vpack.c.bf16 %v171, %v171
  %v178 = vpack.c.bf16 %v173, %v173
  %vm179 = vcmask 519168
  %180 = vst.msk [vmem:[%s5] sm:$0xf] %vm179, %v175
  %181 = vst.msk [vmem:[%s5 + $0x4] sm:$0xf] %vm179, %v176
  %182 = vst.msk [vmem:[%s5 + $0x8] sm:$0xf] %vm179, %v177
  %183 = vst.msk [vmem:[%s5 + $0xc] sm:$0xf] %vm179, %v178
  %v184 = vld [vmem:[%s3] sm:$0xf]
  %v185 = vld [vmem:[%s3 + $0x4] sm:$0xf]
  %v186 = vld [vmem:[%s3 + $0x8] sm:$0xf]
  %v187 = vld [vmem:[%s3 + $0xc] sm:$0xf]
  %v188 = vld [vmem:[%s3 + $0x10] sm:$0xf]
  %v189 = vld [vmem:[%s3 + $0x14] sm:$0xf]
  %v190 = vld [vmem:[%s3 + $0x18] sm:$0xf]
  %v191 = vld [vmem:[%s3 + $0x1c] sm:$0xf]
  %v200 = vunpack.c.l.b16 %v184
  %v201 = vunpack.c.l.b16 %v185
  %v202 = vunpack.c.l.b16 %v186
  %v203 = vunpack.c.l.b16 %v187
  %v204 = vunpack.c.l.b16 %v188
  %v205 = vunpack.c.l.b16 %v189
  %v206 = vunpack.c.l.b16 %v190
  %v207 = vunpack.c.l.b16 %v191
  %v208 = vpack.c.b16 %v201, %v200
  %v209 = vpack.c.b16 %v203, %v202
  %v210 = vpack.c.b16 %v205, %v204
  %v211 = vpack.c.b16 %v207, %v206
  %216 = vmatpush.bf16.msra.mxu0 0
  %217 = vmatpush.bf16.msra.mxu0 0
  %218 = vmatpush.bf16.msra.mxu0 0
  %219 = vmatpush.bf16.msra.mxu0 0
  %220 = vmatpush.bf16.msra.mxu0 %v211
  %221 = vmatpush.bf16.msra.mxu0 %v210
  %222 = vmatpush.bf16.msra.mxu0 %v209
  %223 = vmatpush.bf16.msra.mxu0 %v208
  %224 = vmatmul.bf16.gmra.mxu0 %v151
  %v225 = vpop.f32.mrf.mxu0
  %v226 = vadd.f32 0.0, %v225
  %v227 = vpop.f32.mrf.mxu0
  %v228 = vadd.f32 0.0, %v227
  %229 = vmatmul.bf16.gmra.mxu0 %v154
  %v230 = vpop.f32.mrf.mxu0
  %v231 = vadd.f32 0.0, %v230
  %v232 = vpop.f32.mrf.mxu0
  %v233 = vadd.f32 0.0, %v232
  %234 = vdwg.mxu0
  %v235 = vpack.c.bf16 %v226, %v226
  %v236 = vpack.c.bf16 %v228, %v228
  %v237 = vpack.c.bf16 %v231, %v231
  %v238 = vpack.c.bf16 %v233, %v233
  %vm239 = vcmask 257024
  %240 = vst.msk [vmem:[%s6] sm:$0xf] %vm239, %v235
  %241 = vst.msk [vmem:[%s6 + $0x4] sm:$0xf] %vm239, %v236
  %242 = vst.msk [vmem:[%s6 + $0x8] sm:$0xf] %vm239, %v237
  %243 = vst.msk [vmem:[%s6 + $0xc] sm:$0xf] %vm239, %v238
  %v244 = vld [vmem:[%s4] sm:$0xf]
  %v245 = vld [vmem:[%s4 + $0x4] sm:$0xf]
  %v246 = vld [vmem:[%s4 + $0x8] sm:$0xf]
  %v247 = vld [vmem:[%s4 + $0xc] sm:$0xf]
  %v248 = vld [vmem:[%s4 + $0x10] sm:$0xf]
  %v249 = vld [vmem:[%s4 + $0x14] sm:$0xf]
  %v250 = vld [vmem:[%s4 + $0x18] sm:$0xf]
  %v251 = vld [vmem:[%s4 + $0x1c] sm:$0xf]
  %v260 = vunpack.c.l.b16 %v244
  %v261 = vunpack.c.l.b16 %v245
  %v262 = vunpack.c.l.b16 %v246
  %v263 = vunpack.c.l.b16 %v247
  %v264 = vunpack.c.l.b16 %v248
  %v265 = vunpack.c.l.b16 %v249
  %v266 = vunpack.c.l.b16 %v250
  %v267 = vunpack.c.l.b16 %v251
  %v268 = vpack.c.b16 %v261, %v260
  %v269 = vpack.c.b16 %v263, %v262
  %v270 = vpack.c.b16 %v265, %v264
  %v271 = vpack.c.b16 %v267, %v266
  %276 = vmatpush.bf16.msra.mxu0 0
  %277 = vmatpush.bf16.msra.mxu0 0
  %278 = vmatpush.bf16.msra.mxu0 0
  %279 = vmatpush.bf16.msra.mxu0 0
  %280 = vmatpush.bf16.msra.mxu0 %v271
  %281 = vmatpush.bf16.msra.mxu0 %v270
  %282 = vmatpush.bf16.msra.mxu0 %v269
  %283 = vmatpush.bf16.msra.mxu0 %v268
  %284 = vmatmul.bf16.gmra.mxu0 %v151
  %v285 = vpop.f32.mrf.mxu0
  %v286 = vadd.f32 0.0, %v285
  %v287 = vpop.f32.mrf.mxu0
  %v288 = vadd.f32 0.0, %v287
  %289 = vmatmul.bf16.gmra.mxu0 %v154
  %v290 = vpop.f32.mrf.mxu0
  %v291 = vadd.f32 0.0, %v290
  %v292 = vpop.f32.mrf.mxu0
  %v293 = vadd.f32 0.0, %v292
  %294 = vdwg.mxu0
  %v295 = vpack.c.bf16 %v286, %v286
  %v296 = vpack.c.bf16 %v288, %v288
  %v297 = vpack.c.bf16 %v291, %v291
  %v298 = vpack.c.bf16 %v293, %v293
  %299 = vst.msk [vmem:[%s7] sm:$0xf] %vm239, %v295
  %300 = vst.msk [vmem:[%s7 + $0x4] sm:$0xf] %vm239, %v296
  %301 = vst.msk [vmem:[%s7 + $0x8] sm:$0xf] %vm239, %v297
  %302 = vst.msk [vmem:[%s7 + $0xc] sm:$0xf] %vm239, %v298
  // Predicated region
  $region22: #{_lambda_.25} parent=0 // pred_check
    _
  $region23: #{_lambda_.25} parent=0 // pred_check_branch
    %304 = sbr.rel (0) target = $region25
  $region24: #{_lambda_.25} parent=0 // pred_region
    _
  $region25: #{_lambda_.25} parent=0 // pred_fallthru
    _
  // Predicated region
  $region26: #{_lambda_.25} parent=0 // pred_check
    _
  $region27: #{_lambda_.25} parent=0 // pred_check_branch
    %306 = sbr.rel (0) target = $region29
  $region28: #{_lambda_.25} parent=0 // pred_region
    _
  $region29: #{_lambda_.25} parent=0 // pred_fallthru
    _
  // Predicated region
  $region30: #{_lambda_.25} parent=0 // pred_check
    _
  $region31: #{_lambda_.25} parent=0 // pred_check_branch
    %308 = sbr.rel (0) target = $region33
  $region32: #{_lambda_.25} parent=0 // pred_region
    _
  $region33: #{_lambda_.25} parent=0 // pred_fallthru
    _
  // Predicated region
  $region34: #{_lambda_.25} parent=0 // pred_check
    _
  $region35: #{_lambda_.25} parent=0 // pred_check_branch
    %310 = sbr.rel (0) target = $region37
  $region36: #{_lambda_.25} parent=0 // pred_region
    _
  $region37: #{_lambda_.25} parent=0 // pred_fallthru
    _
  // Predicated region
  $region38: #{_lambda_.25} parent=0 // pred_check
    _
  $region39: #{_lambda_.25} parent=0 // pred_check_branch
    %312 = sbr.rel (0) target = $region41
  $region40: #{_lambda_.25} parent=0 // pred_region
    _
  $region41: #{_lambda_.25} parent=0 // pred_fallthru
    _
  // Predicated region
  $region42: #{_lambda_.25} parent=0 // pred_check
    _
  $region43: #{_lambda_.25} parent=0 // pred_check_branch
    %314 = sbr.rel (0) target = $region45
  $region44: #{_lambda_.25} parent=0 // pred_region
    _
  $region45: #{_lambda_.25} parent=0 // pred_fallthru
    _

// kernel: _lambda_.31
$region0: #{_lambda_.31}
  #allocation0 [shape = 'u32[]', space=smem, size = 0x4, offset = 0x4, fixed_abs, tag = 'smem constant byte address 0x4 - core index']
  #allocation1 [shape = 'u32[72,128]{1,0:T(1,128)}', space=vmem, size = 0x9000, scoped, tag = 'internal scratch']
  %s0 = inlined_call_operand.vmem [shape: bf16[32,64], index: 0, kind: input, shape index: {}]
  %s1 = inlined_call_operand.vmem [shape: f32[1,64], index: 1, kind: input, shape index: {}]
  %s2 = inlined_call_operand.hbm [shape: f32[32,64], index: 2, kind: output, shape index: {}]
  %s3 = sld [smem:[#allocation0]]
  $region18: #{_lambda_.31} parent=0
    _
  %s5 = ssub.s32 1, %s3
  %s6 = scalar_select 0, %s5, %s3
  $region1: #{_lambda_.31} parent=0
    #allocation2 [shape = 'u8[16384]{0}', space=vmem, size = 0x4000, scoped, tag = 'output window, operand 0, single buffered']
    #allocation3 [shape = 's32[1]{0}', space=sflag, size = 0x4, scoped, tag = 'scoped memory for _lambda_.31']
    %7 = vsyncpa [#allocation3], 0
    // Predicated region
    $region2: #{_lambda_.31} parent=1 // pred_check
      _
    $region3: #{_lambda_.31} parent=1 // pred_check_branch
      %9 = sbr.rel (0) target = $region5
    $region4: #{_lambda_.31} parent=1 // pred_region
      _
    $region5: #{_lambda_.31} parent=1 // pred_fallthru
      _
    // Predicated region
    $region6: #{_lambda_.31} parent=1 // pred_check
      _
    $region7: #{_lambda_.31} parent=1 // pred_check_branch
      %11 = sbr.rel (0) target = $region9
    $region8: #{_lambda_.31} parent=1 // pred_region
      _
    $region9: #{_lambda_.31} parent=1 // pred_fallthru
      _
    %v12 = vld [vmem:[%s0] sm:$0xf]
    %v13 = vld [vmem:[%s0 + $0x4] sm:$0xf]
    %v14 = vld [vmem:[%s0 + $0x8] sm:$0xf]
    %v15 = vld [vmem:[%s0 + $0xc] sm:$0xf]
    %v16 = vunpack.c.l.bf16 %v12
    %v17 = vunpack.c.l.bf16 %v13
    %v18 = vunpack.c.l.bf16 %v14
    %v19 = vunpack.c.l.bf16 %v15
    %v20 = vld [vmem:[%s1] sm:$0x1]
    %v21 = vmul.f32 %v16, %v16
    %v22 = vmul.f32 %v17, %v17
    %v23 = vmul.f32 %v18, %v18
    %v24 = vmul.f32 %v19, %v19
    %vm25 = vcmask 523264
    %v26 = vsel %vm25, %v21, 0.0
    %27 = vadd.xlane.f32.xlu0 %v26
    %v28 = vpop.xlane.xlu0 %27
    %v29 = vsel %vm25, %v22, 0.0
    %30 = vadd.xlane.f32.xlu0 %v29
    %v31 = vpop.xlane.xlu0 %30
    %v32 = vsel %vm25, %v23, 0.0
    %33 = vadd.xlane.f32.xlu0 %v32
    %v34 = vpop.xlane.xlu0 %33
    %v35 = vsel %vm25, %v24, 0.0
    %36 = vadd.xlane.f32.xlu0 %v35
    %v37 = vpop.xlane.xlu0 %36
    %v38 = vrcp.pop 64.0
    %v39 = vmul.f32 64.0, %v38
    %v40 = vsub.f32 1.0, %v39
    %v41 = vmul.f32 %v38, %v40
    %v42 = vadd.f32 %v38, %v41
    %vm43 = vweird.f32 %v38
    %v44 = vsel %vm43, %v38, %v42
    %v45 = vmul.f32 %v28, %v44
    %v46 = vmul.f32 %v31, %v44
    %v47 = vmul.f32 %v34, %v44
    %v48 = vmul.f32 %v37, %v44
    %v49 = vadd.f32 %v45, 1e-05
    %v50 = vadd.f32 %v46, 1e-05
    %v51 = vadd.f32 %v47, 1e-05
    %v52 = vadd.f32 %v48, 1e-05
    %v53 = vrsqrt.pop %v49
    %v54 = vmul.f32 %v53, %v49
    %v55 = vmul.f32 %v54, %v53
    %v56 = vmul.f32 0.5, %v55
    %v57 = vsub.f32 1.5, %v56
    %v58 = vmul.f32 %v53, %v57
    %vm59 = vweird.f32 %v49
    %vm60 = vweird.f32 %v53
    %vm61 = vmor %vm59, %vm60
    %v62 = vsel %vm61, %v53, %v58
    %v63 = vrsqrt.pop %v50
    %v64 = vmul.f32 %v63, %v50
    %v65 = vmul.f32 %v64, %v63
    %v66 = vmul.f32 0.5, %v65
    %v67 = vsub.f32 1.5, %v66
    %v68 = vmul.f32 %v63, %v67
    %vm69 = vweird.f32 %v50
    %vm70 = vweird.f32 %v63
    %vm71 = vmor %vm69, %vm70
    %v72 = vsel %vm71, %v63, %v68
    %v73 = vrsqrt.pop %v51
    %v74 = vmul.f32 %v73, %v51
    %v75 = vmul.f32 %v74, %v73
    %v76 = vmul.f32 0.5, %v75
    %v77 = vsub.f32 1.5, %v76
    %v78 = vmul.f32 %v73, %v77
    %vm79 = vweird.f32 %v51
    %vm80 = vweird.f32 %v73
    %vm81 = vmor %vm79, %vm80
    %v82 = vsel %vm81, %v73, %v78
    %v83 = vrsqrt.pop %v52
    %v84 = vmul.f32 %v83, %v52
    %v85 = vmul.f32 %v84, %v83
    %v86 = vmul.f32 0.5, %v85
    %v87 = vsub.f32 1.5, %v86
    %v88 = vmul.f32 %v83, %v87
    %vm89 = vweird.f32 %v52
    %vm90 = vweird.f32 %v83
    %vm91 = vmor %vm89, %vm90
    %v92 = vsel %vm91, %v83, %v88
    %v93 = vmul.f32 %v16, %v62
    %v94 = vmul.f32 %v17, %v72
    %v95 = vmul.f32 %v18, %v82
    %v96 = vmul.f32 %v19, %v92
    %v98 = vperm.slane %v20, 0
    %v100 = vmul.f32 %v93, %v98
    %v101 = vmul.f32 %v94, %v98
    %v102 = vmul.f32 %v95, %v98
    %v103 = vmul.f32 %v96, %v98
    %104 = vst.msk [vmem:[#allocation2] sm:$0xff] %vm25, %v100
    %105 = vst.msk [vmem:[#allocation2 + $0x8] sm:$0xff] %vm25, %v101
    %106 = vst.msk [vmem:[#allocation2 + $0x10] sm:$0xff] %vm25, %v102
    %107 = vst.msk [vmem:[#allocation2 + $0x18] sm:$0xff] %vm25, %v103
    // Predicated region
    $region10: #{_lambda_.31} parent=1 // pred_check
      _
    $region11: #{_lambda_.31} parent=1 // pred_check_branch
      %109 = sbr.rel (0) target = $region13
    $region12: #{_lambda_.31} parent=1 // pred_region
      %111 = vsyncadd [#allocation3], 0
      %s112 = sshll.u32 [#allocation2], 4
      %s113 = int_to_ptr.vmem [resolvable:$true] %s112
      %s114 = sshll.u32 %s2, 4
      %s115 = int_to_ptr.hbm [resolvable:$true] %s114
      %120 = dma.vmem_to_hbm [thread:$0]  %s113, 512, %s115, [#allocation3], 128, 128, 8
    $region13: #{_lambda_.31} parent=1 // pred_fallthru
      _
    // Predicated region
    $region14: #{_lambda_.31} parent=1 // pred_check
      _
    $region15: #{_lambda_.31} parent=1 // pred_check_branch
      %122 = sbr.rel (0) target = $region17
    $region16: #{_lambda_.31} parent=1 // pred_region
      %124 = dma.done [#allocation3], 512
    $region17: #{_lambda_.31} parent=1 // pred_fallthru
      _
    %125 = vsyncpa [#allocation3], 1

// kernel: _lambda_.27
$region0: #{_lambda_.27}
  #allocation0 [shape = 'u32[]', space=smem, size = 0x4, offset = 0x4, fixed_abs, tag = 'smem constant byte address 0x4 - core index']
  #allocation1 [shape = 'u32[72,128]{1,0:T(1,128)}', space=vmem, size = 0x9000, scoped, tag = 'internal scratch']
  %s0 = inlined_call_operand.vmem [shape: bf16[32,64], index: 0, kind: input, shape index: {}]
  %s1 = inlined_call_operand.vmem [shape: f32[1,64], index: 1, kind: input, shape index: {}]
  %s2 = inlined_call_operand.vmem [shape: bf16[64,128], index: 2, kind: input, shape index: {}]
  %s3 = inlined_call_operand.vmem [shape: bf16[64,128], index: 3, kind: input, shape index: {}]
  %s4 = inlined_call_operand.vmem [shape: bf16[128,64], index: 4, kind: input, shape index: {}]
  %s5 = inlined_call_operand.vmem [shape: bf16[32,64], index: 5, kind: output, shape index: {}]
  %s6 = sld [smem:[#allocation0]]
  $region30: #{_lambda_.27} parent=0
    _
  %s8 = ssub.s32 1, %s6
  %s9 = scalar_select 0, %s8, %s6
  // Predicated region
  $region2: #{_lambda_.27} parent=0 // pred_check
    _
  $region3: #{_lambda_.27} parent=0 // pred_check_branch
    %11 = sbr.rel (0) target = $region5
  $region4: #{_lambda_.27} parent=0 // pred_region
    _
  $region5: #{_lambda_.27} parent=0 // pred_fallthru
    _
  // Predicated region
  $region6: #{_lambda_.27} parent=0 // pred_check
    _
  $region7: #{_lambda_.27} parent=0 // pred_check_branch
    %13 = sbr.rel (0) target = $region9
  $region8: #{_lambda_.27} parent=0 // pred_region
    _
  $region9: #{_lambda_.27} parent=0 // pred_fallthru
    _
  // Predicated region
  $region10: #{_lambda_.27} parent=0 // pred_check
    _
  $region11: #{_lambda_.27} parent=0 // pred_check_branch
    %15 = sbr.rel (0) target = $region13
  $region12: #{_lambda_.27} parent=0 // pred_region
    _
  $region13: #{_lambda_.27} parent=0 // pred_fallthru
    _
  // Predicated region
  $region14: #{_lambda_.27} parent=0 // pred_check
    _
  $region15: #{_lambda_.27} parent=0 // pred_check_branch
    %17 = sbr.rel (0) target = $region17
  $region16: #{_lambda_.27} parent=0 // pred_region
    _
  $region17: #{_lambda_.27} parent=0 // pred_fallthru
    _
  // Predicated region
  $region18: #{_lambda_.27} parent=0 // pred_check
    _
  $region19: #{_lambda_.27} parent=0 // pred_check_branch
    %19 = sbr.rel (0) target = $region21
  $region20: #{_lambda_.27} parent=0 // pred_region
    _
  $region21: #{_lambda_.27} parent=0 // pred_fallthru
    _
  %v21 = vld [vmem:[%s0] sm:$0xf]
  %v22 = vld [vmem:[%s0 + $0x4] sm:$0xf]
  %v23 = vld [vmem:[%s0 + $0x8] sm:$0xf]
  %v24 = vld [vmem:[%s0 + $0xc] sm:$0xf]
  %v25 = vunpack.c.l.bf16 %v21
  %v26 = vunpack.c.l.bf16 %v22
  %v27 = vunpack.c.l.bf16 %v23
  %v28 = vunpack.c.l.bf16 %v24
  %v29 = vld [vmem:[%s1] sm:$0x1]
  %v30 = vmul.f32 %v25, %v25
  %v31 = vmul.f32 %v26, %v26
  %v32 = vmul.f32 %v27, %v27
  %v33 = vmul.f32 %v28, %v28
  %vm34 = vcmask 523264
  %v35 = vsel %vm34, %v30, 0.0
  %36 = vadd.xlane.f32.xlu0 %v35
  %v37 = vpop.xlane.xlu0 %36
  %v38 = vsel %vm34, %v31, 0.0
  %39 = vadd.xlane.f32.xlu0 %v38
  %v40 = vpop.xlane.xlu0 %39
  %v41 = vsel %vm34, %v32, 0.0
  %42 = vadd.xlane.f32.xlu0 %v41
  %v43 = vpop.xlane.xlu0 %42
  %v44 = vsel %vm34, %v33, 0.0
  %45 = vadd.xlane.f32.xlu0 %v44
  %v46 = vpop.xlane.xlu0 %45
  %v47 = vrcp.pop 64.0
  %v48 = vmul.f32 64.0, %v47
  %v49 = vsub.f32 1.0, %v48
  %v50 = vmul.f32 %v47, %v49
  %v51 = vadd.f32 %v47, %v50
  %vm52 = vweird.f32 %v47
  %v53 = vsel %vm52, %v47, %v51
  %v54 = vmul.f32 %v37, %v53
  %v55 = vmul.f32 %v40, %v53
  %v56 = vmul.f32 %v43, %v53
  %v57 = vmul.f32 %v46, %v53
  %v58 = vadd.f32 %v54, 1e-05
  %v59 = vadd.f32 %v55, 1e-05
  %v60 = vadd.f32 %v56, 1e-05
  %v61 = vadd.f32 %v57, 1e-05
  %v62 = vrsqrt.pop %v58
  %v63 = vmul.f32 %v62, %v58
  %v64 = vmul.f32 %v63, %v62
  %v65 = vmul.f32 0.5, %v64
  %v66 = vsub.f32 1.5, %v65
  %v67 = vmul.f32 %v62, %v66
  %vm68 = vweird.f32 %v58
  %vm69 = vweird.f32 %v62
  %vm70 = vmor %vm68, %vm69
  %v71 = vsel %vm70, %v62, %v67
  %v72 = vrsqrt.pop %v59
  %v73 = vmul.f32 %v72, %v59
  %v74 = vmul.f32 %v73, %v72
  %v75 = vmul.f32 0.5, %v74
  %v76 = vsub.f32 1.5, %v75
  %v77 = vmul.f32 %v72, %v76
  %vm78 = vweird.f32 %v59
  %vm79 = vweird.f32 %v72
  %vm80 = vmor %vm78, %vm79
  %v81 = vsel %vm80, %v72, %v77
  %v82 = vrsqrt.pop %v60
  %v83 = vmul.f32 %v82, %v60
  %v84 = vmul.f32 %v83, %v82
  %v85 = vmul.f32 0.5, %v84
  %v86 = vsub.f32 1.5, %v85
  %v87 = vmul.f32 %v82, %v86
  %vm88 = vweird.f32 %v60
  %vm89 = vweird.f32 %v82
  %vm90 = vmor %vm88, %vm89
  %v91 = vsel %vm90, %v82, %v87
  %v92 = vrsqrt.pop %v61
  %v93 = vmul.f32 %v92, %v61
  %v94 = vmul.f32 %v93, %v92
  %v95 = vmul.f32 0.5, %v94
  %v96 = vsub.f32 1.5, %v95
  %v97 = vmul.f32 %v92, %v96
  %vm98 = vweird.f32 %v61
  %vm99 = vweird.f32 %v92
  %vm100 = vmor %vm98, %vm99
  %v101 = vsel %vm100, %v92, %v97
  %v102 = vmul.f32 %v25, %v71
  %v103 = vmul.f32 %v26, %v81
  %v104 = vmul.f32 %v27, %v91
  %v105 = vmul.f32 %v28, %v101
  %v107 = vperm.slane %v29, 0
  %v109 = vmul.f32 %v102, %v107
  %v110 = vmul.f32 %v103, %v107
  %v111 = vmul.f32 %v104, %v107
  %v112 = vmul.f32 %v105, %v107
  %v113 = vpack.c.bf16 %v110, %v109
  %v114 = vpack.c.bf16 %v112, %v111
  %v115 = vld [vmem:[%s2] sm:$0xf]
  %v116 = vld [vmem:[%s2 + $0x4] sm:$0xf]
  %v117 = vld [vmem:[%s2 + $0x8] sm:$0xf]
  %v118 = vld [vmem:[%s2 + $0xc] sm:$0xf]
  %v119 = vld [vmem:[%s2 + $0x10] sm:$0xf]
  %v120 = vld [vmem:[%s2 + $0x14] sm:$0xf]
  %v121 = vld [vmem:[%s2 + $0x18] sm:$0xf]
  %v122 = vld [vmem:[%s2 + $0x1c] sm:$0xf]
  %v131 = vunpack.c.l.b16 %v115
  %v132 = vunpack.c.l.b16 %v116
  %v133 = vunpack.c.l.b16 %v117
  %v134 = vunpack.c.l.b16 %v118
  %v135 = vunpack.c.l.b16 %v119
  %v136 = vunpack.c.l.b16 %v120
  %v137 = vunpack.c.l.b16 %v121
  %v138 = vunpack.c.l.b16 %v122
  %v139 = vpack.c.b16 %v132, %v131
  %v140 = vpack.c.b16 %v134, %v133
  %v141 = vpack.c.b16 %v136, %v135
  %v142 = vpack.c.b16 %v138, %v137
  %v148 = vsel %vm34, %v113, 0
  %v151 = vsel %vm34, %v114, 0
  %153 = vmatpush.bf16.msra.mxu0 0
  %154 = vmatpush.bf16.msra.mxu0 0
  %155 = vmatpush.bf16.msra.mxu0 0
  %156 = vmatpush.bf16.msra.mxu0 0
  %157 = vmatpush.bf16.msra.mxu0 %v142
  %158 = vmatpush.bf16.msra.mxu0 %v141
  %159 = vmatpush.bf16.msra.mxu0 %v140
  %160 = vmatpush.bf16.msra.mxu0 %v139
  %161 = vmatmul.bf16.gmra.mxu0 %v148
  %v162 = vpop.f32.mrf.mxu0
  %v163 = vadd.f32 0.0, %v162
  %v164 = vpop.f32.mrf.mxu0
  %v165 = vadd.f32 0.0, %v164
  %166 = vmatmul.bf16.gmra.mxu0 %v151
  %v167 = vpop.f32.mrf.mxu0
  %v168 = vadd.f32 0.0, %v167
  %v169 = vpop.f32.mrf.mxu0
  %v170 = vadd.f32 0.0, %v169
  %171 = vdwg.mxu0
  %v172 = vld [vmem:[%s3] sm:$0xf]
  %v173 = vld [vmem:[%s3 + $0x4] sm:$0xf]
  %v174 = vld [vmem:[%s3 + $0x8] sm:$0xf]
  %v175 = vld [vmem:[%s3 + $0xc] sm:$0xf]
  %v176 = vld [vmem:[%s3 + $0x10] sm:$0xf]
  %v177 = vld [vmem:[%s3 + $0x14] sm:$0xf]
  %v178 = vld [vmem:[%s3 + $0x18] sm:$0xf]
  %v179 = vld [vmem:[%s3 + $0x1c] sm:$0xf]
  %v188 = vunpack.c.l.b16 %v172
  %v189 = vunpack.c.l.b16 %v173
  %v190 = vunpack.c.l.b16 %v174
  %v191 = vunpack.c.l.b16 %v175
  %v192 = vunpack.c.l.b16 %v176
  %v193 = vunpack.c.l.b16 %v177
  %v194 = vunpack.c.l.b16 %v178
  %v195 = vunpack.c.l.b16 %v179
  %v196 = vpack.c.b16 %v189, %v188
  %v197 = vpack.c.b16 %v191, %v190
  %v198 = vpack.c.b16 %v193, %v192
  %v199 = vpack.c.b16 %v195, %v194
  %204 = vmatpush.bf16.msra.mxu0 0
  %205 = vmatpush.bf16.msra.mxu0 0
  %206 = vmatpush.bf16.msra.mxu0 0
  %207 = vmatpush.bf16.msra.mxu0 0
  %208 = vmatpush.bf16.msra.mxu0 %v199
  %209 = vmatpush.bf16.msra.mxu0 %v198
  %210 = vmatpush.bf16.msra.mxu0 %v197
  %211 = vmatpush.bf16.msra.mxu0 %v196
  %212 = vmatmul.bf16.gmra.mxu0 %v148
  %v213 = vpop.f32.mrf.mxu0
  %v214 = vadd.f32 0.0, %v213
  %v215 = vpop.f32.mrf.mxu0
  %v216 = vadd.f32 0.0, %v215
  %217 = vmatmul.bf16.gmra.mxu0 %v151
  %v218 = vpop.f32.mrf.mxu0
  %v219 = vadd.f32 0.0, %v218
  %v220 = vpop.f32.mrf.mxu0
  %v221 = vadd.f32 0.0, %v220
  %222 = vdwg.mxu0
  %v223 = vxor.u32 %v163, 2147483648
  %v224 = vxor.u32 %v165, 2147483648
  %v225 = vxor.u32 %v168, 2147483648
  %v226 = vxor.u32 %v170, 2147483648
  %v227 = vmul.f32 %v223, 1.442695
  %v228 = vpow.pop %v227
  %v229 = vmul.f32 %v224, 1.442695
  %v230 = vpow.pop %v229
  %v231 = vmul.f32 %v225, 1.442695
  %v232 = vpow.pop %v231
  %v233 = vmul.f32 %v226, 1.442695
  %v234 = vpow.pop %v233
  %v235 = vadd.f32 %v228, 1.0
  %v236 = vadd.f32 %v230, 1.0
  %v237 = vadd.f32 %v232, 1.0
  %v238 = vadd.f32 %v234, 1.0
  %v239 = vrcp.pop %v235
  %v240 = vmul.f32 %v235, %v239
  %v241 = vsub.f32 1.0, %v240
  %v242 = vmul.f32 %v239, %v241
  %v243 = vadd.f32 %v239, %v242
  %vm244 = vweird.f32 %v235
  %vm245 = vweird.f32 %v239
  %vm246 = vmor %vm244, %vm245
  %v247 = vsel %vm246, %v239, %v243
  %v248 = vand.u32 2147483647, %v235
  %vm249 = vcmp.eq.f32.partialorder %v248, 8.507059e+37
  %v250 = vand.u32 %v235, 2147483648
  %v251 = vor.u32 1.1754944e-38, %v250
  %v252 = vsel %vm249, %v251, %v247
  %v253 = vmul.f32 1.0, %v252
  %v254 = vrcp.pop %v236
  %v255 = vmul.f32 %v236, %v254
  %v256 = vsub.f32 1.0, %v255
  %v257 = vmul.f32 %v254, %v256
  %v258 = vadd.f32 %v254, %v257
  %vm259 = vweird.f32 %v236
  %vm260 = vweird.f32 %v254
  %vm261 = vmor %vm259, %vm260
  %v262 = vsel %vm261, %v254, %v258
  %v263 = vand.u32 2147483647, %v236
  %vm264 = vcmp.eq.f32.partialorder %v263, 8.507059e+37
  %v265 = vand.u32 %v236, 2147483648
  %v266 = vor.u32 1.1754944e-38, %v265
  %v267 = vsel %vm264, %v266, %v262
  %v268 = vmul.f32 1.0, %v267
  %v269 = vrcp.pop %v237
  %v270 = vmul.f32 %v237, %v269
  %v271 = vsub.f32 1.0, %v270
  %v272 = vmul.f32 %v269, %v271
  %v273 = vadd.f32 %v269, %v272
  %vm274 = vweird.f32 %v237
  %vm275 = vweird.f32 %v269
  %vm276 = vmor %vm274, %vm275
  %v277 = vsel %vm276, %v269, %v273
  %v278 = vand.u32 2147483647, %v237
  %vm279 = vcmp.eq.f32.partialorder %v278, 8.507059e+37
  %v280 = vand.u32 %v237, 2147483648
  %v281 = vor.u32 1.1754944e-38, %v280
  %v282 = vsel %vm279, %v281, %v277
  %v283 = vmul.f32 1.0, %v282
  %v284 = vrcp.pop %v238
  %v285 = vmul.f32 %v238, %v284
  %v286 = vsub.f32 1.0, %v285
  %v287 = vmul.f32 %v284, %v286
  %v288 = vadd.f32 %v284, %v287
  %vm289 = vweird.f32 %v238
  %vm290 = vweird.f32 %v284
  %vm291 = vmor %vm289, %vm290
  %v292 = vsel %vm291, %v284, %v288
  %v293 = vand.u32 2147483647, %v238
  %vm294 = vcmp.eq.f32.partialorder %v293, 8.507059e+37
  %v295 = vand.u32 %v238, 2147483648
  %v296 = vor.u32 1.1754944e-38, %v295
  %v297 = vsel %vm294, %v296, %v292
  %v298 = vmul.f32 1.0, %v297
  %v299 = vmul.f32 %v163, %v253
  %v300 = vmul.f32 %v165, %v268
  %v301 = vmul.f32 %v168, %v283
  %v302 = vmul.f32 %v170, %v298
  %v303 = vmul.f32 %v299, %v214
  %v304 = vmul.f32 %v300, %v216
  %v305 = vmul.f32 %v301, %v219
  %v306 = vmul.f32 %v302, %v221
  %v307 = vpack.c.bf16 %v304, %v303
  %v308 = vpack.c.bf16 %v306, %v305
  %v309 = vld [vmem:[%s4] sm:$0xf]
  %v310 = vld [vmem:[%s4 + $0x4] sm:$0xf]
  %v311 = vld [vmem:[%s4 + $0x8] sm:$0xf]
  %v312 = vld [vmem:[%s4 + $0xc] sm:$0xf]
  %v313 = vld [vmem:[%s4 + $0x10] sm:$0xf]
  %v314 = vld [vmem:[%s4 + $0x14] sm:$0xf]
  %v315 = vld [vmem:[%s4 + $0x18] sm:$0xf]
  %v316 = vld [vmem:[%s4 + $0x1c] sm:$0xf]
  %v317 = vld [vmem:[%s4 + $0x20] sm:$0xf]
  %v318 = vld [vmem:[%s4 + $0x24] sm:$0xf]
  %v319 = vld [vmem:[%s4 + $0x28] sm:$0xf]
  %v320 = vld [vmem:[%s4 + $0x2c] sm:$0xf]
  %v321 = vld [vmem:[%s4 + $0x30] sm:$0xf]
  %v322 = vld [vmem:[%s4 + $0x34] sm:$0xf]
  %v323 = vld [vmem:[%s4 + $0x38] sm:$0xf]
  %v324 = vld [vmem:[%s4 + $0x3c] sm:$0xf]
  %v341 = vunpack.c.l.b16 %v309
  %v342 = vunpack.c.l.b16 %v310
  %v343 = vunpack.c.l.b16 %v311
  %v344 = vunpack.c.l.b16 %v312
  %v345 = vunpack.c.l.b16 %v313
  %v346 = vunpack.c.l.b16 %v314
  %v347 = vunpack.c.l.b16 %v315
  %v348 = vunpack.c.l.b16 %v316
  %v349 = vunpack.c.l.b16 %v317
  %v350 = vunpack.c.l.b16 %v318
  %v351 = vunpack.c.l.b16 %v319
  %v352 = vunpack.c.l.b16 %v320
  %v353 = vunpack.c.l.b16 %v321
  %v354 = vunpack.c.l.b16 %v322
  %v355 = vunpack.c.l.b16 %v323
  %v356 = vunpack.c.l.b16 %v324
  %v357 = vpack.c.b16 %v342, %v341
  %v358 = vpack.c.b16 %v344, %v343
  %v359 = vpack.c.b16 %v346, %v345
  %v360 = vpack.c.b16 %v348, %v347
  %v361 = vpack.c.b16 %v350, %v349
  %v362 = vpack.c.b16 %v352, %v351
  %v363 = vpack.c.b16 %v354, %v353
  %v364 = vpack.c.b16 %v356, %v355
  %373 = vmatpush.bf16.msra.mxu0 %v364
  %374 = vmatpush.bf16.msra.mxu0 %v363
  %375 = vmatpush.bf16.msra.mxu0 %v362
  %376 = vmatpush.bf16.msra.mxu0 %v361
  %377 = vmatpush.bf16.msra.mxu0 %v360
  %378 = vmatpush.bf16.msra.mxu0 %v359
  %379 = vmatpush.bf16.msra.mxu0 %v358
  %380 = vmatpush.bf16.msra.mxu0 %v357
  %381 = vmatmul.bf16.gmra.mxu0 %v307
  %v382 = vpop.f32.mrf.mxu0
  %v383 = vadd.f32 0.0, %v382
  %v384 = vpop.f32.mrf.mxu0
  %v385 = vadd.f32 0.0, %v384
  %386 = vmatmul.bf16.gmra.mxu0 %v308
  %v387 = vpop.f32.mrf.mxu0
  %v388 = vadd.f32 0.0, %v387
  %v389 = vpop.f32.mrf.mxu0
  %v390 = vadd.f32 0.0, %v389
  %391 = vdwg.mxu0
  %v392 = vadd.f32 %v25, %v383
  %v393 = vadd.f32 %v26, %v385
  %v394 = vadd.f32 %v27, %v388
  %v395 = vadd.f32 %v28, %v390
  %v396 = vpack.c.bf16 %v392, %v392
  %v397 = vpack.c.bf16 %v393, %v393
  %v398 = vpack.c.bf16 %v394, %v394
  %v399 = vpack.c.bf16 %v395, %v395
  %vm400 = vcmask 519168
  %401 = vst.msk [vmem:[%s5] sm:$0xf] %vm400, %v396
  %402 = vst.msk [vmem:[%s5 + $0x4] sm:$0xf] %vm400, %v397
  %403 = vst.msk [vmem:[%s5 + $0x8] sm:$0xf] %vm400, %v398
  %404 = vst.msk [vmem:[%s5 + $0xc] sm:$0xf] %vm400, %v399
  // Predicated region
  $region22: #{_lambda_.27} parent=0 // pred_check
    _
  $region23: #{_lambda_.27} parent=0 // pred_check_branch
    %406 = sbr.rel (0) target = $region25
  $region24: #{_lambda_.27} parent=0 // pred_region
    _
  $region25: #{_lambda_.27} parent=0 // pred_fallthru
    _
  // Predicated region
  $region26: #{_lambda_.27} parent=0 // pred_check
    _
  $region27: #{_lambda_.27} parent=0 // pred_check_branch
    %408 = sbr.rel (0) target = $region29
  $region28: #{_lambda_.27} parent=0 // pred_region
    _
  $region29: #{_lambda_.27} parent=0 // pred_fallthru
    _

// kernel: _lambda_.26
$region0: #{_lambda_.26}
  #allocation0 [shape = 'u32[]', space=smem, size = 0x4, offset = 0x4, fixed_abs, tag = 'smem constant byte address 0x4 - core index']
  #allocation1 [shape = 'u32[72,128]{1,0:T(1,128)}', space=vmem, size = 0x9000, scoped, tag = 'internal scratch']
  %s0 = inlined_call_operand.vmem [shape: bf16[2,16,64], index: 0, kind: input, shape index: {}]
  %s1 = inlined_call_operand.vmem [shape: bf16[2,16,32], index: 1, kind: input, shape index: {}]
  %s2 = inlined_call_operand.vmem [shape: bf16[2,16,32], index: 2, kind: input, shape index: {}]
  %s3 = inlined_call_operand.vmem [shape: f32[2,1,16], index: 3, kind: input, shape index: {}]
  %s4 = inlined_call_operand.vmem [shape: f32[16,64], index: 4, kind: input, shape index: {}]
  %s5 = inlined_call_operand.vmem [shape: f32[16,64], index: 5, kind: input, shape index: {}]
  %s6 = inlined_call_operand.vmem [shape: f32[16,32], index: 6, kind: input, shape index: {}]
  %s7 = inlined_call_operand.vmem [shape: f32[16,32], index: 7, kind: input, shape index: {}]
  %s8 = inlined_call_operand.vmem [shape: bf16[64,64], index: 8, kind: input, shape index: {}]
  %s9 = inlined_call_operand.vmem [shape: bf16[2,16,64], index: 9, kind: input, shape index: {}]
  %s10 = inlined_call_operand.vmem [shape: bf16[2,16,64], index: 10, kind: output, shape index: {}]
  %s11 = sld [smem:[#allocation0]]
  $region73: #{_lambda_.26} parent=0
    _
  %s13 = ssub.s32 1, %s11
  %s14 = scalar_select 0, %s13, %s11
  loop: start=0, step=1, limit=4
  $region2: #{_lambda_.26} parent=0 // loop_pre_header
    _
  $region3: #{_lambda_.26} parent=0 // loop_header
    %s16 = sphi 0, %s20
    %p17 = scmp.ge.s32.totalorder %s16, 4
    %s26 = sphi 0, %s28
    %s29 = sphi 0, %s26
    %s30 = sphi 0, %s29
    %s46 = sphi 0, %s30
    %s52 = sphi 0, %s54
    %s55 = sphi 0, %s52
    %s56 = sphi 0, %s55
    %s72 = sphi 0, %s56
    %s78 = sphi 0, %s80
    %s81 = sphi 0, %s78
    %s82 = sphi 0, %s81
    %s98 = sphi 0, %s82
    %s104 = sphi 0, %s106
    %s107 = sphi 0, %s104
    %s108 = sphi 0, %s107
    %s124 = sphi 0, %s108
    %s128 = sphi 0, %s128
    %s130 = sphi 0, %s128
    %s131 = sphi 0, %s130
    %s145 = sphi 0, %s131
    %s149 = sphi 0, %s149
    %s151 = sphi 0, %s149
    %s152 = sphi 0, %s151
    %s166 = sphi 0, %s152
    %s170 = sphi 0, %s170
    %s172 = sphi 0, %s170
    %s173 = sphi 0, %s172
    %s187 = sphi 0, %s173
    %s191 = sphi 0, %s191
    %s193 = sphi 0, %s191
    %s194 = sphi 0, %s193
    %s208 = sphi 0, %s194
    %s212 = sphi 0, %s212
    %s214 = sphi 0, %s212
    %s215 = sphi 0, %s214
    %s229 = sphi 0, %s215
    %s235 = sphi 0, %s237
    %s238 = sphi 0, %s235
    %s239 = sphi 0, %s238
    %s255 = sphi 0, %s239
    %s261 = sphi 0, %s263
    %s264 = sphi 0, %s261
    %s265 = sphi 0, %s264
    %s281 = sphi 0, %s265
  $region4: #{_lambda_.26} parent=0 // loop_header_branch
    %19 = sbr.rel (%p17) target = $region8
  $region5: #{_lambda_.26} parent=0 // loop_body
    %s21 = ssub.s32 %s16, 1
    %s22 = ssub.s32 %s16, 2
    %s23 = sadd.s32 %s16, 1
    %s24 = ssub.s32 %s16, %s23
    %p25 = scmp.eq.s32.totalorder %s24, 0
    %s27 = sadd.s32 %s26, 1
    %s28 = scalar_select %p25, %s26, %s27
    %p31 = pneg %p25
    %p32 = scmp.eq.s32.totalorder %s16, 1
    %p33 = por %p31, %p32
    %p34 = scmp.ne.s32.totalorder %s26, %s29
    %p35 = scmp.eq.s32.totalorder %s16, 0
    %p36 = por %p34, %p35
    %p37 = scmp.ne.s32.totalorder %s26, %s29
    %p38 = scmp.eq.s32.totalorder %s21, 1
    %p39 = por %p37, %p38
    %p40 = scmp.ne.s32.totalorder %s29, %s30
    %p41 = scmp.eq.s32.totalorder %s21, 0
    %p42 = por %p40, %p41
    %p43 = scmp.ne.s32.totalorder %s29, %s30
    %p44 = scmp.eq.s32.totalorder %s22, 1
    %p45 = por %p43, %p44
    %p47 = scmp.ne.s32.totalorder %s30, %s46
    %p48 = scmp.eq.s32.totalorder %s22, 0
    %p49 = por %p47, %p48
    %s50 = ssub.s32 %s16, %s23
    %p51 = scmp.eq.s32.totalorder %s50, 0
    %s53 = sadd.s32 %s52, 1
    %s54 = scalar_select %p51, %s52, %s53
    %p57 = pneg %p51
    %p58 = scmp.eq.s32.totalorder %s16, 1
    %p59 = por %p57, %p58
    %p60 = scmp.ne.s32.totalorder %s52, %s55
    %p61 = scmp.eq.s32.totalorder %s16, 0
    %p62 = por %p60, %p61
    %p63 = scmp.ne.s32.totalorder %s52, %s55
    %p64 = scmp.eq.s32.totalorder %s21, 1
    %p65 = por %p63, %p64
    %p66 = scmp.ne.s32.totalorder %s55, %s56
    %p67 = scmp.eq.s32.totalorder %s21, 0
    %p68 = por %p66, %p67
    %p69 = scmp.ne.s32.totalorder %s55, %s56
    %p70 = scmp.eq.s32.totalorder %s22, 1
    %p71 = por %p69, %p70
    %p73 = scmp.ne.s32.totalorder %s56, %s72
    %p74 = scmp.eq.s32.totalorder %s22, 0
    %p75 = por %p73, %p74
    %s76 = ssub.s32 %s16, %s23
    %p77 = scmp.eq.s32.totalorder %s76, 0
    %s79 = sadd.s32 %s78, 1
    %s80 = scalar_select %p77, %s78, %s79
    %p83 = pneg %p77
    %p84 = scmp.eq.s32.totalorder %s16, 1
    %p85 = por %p83, %p84
    %p86 = scmp.ne.s32.totalorder %s78, %s81
    %p87 = scmp.eq.s32.totalorder %s16, 0
    %p88 = por %p86, %p87
    %p89 = scmp.ne.s32.totalorder %s78, %s81
    %p90 = scmp.eq.s32.totalorder %s21, 1
    %p91 = por %p89, %p90
    %p92 = scmp.ne.s32.totalorder %s81, %s82
    %p93 = scmp.eq.s32.totalorder %s21, 0
    %p94 = por %p92, %p93
    %p95 = scmp.ne.s32.totalorder %s81, %s82
    %p96 = scmp.eq.s32.totalorder %s22, 1
    %p97 = por %p95, %p96
    %p99 = scmp.ne.s32.totalorder %s82, %s98
    %p100 = scmp.eq.s32.totalorder %s22, 0
    %p101 = por %p99, %p100
    %s102 = ssub.s32 %s16, %s23
    %p103 = scmp.eq.s32.totalorder %s102, 0
    %s105 = sadd.s32 %s104, 1
    %s106 = scalar_select %p103, %s104, %s105
    %p109 = pneg %p103
    %p110 = scmp.eq.s32.totalorder %s16, 1
    %p111 = por %p109, %p110
    %p112 = scmp.ne.s32.totalorder %s104, %s107
    %p113 = scmp.eq.s32.totalorder %s16, 0
    %p114 = por %p112, %p113
    %p115 = scmp.ne.s32.totalorder %s104, %s107
    %p116 = scmp.eq.s32.totalorder %s21, 1
    %p117 = por %p115, %p116
    %p118 = scmp.ne.s32.totalorder %s107, %s108
    %p119 = scmp.eq.s32.totalorder %s21, 0
    %p120 = por %p118, %p119
    %p121 = scmp.ne.s32.totalorder %s107, %s108
    %p122 = scmp.eq.s32.totalorder %s22, 1
    %p123 = por %p121, %p122
    %p125 = scmp.ne.s32.totalorder %s108, %s124
    %p126 = scmp.eq.s32.totalorder %s22, 0
    %p127 = por %p125, %p126
    %s129 = sadd.s32 %s128, 1
    %p132 = scmp.eq.s32.totalorder %s16, 1
    %p133 = scmp.ne.s32.totalorder %s128, %s130
    %p134 = scmp.eq.s32.totalorder %s16, 0
    %p135 = por %p133, %p134
    %p136 = scmp.ne.s32.totalorder %s128, %s130
    %p137 = scmp.eq.s32.totalorder %s21, 1
    %p138 = por %p136, %p137
    %p139 = scmp.ne.s32.totalorder %s130, %s131
    %p140 = scmp.eq.s32.totalorder %s21, 0
    %p141 = por %p139, %p140
    %p142 = scmp.ne.s32.totalorder %s130, %s131
    %p143 = scmp.eq.s32.totalorder %s22, 1
    %p144 = por %p142, %p143
    %p146 = scmp.ne.s32.totalorder %s131, %s145
    %p147 = scmp.eq.s32.totalorder %s22, 0
    %p148 = por %p146, %p147
    %s150 = sadd.s32 %s149, 1
    %p153 = scmp.eq.s32.totalorder %s16, 1
    %p154 = scmp.ne.s32.totalorder %s149, %s151
    %p155 = scmp.eq.s32.totalorder %s16, 0
    %p156 = por %p154, %p155
    %p157 = scmp.ne.s32.totalorder %s149, %s151
    %p158 = scmp.eq.s32.totalorder %s21, 1
    %p159 = por %p157, %p158
    %p160 = scmp.ne.s32.totalorder %s151, %s152
    %p161 = scmp.eq.s32.totalorder %s21, 0
    %p162 = por %p160, %p161
    %p163 = scmp.ne.s32.totalorder %s151, %s152
    %p164 = scmp.eq.s32.totalorder %s22, 1
    %p165 = por %p163, %p164
    %p167 = scmp.ne.s32.totalorder %s152, %s166
    %p168 = scmp.eq.s32.totalorder %s22, 0
    %p169 = por %p167, %p168
    %s171 = sadd.s32 %s170, 1
    %p174 = scmp.eq.s32.totalorder %s16, 1
    %p175 = scmp.ne.s32.totalorder %s170, %s172
    %p176 = scmp.eq.s32.totalorder %s16, 0
    %p177 = por %p175, %p176
    %p178 = scmp.ne.s32.totalorder %s170, %s172
    %p179 = scmp.eq.s32.totalorder %s21, 1
    %p180 = por %p178, %p179
    %p181 = scmp.ne.s32.totalorder %s172, %s173
    %p182 = scmp.eq.s32.totalorder %s21, 0
    %p183 = por %p181, %p182
    %p184 = scmp.ne.s32.totalorder %s172, %s173
    %p185 = scmp.eq.s32.totalorder %s22, 1
    %p186 = por %p184, %p185
    %p188 = scmp.ne.s32.totalorder %s173, %s187
    %p189 = scmp.eq.s32.totalorder %s22, 0
    %p190 = por %p188, %p189
    %s192 = sadd.s32 %s191, 1
    %p195 = scmp.eq.s32.totalorder %s16, 1
    %p196 = scmp.ne.s32.totalorder %s191, %s193
    %p197 = scmp.eq.s32.totalorder %s16, 0
    %p198 = por %p196, %p197
    %p199 = scmp.ne.s32.totalorder %s191, %s193
    %p200 = scmp.eq.s32.totalorder %s21, 1
    %p201 = por %p199, %p200
    %p202 = scmp.ne.s32.totalorder %s193, %s194
    %p203 = scmp.eq.s32.totalorder %s21, 0
    %p204 = por %p202, %p203
    %p205 = scmp.ne.s32.totalorder %s193, %s194
    %p206 = scmp.eq.s32.totalorder %s22, 1
    %p207 = por %p205, %p206
    %p209 = scmp.ne.s32.totalorder %s194, %s208
    %p210 = scmp.eq.s32.totalorder %s22, 0
    %p211 = por %p209, %p210
    %s213 = sadd.s32 %s212, 1
    %p216 = scmp.eq.s32.totalorder %s16, 1
    %p217 = scmp.ne.s32.totalorder %s212, %s214
    %p218 = scmp.eq.s32.totalorder %s16, 0
    %p219 = por %p217, %p218
    %p220 = scmp.ne.s32.totalorder %s212, %s214
    %p221 = scmp.eq.s32.totalorder %s21, 1
    %p222 = por %p220, %p221
    %p223 = scmp.ne.s32.totalorder %s214, %s215
    %p224 = scmp.eq.s32.totalorder %s21, 0
    %p225 = por %p223, %p224
    %p226 = scmp.ne.s32.totalorder %s214, %s215
    %p227 = scmp.eq.s32.totalorder %s22, 1
    %p228 = por %p226, %p227
    %p230 = scmp.ne.s32.totalorder %s215, %s229
    %p231 = scmp.eq.s32.totalorder %s22, 0
    %p232 = por %p230, %p231
    %s233 = ssub.s32 %s16, %s23
    %p234 = scmp.eq.s32.totalorder %s233, 0
    %s236 = sadd.s32 %s235, 1
    %s237 = scalar_select %p234, %s235, %s236
    %p240 = pneg %p234
    %p241 = scmp.eq.s32.totalorder %s16, 1
    %p242 = por %p240, %p241
    %p243 = scmp.ne.s32.totalorder %s235, %s238
    %p244 = scmp.eq.s32.totalorder %s16, 0
    %p245 = por %p243, %p244
    %p246 = scmp.ne.s32.totalorder %s235, %s238
    %p247 = scmp.eq.s32.totalorder %s21, 1
    %p248 = por %p246, %p247
    %p249 = scmp.ne.s32.totalorder %s238, %s239
    %p250 = scmp.eq.s32.totalorder %s21, 0
    %p251 = por %p249, %p250
    %p252 = scmp.ne.s32.totalorder %s238, %s239
    %p253 = scmp.eq.s32.totalorder %s22, 1
    %p254 = por %p252, %p253
    %p256 = scmp.ne.s32.totalorder %s239, %s255
    %p257 = scmp.eq.s32.totalorder %s22, 0
    %p258 = por %p256, %p257
    %s259 = ssub.s32 %s16, %s23
    %p260 = scmp.eq.s32.totalorder %s259, 0
    %s262 = sadd.s32 %s261, 1
    %s263 = scalar_select %p260, %s261, %s262
    %p266 = pneg %p260
    %p267 = scmp.eq.s32.totalorder %s16, 1
    %p268 = por %p266, %p267
    %p269 = scmp.ne.s32.totalorder %s261, %s264
    %p270 = scmp.eq.s32.totalorder %s16, 0
    %p271 = por %p269, %p270
    %p272 = scmp.ne.s32.totalorder %s261, %s264
    %p273 = scmp.eq.s32.totalorder %s21, 1
    %p274 = por %p272, %p273
    %p275 = scmp.ne.s32.totalorder %s264, %s265
    %p276 = scmp.eq.s32.totalorder %s21, 0
    %p277 = por %p275, %p276
    %p278 = scmp.ne.s32.totalorder %s264, %s265
    %p279 = scmp.eq.s32.totalorder %s22, 1
    %p280 = por %p278, %p279
    %p282 = scmp.ne.s32.totalorder %s265, %s281
    %p283 = scmp.eq.s32.totalorder %s22, 0
    %p284 = por %p282, %p283
    %p285 = scmp.le.s32.totalorder 1, %s16
    %p286 = scmp.lt.s32.totalorder %s16, 3
    %p287 = pnand %p285, %p286
    %p288 = pneg %p287
    // Predicated region
    $region9: #{_lambda_.26} parent=5 // pred_check
      _
    $region10: #{_lambda_.26} parent=5 // pred_check_branch
      %290 = sbr.rel (%p287) target = $region12
    $region11: #{_lambda_.26} parent=5 // pred_region
      %s291 = ssub.s32 %s16, 1
      // Predicated region
      $region13: #{_lambda_.26} parent=11 // pred_check
        %p292 = pneg %p141
      $region14: #{_lambda_.26} parent=11 // pred_check_branch
        %294 = sbr.rel (%p292) target = $region16
      $region15: #{_lambda_.26} parent=11 // pred_region
        _
      $region16: #{_lambda_.26} parent=11 // pred_fallthru
        _
      // Predicated region
      $region17: #{_lambda_.26} parent=11 // pred_check
        %p295 = pneg %p162
      $region18: #{_lambda_.26} parent=11 // pred_check_branch
        %297 = sbr.rel (%p295) target = $region20
      $region19: #{_lambda_.26} parent=11 // pred_region
        _
      $region20: #{_lambda_.26} parent=11 // pred_fallthru
        _
      // Predicated region
      $region21: #{_lambda_.26} parent=11 // pred_check
        %p298 = pneg %p183
      $region22: #{_lambda_.26} parent=11 // pred_check_branch
        %300 = sbr.rel (%p298) target = $region24
      $region23: #{_lambda_.26} parent=11 // pred_region
        _
      $region24: #{_lambda_.26} parent=11 // pred_fallthru
        _
      // Predicated region
      $region25: #{_lambda_.26} parent=11 // pred_check
        %p301 = pneg %p204
      $region26: #{_lambda_.26} parent=11 // pred_check_branch
        %303 = sbr.rel (%p301) target = $region28
      $region27: #{_lambda_.26} parent=11 // pred_region
        _
      $region28: #{_lambda_.26} parent=11 // pred_fallthru
        _
      // Predicated region
      $region29: #{_lambda_.26} parent=11 // pred_check
        %p304 = pneg %p225
      $region30: #{_lambda_.26} parent=11 // pred_check_branch
        %306 = sbr.rel (%p304) target = $region32
      $region31: #{_lambda_.26} parent=11 // pred_region
        _
      $region32: #{_lambda_.26} parent=11 // pred_fallthru
        _
    $region12: #{_lambda_.26} parent=5 // pred_fallthru
      _
    %p307 = scmp.lt.s32.totalorder %s16, 2
    // Predicated region
    $region33: #{_lambda_.26} parent=5 // pred_check
      %p308 = pneg %p307
    $region34: #{_lambda_.26} parent=5 // pred_check_branch
      %310 = sbr.rel (%p308) target = $region36
    $region35: #{_lambda_.26} parent=5 // pred_region
      // Predicated region
      $region37: #{_lambda_.26} parent=35 // pred_check
        %p311 = pneg %p36
      $region38: #{_lambda_.26} parent=35 // pred_check_branch
        %313 = sbr.rel (%p311) target = $region40
      $region39: #{_lambda_.26} parent=35 // pred_region
        %p314 = scmp.lt.s32.totalorder %s16, 1
        %s315 = scalar_select %p314, %s16, 1
        %s316 = smul.addr %s315, 2
        %s317 = smul.addr %s316, 4
        %s318 = scalar_lea.vmem %s0, %s317
      $region40: #{_lambda_.26} parent=35 // pred_fallthru
        _
      // Predicated region
      $region41: #{_lambda_.26} parent=35 // pred_check
        %p319 = pneg %p62
      $region42: #{_lambda_.26} parent=35 // pred_check_branch
        %321 = sbr.rel (%p319) target = $region44
      $region43: #{_lambda_.26} parent=35 // pred_region
        %p322 = scmp.lt.s32.totalorder %s16, 1
        %s323 = scalar_select %p322, %s16, 1
        %s324 = smul.addr %s323, 2
        %s325 = smul.addr %s324, 4
        %s326 = scalar_lea.vmem %s1, %s325
      $region44: #{_lambda_.26} parent=35 // pred_fallthru
        _
      // Predicated region
      $region45: #{_lambda_.26} parent=35 // pred_check
        %p327 = pneg %p88
      $region46: #{_lambda_.26} parent=35 // pred_check_branch
        %329 = sbr.rel (%p327) target = $region48
      $region47: #{_lambda_.26} parent=35 // pred_region
        %p330 = scmp.lt.s32.totalorder %s16, 1
        %s331 = scalar_select %p330, %s16, 1
        %s332 = smul.addr %s331, 2
        %s333 = smul.addr %s332, 4
        %s334 = scalar_lea.vmem %s2, %s333
      $region48: #{_lambda_.26} parent=35 // pred_fallthru
        _
      // Predicated region
      $region49: #{_lambda_.26} parent=35 // pred_check
        %p335 = pneg %p114
      $region50: #{_lambda_.26} parent=35 // pred_check_branch
        %337 = sbr.rel (%p335) target = $region52
      $region51: #{_lambda_.26} parent=35 // pred_region
        %p338 = scmp.lt.s32.totalorder %s16, 1
        %s339 = scalar_select %p338, %s16, 1
        %s340 = scalar_lea.vmem %s3, %s339
      $region52: #{_lambda_.26} parent=35 // pred_fallthru
        _
      // Predicated region
      $region53: #{_lambda_.26} parent=35 // pred_check
        %p341 = pneg %p245
      $region54: #{_lambda_.26} parent=35 // pred_check_branch
        %343 = sbr.rel (%p341) target = $region56
      $region55: #{_lambda_.26} parent=35 // pred_region
        %p344 = scmp.lt.s32.totalorder %s16, 1
        %s345 = scalar_select %p344, %s16, 1
        %s346 = smul.addr %s345, 2
        %s347 = smul.addr %s346, 4
        %s348 = scalar_lea.vmem %s9, %s347
      $region56: #{_lambda_.26} parent=35 // pred_fallthru
        _
    $region36: #{_lambda_.26} parent=5 // pred_fallthru
      _
    %p349 = scmp.le.s32.totalorder 1, %s16
    %p350 = scmp.lt.s32.totalorder %s16, 3
    %p351 = pnand %p349, %p350
    %p352 = pneg %p351
    // Predicated region
    $region57: #{_lambda_.26} parent=5 // pred_check
      _
    $region58: #{_lambda_.26} parent=5 // pred_check_branch
      %354 = sbr.rel (%p351) target = $region60
    $region59: #{_lambda_.26} parent=5 // pred_region
      %s355 = ssub.s32 %s16, 1
      %p356 = scmp.lt.s32.totalorder %s21, 1
      %s357 = scalar_select %p356, %s21, 1
      %s358 = smul.addr %s357, 2
      %s359 = smul.addr %s358, 4
      %s360 = scalar_lea.vmem %s0, %s359
      %p361 = pneg %p42
      %p362 = pneg %p39
      %p363 = scmp.lt.s32.totalorder %s21, 1
      %s364 = scalar_select %p363, %s21, 1
      %s365 = smul.addr %s364, 2
      %s366 = smul.addr %s365, 4
      %s367 = scalar_lea.vmem %s1, %s366
      %p368 = pneg %p68
      %p369 = pneg %p65
      %p370 = scmp.lt.s32.totalorder %s21, 1
      %s371 = scalar_select %p370, %s21, 1
      %s372 = smul.addr %s371, 2
      %s373 = smul.addr %s372, 4
      %s374 = scalar_lea.vmem %s2, %s373
      %p375 = pneg %p94
      %p376 = pneg %p91
      %p377 = scmp.lt.s32.totalorder %s21, 1
      %s378 = scalar_select %p377, %s21, 1
      %s379 = scalar_lea.vmem %s3, %s378
      %p380 = pneg %p120
      %p381 = pneg %p117
      %p382 = pneg %p141
      %p383 = pneg %p138
      %p384 = pneg %p162
      %p385 = pneg %p159
      %p386 = pneg %p183
      %p387 = pneg %p180
      %p388 = pneg %p204
      %p389 = pneg %p201
      %p390 = pneg %p225
      %p391 = pneg %p222
      %p392 = scmp.lt.s32.totalorder %s21, 1
      %s393 = scalar_select %p392, %s21, 1
      %s394 = smul.addr %s393, 2
      %s395 = smul.addr %s394, 4
      %s396 = scalar_lea.vmem %s9, %s395
      %p397 = pneg %p251
      %p398 = pneg %p248
      %p399 = pneg %p277
      %p400 = pneg %p274
      %p401 = scmp.lt.s32.totalorder %s21, 1
      %s402 = scalar_select %p401, %s21, 1
      %s403 = smul.addr %s402, 2
      %s404 = smul.addr %s403, 4
      %s405 = scalar_lea.vmem %s10, %s404
      %p406 = scmp.lt.s32.totalorder %s21, 1
      %s407 = scalar_select %p406, %s21, 1
      %s408 = smul.addr %s407, 2
      %s409 = smul.addr %s408, 4
      %s410 = scalar_lea.vmem %s0, %s409
      %p411 = scmp.lt.s32.totalorder %s21, 1
      %s412 = scalar_select %p411, %s21, 1
      %s413 = smul.addr %s412, 2
      %s414 = smul.addr %s413, 4
      %s415 = scalar_lea.vmem %s1, %s414
      %p416 = scmp.lt.s32.totalorder %s21, 1
      %s417 = scalar_select %p416, %s21, 1
      %s418 = smul.addr %s417, 2
      %s419 = smul.addr %s418, 4
      %s420 = scalar_lea.vmem %s2, %s419
      %p421 = scmp.lt.s32.totalorder %s21, 1
      %s422 = scalar_select %p421, %s21, 1
      %s423 = scalar_lea.vmem %s3, %s422
      %p424 = scmp.lt.s32.totalorder %s21, 1
      %s425 = scalar_select %p424, %s21, 1
      %s426 = smul.addr %s425, 2
      %s427 = smul.addr %s426, 4
      %s428 = scalar_lea.vmem %s9, %s427
      %p429 = scmp.lt.s32.totalorder %s21, 1
      %s430 = scalar_select %p429, %s21, 1
      %s431 = smul.addr %s430, 2
      %s432 = smul.addr %s431, 4
      %s433 = scalar_lea.vmem %s10, %s432
      %v435 = vld [vmem:[%s410] sm:$0xf]
      %v436 = vld [vmem:[%s410 + $0x4] sm:$0xf]
      %v437 = vunpack.c.l.bf16 %v435
      %v438 = vunpack.c.l.bf16 %v436
      %v439 = vld [vmem:[%s415] sm:$0xf]
      %v440 = vld [vmem:[%s415 + $0x4] sm:$0xf]
      %v441 = vunpack.c.l.bf16 %v439
      %v442 = vunpack.c.l.bf16 %v440
      %v443 = vld [vmem:[%s4] sm:$0xff]
      %v444 = vld [vmem:[%s4 + $0x8] sm:$0xff]
      %v445 = vmul.f32 %v437, %v443
      %v446 = vmul.f32 %v438, %v444
      %449 = vrot.lane.b32.xlu0 %v437, 72
      %v450 = vpop.permute.xlu0 %449
      %451 = vrot.lane.b32.xlu0 %v438, 72
      %v452 = vpop.permute.xlu0 %451
      %455 = vrot.lane.b32.xlu0 %v437, 8
      %v456 = vpop.permute.xlu0 %455
      %457 = vrot.lane.b32.xlu0 %v438, 8
      %v458 = vpop.permute.xlu0 %457
      %vm461 = vcmask 64512
      %v462 = vsel %vm461, %v450, %v456
      %v463 = vsel %vm461, %v452, %v458
      %464 = vrot.lane.b32.xlu0 %v437, 120
      %v465 = vpop.permute.xlu0 %464
      %466 = vrot.lane.b32.xlu0 %v438, 120
      %v467 = vpop.permute.xlu0 %466
      %470 = vrot.lane.b32.xlu0 %v437, 56
      %v471 = vpop.permute.xlu0 %470
      %472 = vrot.lane.b32.xlu0 %v438, 56
      %v473 = vpop.permute.xlu0 %472
      %vm476 = vcmask 457728
      %v477 = vsel %vm476, %v465, %v471
      %v478 = vsel %vm476, %v467, %v473
      %v479 = vlaneseq
      %v480 = vand.u32 %v479, 127
      %vm481 = vcmp.lt.s32.totalorder %v480, 0
      %v482 = vsub.s32 0, %v480
      %v483 = vsel %vm481, %v482, %v480
      %v484 = vshrl.u32 %v483, 4
      %v485 = vand.u32 %v483, 15
      %v486 = vsub.s32 0, %v485
      %v487 = vsel %vm481, %v486, %v485
      %vm488 = vcmp.ne.s32.totalorder %v487, 0
      %vm489 = vcmp.lt.s32.totalorder %v487, 0
      %vm490 = vmand %vm489, %vm488
      %v491 = vadd.s32 %v487, 16
      %v492 = vsel %vm490, %v491, %v487
      %vm493 = vcmp.lt.s32.totalorder %v492, 8
      %v494 = vsel %vm493, %v477, %v462
      %v495 = vsel %vm493, %v478, %v463
      %v496 = vld [vmem:[%s5] sm:$0xff]
      %v497 = vld [vmem:[%s5 + $0x8] sm:$0xff]
      %v498 = vmul.f32 %v494, %v496
      %v499 = vmul.f32 %v495, %v497
      %v500 = vadd.f32 %v445, %v498
      %v501 = vadd.f32 %v446, %v499
      %v502 = vpack.c.bf16 %v500, %v500
      %v503 = vpack.c.bf16 %v501, %v501
      %v504 = vld [vmem:[%s6] sm:$0xff]
      %v505 = vld [vmem:[%s6 + $0x8] sm:$0xff]
      %v506 = vmul.f32 %v441, %v504
      %v507 = vmul.f32 %v442, %v505
      %510 = vrot.lane.b32.xlu0 %v441, 104
      %v511 = vpop.permute.xlu0 %510
      %512 = vrot.lane.b32.xlu0 %v442, 104
      %v513 = vpop.permute.xlu0 %512
      %516 = vrot.lane.b32.xlu0 %v441, 8
      %v517 = vpop.permute.xlu0 %516
      %518 = vrot.lane.b32.xlu0 %v442, 8
      %v519 = vpop.permute.xlu0 %518
      %v522 = vsel %vm461, %v511, %v517
      %v523 = vsel %vm461, %v513, %v519
      %524 = vrot.lane.b32.xlu0 %v441, 120
      %v525 = vpop.permute.xlu0 %524
      %526 = vrot.lane.b32.xlu0 %v442, 120
      %v527 = vpop.permute.xlu0 %526
      %530 = vrot.lane.b32.xlu0 %v441, 24
      %v531 = vpop.permute.xlu0 %530
      %532 = vrot.lane.b32.xlu0 %v442, 24
      %v533 = vpop.permute.xlu0 %532
      %vm536 = vcmask 195584
      %v537 = vsel %vm536, %v525, %v531
      %v538 = vsel %vm536, %v527, %v533
      %v539 = vsel %vm493, %v537, %v522
      %v540 = vsel %vm493, %v538, %v523
      %v541 = vld [vmem:[%s7] sm:$0xff]
      %v542 = vld [vmem:[%s7 + $0x8] sm:$0xff]
      %v543 = vmul.f32 %v539, %v541
      %v544 = vmul.f32 %v540, %v542
      %v545 = vadd.f32 %v506, %v543
      %v546 = vadd.f32 %v507, %v544
      %v547 = vpack.c.bf16 %v545, %v545
      %v548 = vpack.c.bf16 %v546, %v546
      %v549 = vld [vmem:[%s420] sm:$0xf]
      %v550 = vld [vmem:[%s420 + $0x4] sm:$0xf]
      %v551 = vlaneseq
      %v552 = vshrl.u32 %v551, 7
      %v553 = vadd.s32 %v552, 8
      %v554 = vadd.s32 %v552, 16
      %v555 = vadd.s32 %v552, 24
      %vm556 = vcmp.lt.s32.totalorder %v552, 0
      %v557 = vsub.s32 0, %v552
      %v558 = vsel %vm556, %v557, %v552
      %v559 = vshrl.u32 %v558, 4
      %v560 = vand.u32 %v558, 15
      %v561 = vsub.s32 0, %v560
      %v562 = vsel %vm556, %v561, %v560
      %vm563 = vcmp.lt.s32.totalorder %v553, 0
      %v564 = vsub.s32 0, %v553
      %v565 = vsel %vm563, %v564, %v553
      %v566 = vshrl.u32 %v565, 4
      %v567 = vand.u32 %v565, 15
      %v568 = vsub.s32 0, %v567
      %v569 = vsel %vm563, %v568, %v567
      %vm570 = vcmp.lt.s32.totalorder %v554, 0
      %v571 = vsub.s32 0, %v554
      %v572 = vsel %vm570, %v571, %v554
      %v573 = vshrl.u32 %v572, 4
      %v574 = vand.u32 %v572, 15
      %v575 = vsub.s32 0, %v574
      %v576 = vsel %vm570, %v575, %v574
      %vm577 = vcmp.lt.s32.totalorder %v555, 0
      %v578 = vsub.s32 0, %v555
      %v579 = vsel %vm577, %v578, %v555
      %v580 = vshrl.u32 %v579, 4
      %v581 = vand.u32 %v579, 15
      %v582 = vsub.s32 0, %v581
      %v583 = vsel %vm577, %v582, %v581
      %vm584 = vcmp.ne.s32.totalorder %v562, 0
      %vm585 = vcmp.ne.s32.totalorder %v569, 0
      %vm586 = vcmp.ne.s32.totalorder %v576, 0
      %vm587 = vcmp.ne.s32.totalorder %v583, 0
      %vm588 = vcmp.lt.s32.totalorder %v562, 0
      %vm589 = vcmp.lt.s32.totalorder %v569, 0
      %vm590 = vcmp.lt.s32.totalorder %v576, 0
      %vm591 = vcmp.lt.s32.totalorder %v583, 0
      %vm592 = vmand %vm588, %vm584
      %vm593 = vmand %vm589, %vm585
      %vm594 = vmand %vm590, %vm586
      %vm595 = vmand %vm591, %vm587
      %v596 = vadd.s32 %v562, 16
      %v597 = vadd.s32 %v569, 16
      %v598 = vadd.s32 %v576, 16
      %v599 = vadd.s32 %v583, 16
      %v600 = vsel %vm592, %v596, %v562
      %v601 = vsel %vm593, %v597, %v569
      %v602 = vsel %vm594, %v598, %v576
      %v603 = vsel %vm595, %v599, %v583
      %vm604 = vcmp.le.s32.totalorder %v480, %v600
      %vm605 = vcmp.le.s32.totalorder %v480, %v601
      %vm606 = vcmp.le.s32.totalorder %v480, %v602
      %vm607 = vcmp.le.s32.totalorder %v480, %v603
      %v608 = vld [vmem:[%s423] sm:$0x1]
      %vm609 = vcmp.gt.f32.partialorder %v608, 0.0
      %v610 = vsel %vm609, 1, 0
      %v611 = vperm.slane %v610, 0
      %vm612 = vcmp.eq.s32.totalorder %v611, 1
      %vm613 = vmand %vm604, %vm612
      %vm614 = vmand %vm605, %vm612
      %vm615 = vmand %vm606, %vm612
      %vm616 = vmand %vm607, %vm612
      %v619 = vunpack.c.l.b16 %v502
      %v620 = vunpack.c.l.b16 %v503
      %v621 = vpack.c.b16 %v620, %v619
      %622 = vrot.lane.b32.xlu0 %v621, 112
      %v623 = vpop.permute.xlu0 %622
      %v626 = vunpack.c.l.b16 %v547
      %v627 = vunpack.c.l.b16 %v548
      %v628 = vpack.c.b16 %v627, %v626
      %vm629 = vcmask 130048
      %v631 = vsel %vm629, %v621, 0
      %v634 = vsel %vm629, %v623, 0
      %v637 = vsel %vm629, %v628, 0
      %639 = vmatpush.bf16.xpose.msra.mxu0 0
      %640 = vmatpush.bf16.xpose.msra.mxu0 0
      %641 = vmatpush.bf16.xpose.msra.mxu0 0
      %642 = vmatpush.bf16.xpose.msra.mxu0 0
      %643 = vmatpush.bf16.xpose.msra.mxu0 0
      %644 = vmatpush.bf16.xpose.msra.mxu0 0
      %645 = vmatpush.bf16.xpose.msra.mxu0 0
      %646 = vmatpush.bf16.xpose.msra.mxu0 %v637
      %647 = vmatmul.bf16.gmra.mxu0 %v631
      %v648 = vpop.f32.mrf.mxu0
      %v649 = vadd.f32 0.0, %v648
      %v650 = vpop.f32.mrf.mxu0
      %v651 = vadd.f32 0.0, %v650
      %652 = vmatmul.bf16.gmra.mxu0 %v634
      %v653 = vpop.f32.mrf.mxu0
      %v654 = vadd.f32 0.0, %v653
      %v655 = vpop.f32.mrf.mxu0
      %v656 = vadd.f32 0.0, %v655
      %657 = vdwg.mxu0
      %v658 = vmul.f32 %v649, 0.25
      %v659 = vmul.f32 %v651, 0.25
      %v660 = vmul.f32 %v654, 0.25
      %v661 = vmul.f32 %v656, 0.25
      %v662 = vsel %vm613, %v658, -1e+30
      %v663 = vsel %vm614, %v659, -1e+30
      %v664 = vsel %vm615, %v660, -1e+30
      %v665 = vsel %vm616, %v661, -1e+30
      %v666 = vsel %vm629, %v662, -inf
      %667 = vmax.xlane.f32.xlu0 %v666
      %v668 = vpop.xlane.xlu0 %667
      %v669 = vsel %vm629, %v663, -inf
      %670 = vmax.xlane.f32.xlu0 %v669
      %v671 = vpop.xlane.xlu0 %670
      %v672 = vsel %vm629, %v664, -inf
      %673 = vmax.xlane.f32.xlu0 %v672
      %v674 = vpop.xlane.xlu0 %673
      %v675 = vsel %vm629, %v665, -inf
      %676 = vmax.xlane.f32.xlu0 %v675
      %v677 = vpop.xlane.xlu0 %676
      %v678 = vsub.f32 %v662, %v668
      %v679 = vsub.f32 %v663, %v671
      %v680 = vsub.f32 %v664, %v674
      %v681 = vsub.f32 %v665, %v677
      %v682 = vmul.f32 %v678, 1.442695
      %v683 = vpow.pop %v682
      %v684 = vmul.f32 %v679, 1.442695
      %v685 = vpow.pop %v684
      %v686 = vmul.f32 %v680, 1.442695
      %v687 = vpow.pop %v686
      %v688 = vmul.f32 %v681, 1.442695
      %v689 = vpow.pop %v688
      %v690 = vsel %vm629, %v683, 0.0
      %691 = vadd.xlane.f32.xlu0 %v690
      %v692 = vpop.xlane.xlu0 %691
      %v693 = vsel %vm629, %v685, 0.0
      %694 = vadd.xlane.f32.xlu0 %v693
      %v695 = vpop.xlane.xlu0 %694
      %v696 = vsel %vm629, %v687, 0.0
      %697 = vadd.xlane.f32.xlu0 %v696
      %v698 = vpop.xlane.xlu0 %697
      %v699 = vsel %vm629, %v689, 0.0
      %700 = vadd.xlane.f32.xlu0 %v699
      %v701 = vpop.xlane.xlu0 %700
      %v702 = vrcp.pop %v692
      %v703 = vrcp.pop %v695
      %v704 = vrcp.pop %v698
      %v705 = vrcp.pop %v701
      %v706 = vmul.f32 %v683, %v702
      %v707 = vmul.f32 %v685, %v703
      %v708 = vmul.f32 %v687, %v704
      %v709 = vmul.f32 %v689, %v705
      %v710 = vpack.c.bf16 %v707, %v706
      %v711 = vpack.c.bf16 %v709, %v708
      %v714 = vunpack.c.l.b16 %v549
      %v715 = vunpack.c.l.b16 %v550
      %v716 = vpack.c.b16 %v715, %v714
      %v719 = vsel %vm629, %v710, 0
      %v722 = vsel %vm629, %v711, 0
      %724 = vmatpush.bf16.msra.mxu0 0
      %725 = vmatpush.bf16.msra.mxu0 0
      %726 = vmatpush.bf16.msra.mxu0 0
      %727 = vmatpush.bf16.msra.mxu0 0
      %728 = vmatpush.bf16.msra.mxu0 0
      %729 = vmatpush.bf16.msra.mxu0 0
      %730 = vmatpush.bf16.msra.mxu0 0
      %731 = vmatpush.bf16.msra.mxu0 %v716
      %732 = vmatmul.bf16.gmra.mxu0 %v719
      %v733 = vpop.f32.mrf.mxu0
      %v734 = vadd.f32 0.0, %v733
      %v735 = vpop.f32.mrf.mxu0
      %v736 = vadd.f32 0.0, %v735
      %737 = vmatmul.bf16.gmra.mxu0 %v722
      %v738 = vpop.f32.mrf.mxu0
      %v739 = vadd.f32 0.0, %v738
      %v740 = vpop.f32.mrf.mxu0
      %v741 = vadd.f32 0.0, %v740
      %742 = vdwg.mxu0
      %745 = vrot.lane.b32.xlu0 %v739, 16
      %v746 = vpop.permute.xlu0 %745
      %747 = vrot.lane.b32.xlu0 %v741, 16
      %v748 = vpop.permute.xlu0 %747
      %v751 = vsel %vm629, %v734, %v746
      %v752 = vsel %vm629, %v736, %v748
      %753 = vrot.lane.b32.xlu0 %v621, 96
      %v754 = vpop.permute.xlu0 %753
      %755 = vrot.lane.b32.xlu0 %v623, 96
      %v756 = vpop.permute.xlu0 %755
      %757 = vrot.lane.b32.xlu0 %v628, 112
      %v758 = vpop.permute.xlu0 %757
      %v760 = vsel %vm629, %v754, 0
      %v763 = vsel %vm629, %v756, 0
      %v766 = vsel %vm629, %v758, 0
      %768 = vmatpush.bf16.xpose.msra.mxu0 0
      %769 = vmatpush.bf16.xpose.msra.mxu0 0
      %770 = vmatpush.bf16.xpose.msra.mxu0 0
      %771 = vmatpush.bf16.xpose.msra.mxu0 0
      %772 = vmatpush.bf16.xpose.msra.mxu0 0
      %773 = vmatpush.bf16.xpose.msra.mxu0 0
      %774 = vmatpush.bf16.xpose.msra.mxu0 0
      %775 = vmatpush.bf16.xpose.msra.mxu0 %v766
      %776 = vmatmul.bf16.gmra.mxu0 %v760
      %v777 = vpop.f32.mrf.mxu0
      %v778 = vadd.f32 0.0, %v777
      %v779 = vpop.f32.mrf.mxu0
      %v780 = vadd.f32 0.0, %v779
      %781 = vmatmul.bf16.gmra.mxu0 %v763
      %v782 = vpop.f32.mrf.mxu0
      %v783 = vadd.f32 0.0, %v782
      %v784 = vpop.f32.mrf.mxu0
      %v785 = vadd.f32 0.0, %v784
      %786 = vdwg.mxu0
      %v787 = vmul.f32 %v778, 0.25
      %v788 = vmul.f32 %v780, 0.25
      %v789 = vmul.f32 %v783, 0.25
      %v790 = vmul.f32 %v785, 0.25
      %v791 = vsel %vm613, %v787, -1e+30
      %v792 = vsel %vm614, %v788, -1e+30
      %v793 = vsel %vm615, %v789, -1e+30
      %v794 = vsel %vm616, %v790, -1e+30
      %v795 = vsel %vm629, %v791, -inf
      %796 = vmax.xlane.f32.xlu0 %v795
      %v797 = vpop.xlane.xlu0 %796
      %v798 = vsel %vm629, %v792, -inf
      %799 = vmax.xlane.f32.xlu0 %v798
      %v800 = vpop.xlane.xlu0 %799
      %v801 = vsel %vm629, %v793, -inf
      %802 = vmax.xlane.f32.xlu0 %v801
      %v803 = vpop.xlane.xlu0 %802
      %v804 = vsel %vm629, %v794, -inf
      %805 = vmax.xlane.f32.xlu0 %v804
      %v806 = vpop.xlane.xlu0 %805
      %v807 = vsub.f32 %v791, %v797
      %v808 = vsub.f32 %v792, %v800
      %v809 = vsub.f32 %v793, %v803
      %v810 = vsub.f32 %v794, %v806
      %v811 = vmul.f32 %v807, 1.442695
      %v812 = vpow.pop %v811
      %v813 = vmul.f32 %v808, 1.442695
      %v814 = vpow.pop %v813
      %v815 = vmul.f32 %v809, 1.442695
      %v816 = vpow.pop %v815
      %v817 = vmul.f32 %v810, 1.442695
      %v818 = vpow.pop %v817
      %v819 = vsel %vm629, %v812, 0.0
      %820 = vadd.xlane.f32.xlu0 %v819
      %v821 = vpop.xlane.xlu0 %820
      %v822 = vsel %vm629, %v814, 0.0
      %823 = vadd.xlane.f32.xlu0 %v822
      %v824 = vpop.xlane.xlu0 %823
      %v825 = vsel %vm629, %v816, 0.0
      %826 = vadd.xlane.f32.xlu0 %v825
      %v827 = vpop.xlane.xlu0 %826
      %v828 = vsel %vm629, %v818, 0.0
      %829 = vadd.xlane.f32.xlu0 %v828
      %v830 = vpop.xlane.xlu0 %829
      %v831 = vrcp.pop %v821
      %v832 = vrcp.pop %v824
      %v833 = vrcp.pop %v827
      %v834 = vrcp.pop %v830
      %v835 = vmul.f32 %v812, %v831
      %v836 = vmul.f32 %v814, %v832
      %v837 = vmul.f32 %v816, %v833
      %v838 = vmul.f32 %v818, %v834
      %v839 = vpack.c.bf16 %v836, %v835
      %v840 = vpack.c.bf16 %v838, %v837
      %841 = vrot.lane.b32.xlu0 %v716, 112
      %v842 = vpop.permute.xlu0 %841
      %v845 = vsel %vm629, %v839, 0
      %v848 = vsel %vm629, %v840, 0
      %850 = vmatpush.bf16.msra.mxu0 0
      %851 = vmatpush.bf16.msra.mxu0 0
      %852 = vmatpush.bf16.msra.mxu0 0
      %853 = vmatpush.bf16.msra.mxu0 0
      %854 = vmatpush.bf16.msra.mxu0 0
      %855 = vmatpush.bf16.msra.mxu0 0
      %856 = vmatpush.bf16.msra.mxu0 0
      %857 = vmatpush.bf16.msra.mxu0 %v842
      %858 = vmatmul.bf16.gmra.mxu0 %v845
      %v859 = vpop.f32.mrf.mxu0
      %v860 = vadd.f32 0.0, %v859
      %v861 = vpop.f32.mrf.mxu0
      %v862 = vadd.f32 0.0, %v861
      %863 = vmatmul.bf16.gmra.mxu0 %v848
      %v864 = vpop.f32.mrf.mxu0
      %v865 = vadd.f32 0.0, %v864
      %v866 = vpop.f32.mrf.mxu0
      %v867 = vadd.f32 0.0, %v866
      %868 = vdwg.mxu0
      %871 = vrot.lane.b32.xlu0 %v865, 16
      %v872 = vpop.permute.xlu0 %871
      %873 = vrot.lane.b32.xlu0 %v867, 16
      %v874 = vpop.permute.xlu0 %873
      %v877 = vsel %vm629, %v860, %v872
      %v878 = vsel %vm629, %v862, %v874
      %881 = vrot.lane.b32.xlu0 %v877, 32
      %v882 = vpop.permute.xlu0 %881
      %883 = vrot.lane.b32.xlu0 %v878, 32
      %v884 = vpop.permute.xlu0 %883
      %vm887 = vcmask 261120
      %v888 = vsel %vm887, %v751, %v882
      %v889 = vsel %vm887, %v752, %v884
      %v890 = vpack.c.bf16 %v889, %v888
      %v891 = vld [vmem:[%s8] sm:$0xf]
      %v892 = vld [vmem:[%s8 + $0x4] sm:$0xf]
      %v893 = vld [vmem:[%s8 + $0x8] sm:$0xf]
      %v894 = vld [vmem:[%s8 + $0xc] sm:$0xf]
      %v895 = vld [vmem:[%s8 + $0x10] sm:$0xf]
      %v896 = vld [vmem:[%s8 + $0x14] sm:$0xf]
      %v897 = vld [vmem:[%s8 + $0x18] sm:$0xf]
      %v898 = vld [vmem:[%s8 + $0x1c] sm:$0xf]
      %v899 = vld [vmem:[%s428] sm:$0xf]
      %v900 = vld [vmem:[%s428 + $0x4] sm:$0xf]
      %v901 = vunpack.c.l.bf16 %v899
      %v902 = vunpack.c.l.bf16 %v900
      %v911 = vunpack.c.l.b16 %v891
      %v912 = vunpack.c.l.b16 %v892
      %v913 = vunpack.c.l.b16 %v893
      %v914 = vunpack.c.l.b16 %v894
      %v915 = vunpack.c.l.b16 %v895
      %v916 = vunpack.c.l.b16 %v896
      %v917 = vunpack.c.l.b16 %v897
      %v918 = vunpack.c.l.b16 %v898
      %v919 = vpack.c.b16 %v912, %v911
      %v920 = vpack.c.b16 %v914, %v913
      %v921 = vpack.c.b16 %v916, %v915
      %v922 = vpack.c.b16 %v918, %v917
      %vm927 = vcmask 523264
      %v929 = vsel %vm927, %v890, 0
      %931 = vmatpush.bf16.msra.mxu0 0
      %932 = vmatpush.bf16.msra.mxu0 0
      %933 = vmatpush.bf16.msra.mxu0 0
      %934 = vmatpush.bf16.msra.mxu0 0
      %935 = vmatpush.bf16.msra.mxu0 %v922
      %936 = vmatpush.bf16.msra.mxu0 %v921
      %937 = vmatpush.bf16.msra.mxu0 %v920
      %938 = vmatpush.bf16.msra.mxu0 %v919
      %939 = vmatmul.bf16.gmra.mxu0 %v929
      %v940 = vpop.f32.mrf.mxu0
      %v941 = vadd.f32 %v901, %v940
      %v942 = vpop.f32.mrf.mxu0
      %v943 = vadd.f32 %v902, %v942
      %944 = vdwg.mxu0
      %v945 = vpack.c.bf16 %v941, %v941
      %v946 = vpack.c.bf16 %v943, %v943
      %vm947 = vcmask 519168
      %948 = vst.msk [vmem:[%s433] sm:$0xf] %vm947, %v945
      %949 = vst.msk [vmem:[%s433 + $0x4] sm:$0xf] %vm947, %v946
      %p950 = scmp.lt.s32.totalorder %s21, 1
      %s951 = scalar_select %p950, %s21, 1
      %s952 = smul.addr %s951, 2
      %s953 = smul.addr %s952, 4
      %s954 = scalar_lea.vmem %s10, %s953
      // Predicated region
      $region61: #{_lambda_.26} parent=59 // pred_check
        %p955 = pneg %p274
      $region62: #{_lambda_.26} parent=59 // pred_check_branch
        %957 = sbr.rel (%p955) target = $region64
      $region63: #{_lambda_.26} parent=59 // pred_region
        _
      $region64: #{_lambda_.26} parent=59 // pred_fallthru
        _
    $region60: #{_lambda_.26} parent=5 // pred_fallthru
      _
    %p958 = scmp.le.s32.totalorder 2, %s16
    // Predicated region
    $region65: #{_lambda_.26} parent=5 // pred_check
      %p959 = pneg %p958
    $region66: #{_lambda_.26} parent=5 // pred_check_branch
      %961 = sbr.rel (%p959) target = $region68
    $region67: #{_lambda_.26} parent=5 // pred_region
      %s962 = ssub.s32 %s16, 2
      // Predicated region
      $region69: #{_lambda_.26} parent=67 // pred_check
        %p963 = pneg %p280
      $region70: #{_lambda_.26} parent=67 // pred_check_branch
        %965 = sbr.rel (%p963) target = $region72
      $region71: #{_lambda_.26} parent=67 // pred_region
        %p966 = scmp.lt.s32.totalorder %s22, 1
        %s967 = scalar_select %p966, %s22, 1
        %s968 = smul.addr %s967, 2
        %s969 = smul.addr %s968, 4
        %s970 = scalar_lea.vmem %s10, %s969
      $region72: #{_lambda_.26} parent=67 // pred_fallthru
        _
    $region68: #{_lambda_.26} parent=5 // pred_fallthru
      _
  $region6: #{_lambda_.26} parent=0 // loop_footer
    %s20 = sadd.s32 1, %s16
  $region7: #{_lambda_.26} parent=0 // loop_footer_branch
    %15 = sbr.rel target = $region3
  $region8: #{_lambda_.26} parent=0 // loop_exit
    _

</llo_original>
